<compile_context>
chip_gen: v7x
topology: tpu7x:2x2x1
jax: 0.10.0
libtpu: 0.0.40
codegen_flags: <defaults>
</compile_context>

<pallas_src>
from functools import partial

import jax
import jax.numpy as jnp
import numpy as np
from jax.experimental import pallas as pl
from jax.experimental.pallas import tpu as pltpu

_VMEM_LIMIT = 32 * 1024 * 1024        # safe scoped-VMEM request on v5e/v6e/v7x
_FUSED_BUDGET = 18 * 1024 * 1024      # conservative working-set bound (fused path)


# ---------------------------------------------------------------------------
# Prologue (tiled path): XW1 = X @ W1, computed exactly once
# (hoisted out of the aggregation hot loop per the performance review).
# ---------------------------------------------------------------------------
def feature_gemm_kernel(x_ref, w_ref, o_ref):
    o_ref[...] = jnp.dot(x_ref[...], w_ref[...],
                         preferred_element_type=jnp.float32).astype(o_ref.dtype)


# ---------------------------------------------------------------------------
# Kernel 1 (tiled path): layer-1 aggregation + fused HW2 = h1 @ W2.
#   inner loop : acc += Â[i,k] @ XW1[k]            (single bf16 matmul / step)
#   k == last  : h1 = relu(acc + b1);  hw2[i] = h1 @ W2   (bf16 output)
# h1 itself is never written to HBM (layer 2 only needs HW2).
# ---------------------------------------------------------------------------
def gcn_layer1_kernel(adj_ref, xw_ref, b1_ref, w2_ref, hw2_ref, acc_ref):
    k = pl.program_id(1)
    block_n = adj_ref.shape[1]

    @pl.when(k == 0)
    def _init():
        acc_ref[...] = jnp.zeros_like(acc_ref)

    ks = pl.multiple_of(k * block_n, block_n)
    acc_ref[...] += jnp.dot(adj_ref[...], xw_ref[pl.ds(ks, block_n), :],
                            preferred_element_type=jnp.float32)

    @pl.when(k == pl.num_programs(1) - 1)
    def _finalize():
        h1 = jnp.maximum(acc_ref[...] + b1_ref[...], 0.0).astype(jnp.bfloat16)
        hw2_ref[...] = jnp.dot(
            h1, w2_ref[...],
            preferred_element_type=jnp.float32).astype(hw2_ref.dtype)


# ---------------------------------------------------------------------------
# Kernel 2 (tiled path): layer-2 aggregation + per-row-tile partial pooling.
#   inner loop : acc += Â[i,k] @ HW2[k]
#   k == last  : h2 = relu(acc + b2);  partial[i] = onehot(batch[i]) @ h2
# Per-row-tile partial pooled sums -> the row axis is "parallel" (megacore).
# ---------------------------------------------------------------------------
def gcn_layer2_pool_kernel(adj_ref, hw2_ref, bidx_ref, b2_ref, part_ref,
                           acc_ref):
    k = pl.program_id(1)
    block_n = adj_ref.shape[1]

    @pl.when(k == 0)
    def _init():
        acc_ref[...] = jnp.zeros_like(acc_ref)

    ks = pl.multiple_of(k * block_n, block_n)
    acc_ref[...] += jnp.dot(adj_ref[...], hw2_ref[pl.ds(ks, block_n), :],
                            preferred_element_type=jnp.float32)

    @pl.when(k == pl.num_programs(1) - 1)
    def _pool():
        h2 = jnp.maximum(acc_ref[...] + b2_ref[...], 0.0)       # [TM, Hp] f32
        gp = part_ref.shape[1]
        tm = bidx_ref.shape[1]
        gid = jax.lax.broadcasted_iota(jnp.int32, (gp, tm), 0)
        onehot = (bidx_ref[...] == gid).astype(jnp.float32)      # [Gp, TM]
        part_ref[0] = jnp.dot(onehot, h2, preferred_element_type=jnp.float32)


# ---------------------------------------------------------------------------
# Epilogue (tiled path): combine partial pools + final Linear + log-softmax.
# Everything f32; Gp x Hp is tiny.
# ---------------------------------------------------------------------------
def classify_kernel(parts_ref, wf_ref, bf_ref, out_ref, *, num_classes):
    pooled = jnp.sum(parts_ref[...], axis=0)                     # [Gp, Hp]
    logits = jnp.dot(pooled, wf_ref[...],
                     preferred_element_type=jnp.float32) + bf_ref[...]
    col = jax.lax.broadcasted_iota(jnp.int32, logits.shape, 1)
    logits = jnp.where(col < num_classes, logits, -1e30)         # mask pad lanes
    m = jnp.max(logits, axis=-1, keepdims=True)
    shifted = logits - m
    lse = jnp.log(jnp.sum(jnp.exp(shifted), axis=-1, keepdims=True))
    out_ref[...] = shifted - lse


# ---------------------------------------------------------------------------
# Fused fast path (small graphs): whole forward in ONE kernel launch with Â
# VMEM-resident, read from HBM exactly once.
# ---------------------------------------------------------------------------
def fused_gnn_kernel(adj_ref, x_ref, bidx_ref, w1_ref, b1_ref, w2_ref, b2_ref,
                     wf_ref, bf_ref, out_ref, *, num_classes):
    adj = adj_ref[...]                                           # [Np, Np] bf16
    xw1 = jnp.dot(x_ref[...], w1_ref[...],
                  preferred_element_type=jnp.float32).astype(jnp.bfloat16)
    h1 = jnp.maximum(jnp.dot(adj, xw1, preferred_element_type=jnp.float32)
                     + b1_ref[...], 0.0).astype(jnp.bfloat16)
    hw2 = jnp.dot(h1, w2_ref[...],
                  preferred_element_type=jnp.float32).astype(jnp.bfloat16)
    h2 = jnp.maximum(jnp.dot(adj, hw2, preferred_element_type=jnp.float32)
                     + b2_ref[...], 0.0)                         # [Np, Hp] f32
    gp = out_ref.shape[0]
    n = bidx_ref.shape[1]
    gid = jax.lax.broadcasted_iota(jnp.int32, (gp, n), 0)
    onehot = (bidx_ref[...] == gid).astype(jnp.float32)          # [Gp, Np]
    pooled = jnp.dot(onehot, h2, preferred_element_type=jnp.float32)
    logits = jnp.dot(pooled, wf_ref[...],
                     preferred_element_type=jnp.float32) + bf_ref[...]
    col = jax.lax.broadcasted_iota(jnp.int32, logits.shape, 1)
    logits = jnp.where(col < num_classes, logits, -1e30)
    m = jnp.max(logits, axis=-1, keepdims=True)
    shifted = logits - m
    lse = jnp.log(jnp.sum(jnp.exp(shifted), axis=-1, keepdims=True))
    out_ref[...] = shifted - lse


# ---------------------------------------------------------------------------
# Wrapper: padding, path dispatch, BlockSpecs, pallas_calls.
# ---------------------------------------------------------------------------
def _rup(v, m):
    return ((v + m - 1) // m) * m


def gnn_graph_classif_forward(adj, x, batch, num_graphs, num_classes,
                              w1, b1, w2, b2, wf, bf, *, block_n=512,
                              use_fused=None):
    N = adj.shape[0]
    F = x.shape[1]
    H = w1.shape[1]
    C = wf.shape[1]

    Fp = _rup(F, 128)                 # lane-dense feature / hidden / class dims
    Hp = _rup(H, 128)
    Cp = _rup(C, 128)
    # Dummy pooled slot is ALWAYS reserved: padded nodes produce h2 = relu(b2)
    # != 0 and must never land in a real graph's pooled vector.
    Gp = _rup(num_graphs + 1, 8)

    # Small-graph fast path: whole problem VMEM-resident, Â read once.
    Np_fused = _rup(N, 128)
    fused_est = (2 * Np_fused * Np_fused + 2 * Np_fused * Fp
                 + 24 * Np_fused * Hp
                 + 2 * (Fp * Hp + Hp * Hp) + 4 * Hp * Cp)
    if use_fused is None:
        use_fused = fused_est <= _FUSED_BUDGET

    Np = Np_fused if use_fused else _rup(N, block_n)

    f32, bf16 = jnp.float32, jnp.bfloat16

    # Padded operands built directly in bf16 (no NpxNp f32 intermediate).
    adj_p = jnp.zeros((Np, Np), bf16).at[:N, :N].set(adj.astype(bf16))
    x_p = jnp.zeros((Np, Fp), bf16).at[:N, :F].set(x.astype(bf16))
    w1_p = jnp.zeros((Fp, Hp), bf16).at[:F, :H].set(w1.astype(bf16))
    w2_p = jnp.zeros((Hp, Hp), bf16).at[:H, :H].set(w2.astype(bf16))
    wf_p = jnp.zeros((Hp, Cp), f32).at[:H, :C].set(wf)     # epilogue stays f32
    b1_p = jnp.zeros((1, Hp), f32).at[0, :H].set(b1.reshape(-1))
    b2_p = jnp.zeros((1, Hp), f32).at[0, :H].set(b2.reshape(-1))
    bf_p = jnp.zeros((1, Cp), f32).at[0, :C].set(bf.reshape(-1))
    # Per-node graph ids; padded nodes routed to the dummy slot num_graphs.
    bidx = jnp.full((1, Np), num_graphs, dtype=jnp.int32).at[0, :N].set(
        batch.astype(jnp.int32))

    if use_fused:
        out_padded = pl.pallas_call(
            partial(fused_gnn_kernel, num_classes=num_classes),
            out_shape=jax.ShapeDtypeStruct((Gp, Cp), jnp.float32),
            compiler_params=pltpu.CompilerParams(
                vmem_limit_bytes=_VMEM_LIMIT),
            cost_estimate=pl.CostEstimate(
                flops=(2 * Np * Fp * Hp + 4 * Np * Np * Hp + 2 * Np * Hp * Hp
                       + 2 * Gp * Np * Hp + 2 * Gp * Hp * Cp),
                transcendentals=Gp * Cp,
                bytes_accessed=(2 * Np * Np + 2 * Np * Fp + 4 * Np
                                + 2 * (Fp * Hp + Hp * Hp) + 4 * Hp * Cp
                                + 4 * Gp * Cp)),
        )(adj_p, x_p, bidx, w1_p, b1_p, w2_p, b2_p, wf_p, bf_p)
        return out_padded[:num_graphs, :num_classes]

    # ------------------------ tiled multi-kernel path ----------------------
    nt = Np // block_n

    # Prologue: XW1 = X @ W1 (computed once, bf16 output).
    xw1 = pl.pallas_call(
        feature_gemm_kernel,
        out_shape=jax.ShapeDtypeStruct((Np, Hp), bf16),
        grid_spec=pltpu.PrefetchScalarGridSpec(
            num_scalar_prefetch=0,
            grid=(nt,),
            in_specs=[pl.BlockSpec((block_n, Fp), lambda i: (i, 0)),
                      pl.BlockSpec((Fp, Hp), lambda i: (0, 0))],
            out_specs=pl.BlockSpec((block_n, Hp), lambda i: (i, 0)),
        ),
        compiler_params=pltpu.CompilerParams(
            dimension_semantics=("parallel",),
            vmem_limit_bytes=_VMEM_LIMIT),
        cost_estimate=pl.CostEstimate(
            flops=2 * Np * Fp * Hp, transcendentals=0,
            bytes_accessed=2 * Np * Fp + 2 * Fp * Hp + 2 * Np * Hp),
    )(x_p, w1_p)

    # Layer 1 aggregation (+ fused HW2 = h1 @ W2 in the finalize).
    # XW1 is VMEM-resident (constant index_map); Â is the only HBM stream.
    # TODO(synk): try pipeline_mode=pl.Buffered(3) on the Â spec if a trace
    # still shows exposed DMA waits.
    hw2 = pl.pallas_call(
        gcn_layer1_kernel,
        out_shape=jax.ShapeDtypeStruct((Np, Hp), bf16),
        grid_spec=pltpu.PrefetchScalarGridSpec(
            num_scalar_prefetch=0,
            grid=(nt, nt),
            in_specs=[
                pl.BlockSpec((block_n, block_n), lambda i, k: (i, k)),  # Â tile
                pl.BlockSpec((Np, Hp), lambda i, k: (0, 0)),   # XW1 resident
                pl.BlockSpec((1, Hp), lambda i, k: (0, 0)),    # b1 resident
                pl.BlockSpec((Hp, Hp), lambda i, k: (0, 0)),   # W2 resident
            ],
            out_specs=pl.BlockSpec((block_n, Hp), lambda i, k: (i, 0)),
            scratch_shapes=[pltpu.VMEM((block_n, Hp), jnp.float32)],
        ),
        compiler_params=pltpu.CompilerParams(
            dimension_semantics=("parallel", "arbitrary"),
            vmem_limit_bytes=_VMEM_LIMIT),
        cost_estimate=pl.CostEstimate(
            flops=2 * Np * Np * Hp + 2 * Np * Hp * Hp,
            transcendentals=0,
            bytes_accessed=(2 * Np * Np + 4 * Np * Hp
                            + 2 * Hp * Hp + 4 * Hp)),
    )(adj_p, xw1, b1_p, w2_p)

    # Layer 2 aggregation + per-row-tile partial global_add_pool.
    partials = pl.pallas_call(
        gcn_layer2_pool_kernel,
        out_shape=jax.ShapeDtypeStruct((nt, Gp, Hp), jnp.float32),
        grid_spec=pltpu.PrefetchScalarGridSpec(
            num_scalar_prefetch=0,
            grid=(nt, nt),
            in_specs=[
                pl.BlockSpec((block_n, block_n), lambda i, k: (i, k)),  # Â tile
                pl.BlockSpec((Np, Hp), lambda i, k: (0, 0)),     # HW2 resident
                pl.BlockSpec((1, block_n), lambda i, k: (0, i)),  # graph ids
                pl.BlockSpec((1, Hp), lambda i, k: (0, 0)),       # b2 resident
            ],
            out_specs=pl.BlockSpec((1, Gp, Hp), lambda i, k: (i, 0, 0)),
            scratch_shapes=[pltpu.VMEM((block_n, Hp), jnp.float32)],
        ),
        compiler_params=pltpu.CompilerParams(
            dimension_semantics=("parallel", "arbitrary"),
            vmem_limit_bytes=_VMEM_LIMIT),
        cost_estimate=pl.CostEstimate(
            flops=2 * Np * Np * Hp + 2 * Gp * Np * Hp,
            transcendentals=0,
            bytes_accessed=(2 * Np * Np + 2 * Np * Hp + 4 * Np
                            + 4 * Hp + 4 * nt * Gp * Hp)),
    )(adj_p, hw2, bidx, b2_p)

    # Epilogue: combine partials + final Linear + LogSoftmax (f32, tiny).
    out_padded = pl.pallas_call(
        partial(classify_kernel, num_classes=num_classes),
        out_shape=jax.ShapeDtypeStruct((Gp, Cp), jnp.float32),
        compiler_params=pltpu.CompilerParams(vmem_limit_bytes=_VMEM_LIMIT),
    )(partials, wf_p, bf_p)

    return out_padded[:num_graphs, :num_classes]


# ---------------------------------------------------------------------------
# Host-side graph preprocessing (scatter-style sparse message passing has no
# clean Pallas TPU equivalent; GCN is expressed with a dense normalized Â).
# ---------------------------------------------------------------------------
def build_normalized_adjacency(edge_index, num_nodes):
    """Dense Â = D^{-1/2} (A_sym + I) D^{-1/2}  (PyG GCNConv gcn_norm semantics).

    Notes:
      * .set() silently dedups parallel edges (fine for a 0/1 GCN adjacency).
      * edge_index is assumed NOT to already contain self-loops; like PyG's
        add_self_loops, a diagonal of 1 is added unconditionally.
    """
    src, dst = edge_index
    a = jnp.zeros((num_nodes, num_nodes), jnp.float32)
    a = a.at[src, dst].set(1.0)
    a = a.at[dst, src].set(1.0)                       # undirected graph
    a = a + jnp.eye(num_nodes, dtype=jnp.float32)     # self loops
    deg = jnp.sum(a, axis=1)
    d_inv_sqrt = jnp.where(deg > 0, 1.0 / jnp.sqrt(deg), 0.0)
    return d_inv_sqrt[:, None] * a * d_inv_sqrt[None, :]


def reference_forward(adj, x, batch, num_graphs, w1, b1, w2, b2, wf, bf):
    """Pure-JAX reference mirroring the kernels' precision model: bf16 MXU
    operands (Â, X, W1, W2, streamed intermediates) with f32 accumulation;
    biases, h2, pooling, classifier and log-softmax in f32."""
    q = lambda a: a.astype(jnp.bfloat16).astype(jnp.float32)
    adj_q = q(adj)
    xw1 = q(q(x) @ q(w1))
    h1 = q(jnp.maximum(adj_q @ xw1 + b1.reshape(1, -1), 0.0))
    hw2 = q(h1 @ q(w2))
    h2 = jnp.maximum(adj_q @ hw2 + b2.reshape(1, -1), 0.0)
    pool = (batch[None, :] == jnp.arange(num_graphs)[:, None]).astype(jnp.float32)
    pooled = pool @ h2
    logits = pooled @ wf + bf.reshape(1, -1)
    return jax.nn.log_softmax(logits, axis=1)


if __name__ == "__main__":
    # Small shapes consistent with the module's forward (defaults: H=64).
    N, F, H, C, G = 512, 16, 64, 8, 4     # nodes, features, neurons, classes, graphs
    nodes_per_graph = N // G

    key = jax.random.PRNGKey(0)
    k_x, k_w1, k_b1, k_w2, k_b2, k_wf, k_bf = jax.random.split(key, 7)

    # Node features.
    x = jax.random.normal(k_x, (N, F), dtype=jnp.float32)

    # Deterministic ring edges within each graph.
    base = np.repeat(np.arange(G) * nodes_per_graph, nodes_per_graph)
    offs = np.tile(np.arange(nodes_per_graph), G)
    src = base + offs
    dst = base + (offs + 1) % nodes_per_graph
    edge_index = jnp.array(np.stack([src, dst]), dtype=jnp.int32)

    # Graph membership of each node.
    batch = jnp.repeat(jnp.arange(G, dtype=jnp.int32), nodes_per_graph)

    # Deterministic synthetic parameters (no checkpoint load).
    scale = 0.1
    w1 = scale * jax.random.normal(k_w1, (F, H), dtype=jnp.float32)
    b1 = scale * jax.random.normal(k_b1, (H,), dtype=jnp.float32)
    w2 = scale * jax.random.normal(k_w2, (H, H), dtype=jnp.float32)
    b2 = scale * jax.random.normal(k_b2, (H,), dtype=jnp.float32)
    wf = scale * jax.random.normal(k_wf, (H, C), dtype=jnp.float32)
    bf = scale * jax.random.normal(k_bf, (C,), dtype=jnp.float32)

    adj = build_normalized_adjacency(edge_index, N)   # [N, N] dense normalized Â
    ref = reference_forward(adj, x, batch, G, w1, b1, w2, b2, wf, bf)

    # Path 1: small-graph fused single-kernel fast path (auto-selected here).
    out_fused = jax.block_until_ready(
        gnn_graph_classif_forward(adj, x, batch, G, C,
                                  w1, b1, w2, b2, wf, bf))
    np.testing.assert_allclose(np.asarray(out_fused), np.asarray(ref),
                               rtol=2e-3, atol=2e-3)

    # Path 2: tiled multi-kernel path (forced) — exercises the prologue GEMM,
    # K-axis accumulation, per-tile partial pooling and the classifier
    # epilogue on a 2x2 grid.
    out_tiled = jax.block_until_ready(
        gnn_graph_classif_forward(adj, x, batch, G, C,
                                  w1, b1, w2, b2, wf, bf,
                                  block_n=256, use_fused=False))
    np.testing.assert_allclose(np.asarray(out_tiled), np.asarray(ref),
                               rtol=2e-3, atol=2e-3)

    # TODO(synk): GIN / GraphSAGE layer variants and extra hidden Linear layers
    # (n_linear_layers > 1) of the original module are not implemented (the
    # spec's default hyperparameters use none of them).
    print("KERNEL_OK")
</pallas_src>

<mosaic_0001>
module attributes {stable_mosaic.version = 11 : i64} {
  func.func @fused_gnn_kernel(%arg0: memref<512x512xbf16, #tpu.memory_space<vmem>>, %arg1: memref<512x128xbf16, #tpu.memory_space<vmem>>, %arg2: memref<1x512xi32, #tpu.memory_space<vmem>>, %arg3: memref<128x128xbf16, #tpu.memory_space<vmem>>, %arg4: memref<1x128xf32, #tpu.memory_space<vmem>>, %arg5: memref<128x128xbf16, #tpu.memory_space<vmem>>, %arg6: memref<1x128xf32, #tpu.memory_space<vmem>>, %arg7: memref<128x128xf32, #tpu.memory_space<vmem>>, %arg8: memref<1x128xf32, #tpu.memory_space<vmem>>, %arg9: memref<8x128xf32, #tpu.memory_space<vmem>>) attributes {dimension_semantics = [], scalar_prefetch = 0 : i64, scratch_operands = 0 : i64, tpu.core_type = #tpu.core_type<tc>} {
    %c0 = arith.constant 0 : index
    %c0_0 = arith.constant 0 : index
    %0 = vector.load %arg0[%c0, %c0_0] : memref<512x512xbf16, #tpu.memory_space<vmem>>, vector<512x512xbf16>
    %c0_1 = arith.constant 0 : index
    %c0_2 = arith.constant 0 : index
    %1 = vector.load %arg1[%c0_1, %c0_2] : memref<512x128xbf16, #tpu.memory_space<vmem>>, vector<512x128xbf16>
    %c0_3 = arith.constant 0 : index
    %c0_4 = arith.constant 0 : index
    %2 = vector.load %arg3[%c0_3, %c0_4] : memref<128x128xbf16, #tpu.memory_space<vmem>>, vector<128x128xbf16>
    %cst = arith.constant dense<0.000000e+00> : vector<512x128xf32>
    %3 = tpu.matmul %1, %2, %cst {dimension_numbers = #tpu.dot_dimension_numbers<[1], [0], [0], [1], [0, 0, 1, 1], [], []>} : vector<512x128xbf16>, vector<128x128xbf16>, vector<512x128xf32> -> vector<512x128xf32>
    %4 = arith.truncf %3 : vector<512x128xf32> to vector<512x128xbf16>
    %cst_5 = arith.constant dense<0.000000e+00> : vector<512x128xf32>
    %5 = tpu.matmul %0, %4, %cst_5 {dimension_numbers = #tpu.dot_dimension_numbers<[1], [0], [0], [1], [0, 0, 1, 1], [], []>} : vector<512x512xbf16>, vector<512x128xbf16>, vector<512x128xf32> -> vector<512x128xf32>
    %c0_6 = arith.constant 0 : index
    %c0_7 = arith.constant 0 : index
    %6 = vector.load %arg4[%c0_6, %c0_7] : memref<1x128xf32, #tpu.memory_space<vmem>>, vector<1x128xf32>
    %7 = vector.broadcast %6 : vector<1x128xf32> to vector<512x128xf32>
    %8 = arith.addf %5, %7 : vector<512x128xf32>
    %cst_8 = arith.constant 0.000000e+00 : f32
    %9 = vector.broadcast %cst_8 : f32 to vector<512x128xf32>
    %10 = arith.maximumf %8, %9 : vector<512x128xf32>
    %11 = arith.truncf %10 : vector<512x128xf32> to vector<512x128xbf16>
    %c0_9 = arith.constant 0 : index
    %c0_10 = arith.constant 0 : index
    %12 = vector.load %arg5[%c0_9, %c0_10] : memref<128x128xbf16, #tpu.memory_space<vmem>>, vector<128x128xbf16>
    %cst_11 = arith.constant dense<0.000000e+00> : vector<512x128xf32>
    %13 = tpu.matmul %11, %12, %cst_11 {dimension_numbers = #tpu.dot_dimension_numbers<[1], [0], [0], [1], [0, 0, 1, 1], [], []>} : vector<512x128xbf16>, vector<128x128xbf16>, vector<512x128xf32> -> vector<512x128xf32>
    %14 = arith.truncf %13 : vector<512x128xf32> to vector<512x128xbf16>
    %cst_12 = arith.constant dense<0.000000e+00> : vector<512x128xf32>
    %15 = tpu.matmul %0, %14, %cst_12 {dimension_numbers = #tpu.dot_dimension_numbers<[1], [0], [0], [1], [0, 0, 1, 1], [], []>} : vector<512x512xbf16>, vector<512x128xbf16>, vector<512x128xf32> -> vector<512x128xf32>
    %c0_13 = arith.constant 0 : index
    %c0_14 = arith.constant 0 : index
    %16 = vector.load %arg6[%c0_13, %c0_14] : memref<1x128xf32, #tpu.memory_space<vmem>>, vector<1x128xf32>
    %17 = vector.broadcast %16 : vector<1x128xf32> to vector<512x128xf32>
    %18 = arith.addf %15, %17 : vector<512x128xf32>
    %cst_15 = arith.constant 0.000000e+00 : f32
    %19 = vector.broadcast %cst_15 : f32 to vector<512x128xf32>
    %20 = arith.maximumf %18, %19 : vector<512x128xf32>
    %21 = tpu.iota {dimensions = array<i32: 0>} : vector<8x512xi32>
    %c0_16 = arith.constant 0 : index
    %c0_17 = arith.constant 0 : index
    %22 = vector.load %arg2[%c0_16, %c0_17] : memref<1x512xi32, #tpu.memory_space<vmem>>, vector<1x512xi32>
    %23 = vector.broadcast %22 : vector<1x512xi32> to vector<8x512xi32>
    %24 = arith.cmpi eq, %23, %21 : vector<8x512xi32>
    %25 = arith.extui %24 : vector<8x512xi1> to vector<8x512xi32>
    %26 = arith.sitofp %25 : vector<8x512xi32> to vector<8x512xf32>
    %cst_18 = arith.constant dense<0.000000e+00> : vector<8x128xf32>
    %27 = tpu.matmul %26, %20, %cst_18 {dimension_numbers = #tpu.dot_dimension_numbers<[1], [0], [0], [1], [0, 0, 1, 1], [], []>} : vector<8x512xf32>, vector<512x128xf32>, vector<8x128xf32> -> vector<8x128xf32>
    %c0_19 = arith.constant 0 : index
    %c0_20 = arith.constant 0 : index
    %28 = vector.load %arg7[%c0_19, %c0_20] : memref<128x128xf32, #tpu.memory_space<vmem>>, vector<128x128xf32>
    %cst_21 = arith.constant dense<0.000000e+00> : vector<8x128xf32>
    %29 = tpu.matmul %27, %28, %cst_21 {dimension_numbers = #tpu.dot_dimension_numbers<[1], [0], [0], [1], [0, 0, 1, 1], [], []>} : vector<8x128xf32>, vector<128x128xf32>, vector<8x128xf32> -> vector<8x128xf32>
    %c0_22 = arith.constant 0 : index
    %c0_23 = arith.constant 0 : index
    %30 = vector.load %arg8[%c0_22, %c0_23] : memref<1x128xf32, #tpu.memory_space<vmem>>, vector<1x128xf32>
    %31 = vector.broadcast %30 : vector<1x128xf32> to vector<8x128xf32>
    %32 = arith.addf %29, %31 : vector<8x128xf32>
    %33 = tpu.iota {dimensions = array<i32: 1>} : vector<8x128xi32>
    %c8_i32 = arith.constant 8 : i32
    %34 = vector.broadcast %c8_i32 : i32 to vector<8x128xi32>
    %35 = arith.cmpi slt, %33, %34 : vector<8x128xi32>
    %cst_24 = arith.constant -1.000000e+30 : f32
    %36 = vector.broadcast %cst_24 : f32 to vector<8x128xf32>
    %37 = arith.select %35, %32, %36 : vector<8x128xi1>, vector<8x128xf32>
    %cst_25 = arith.constant dense<0xFF800000> : vector<8xf32>
    %38 = vector.multi_reduction <maximumf>, %37, %cst_25 [1] : vector<8x128xf32> to vector<8xf32>
    %39 = vector.shape_cast %38 : vector<8xf32> to vector<8x1xf32>
    %40 = vector.broadcast %39 : vector<8x1xf32> to vector<8x128xf32>
    %41 = arith.subf %37, %40 : vector<8x128xf32>
    %42 = math.exp %41 : vector<8x128xf32>
    %cst_26 = arith.constant dense<0.000000e+00> : vector<8xf32>
    %43 = vector.multi_reduction <add>, %42, %cst_26 [1] : vector<8x128xf32> to vector<8xf32>
    %44 = vector.shape_cast %43 : vector<8xf32> to vector<8x1xf32>
    %45 = math.log %44 : vector<8x1xf32>
    %46 = vector.broadcast %45 : vector<8x1xf32> to vector<8x128xf32>
    %47 = arith.subf %41, %46 : vector<8x128xf32>
    %c0_27 = arith.constant 0 : index
    %c0_28 = arith.constant 0 : index
    %48 = vector.load %arg9[%c0_27, %c0_28] : memref<8x128xf32, #tpu.memory_space<vmem>>, vector<8x128xf32>
    tpu.vector_store %arg9[%c0_27, %c0_28], %47 {strides = array<i32>} : memref<8x128xf32, #tpu.memory_space<vmem>>, vector<8x128xf32>,
    return
  }
}

</mosaic_0001>

<llo_original>
// kernel: tpu_custom_call.1
$region0: #{tpu_custom_call.1}
  #allocation0 [shape = 'u32[]', space=smem, size = 0x4, offset = 0x4, fixed_abs, tag = 'smem constant byte address 0x4 - core index']
  #allocation1 [shape = 'u32[144,128]{1,0:T(1,128)}', space=vmem, size = 0x12000, scoped, tag = 'internal scratch']
  %s0 = inlined_call_operand.hbm [shape: bf16[512,512], index: 0, kind: input, shape index: {}]
  %s1 = inlined_call_operand.hbm [shape: bf16[512,128], index: 1, kind: input, shape index: {}]
  %s2 = inlined_call_operand.vmem [shape: s32[1,512], index: 2, kind: input, shape index: {}]
  %s3 = inlined_call_operand.hbm [shape: bf16[128,128], index: 3, kind: input, shape index: {}]
  %s4 = inlined_call_operand.vmem [shape: f32[1,128], index: 4, kind: input, shape index: {}]
  %s5 = inlined_call_operand.hbm [shape: bf16[128,128], index: 5, kind: input, shape index: {}]
  %s6 = inlined_call_operand.vmem [shape: f32[1,128], index: 6, kind: input, shape index: {}]
  %s7 = inlined_call_operand.hbm [shape: f32[128,128], index: 7, kind: input, shape index: {}]
  %s8 = inlined_call_operand.vmem [shape: f32[1,128], index: 8, kind: input, shape index: {}]
  %s9 = inlined_call_operand.hbm [shape: f32[8,128], index: 9, kind: output, shape index: {}]
  %s10 = sld [smem:[#allocation0]]
  $region66: #{tpu_custom_call.1} parent=0
    _
  %s12 = ssub.s32 1, %s10
  %s13 = scalar_select 0, %s12, %s10
  $region1: #{tpu_custom_call.1} parent=0
    #allocation2 [shape = 'u8[524288]{0}', space=vmem, size = 0x80000, scoped, tag = 'input window, operand 0, single buffered']
    #allocation3 [shape = 's32[1]{0}', space=sflag, size = 0x4, scoped, tag = 'scoped memory for tpu_custom_call.1']
    #allocation4 [shape = 's32[1]{0}', space=sflag, size = 0x4, scoped, tag = 'scoped memory for tpu_custom_call.1']
    #allocation5 [shape = 'u8[131072]{0}', space=vmem, size = 0x20000, scoped, tag = 'input window, operand 1, single buffered']
    #allocation6 [shape = 's32[1]{0}', space=sflag, size = 0x4, scoped, tag = 'scoped memory for tpu_custom_call.1']
    #allocation7 [shape = 'u8[32768]{0}', space=vmem, size = 0x8000, scoped, tag = 'input window, operand 3, single buffered']
    #allocation8 [shape = 'u8[32768]{0}', space=vmem, size = 0x8000, scoped, tag = 'input window, operand 5, single buffered']
    #allocation9 [shape = 's32[1]{0}', space=sflag, size = 0x4, scoped, tag = 'scoped memory for tpu_custom_call.1']
    #allocation10 [shape = 'u8[65536]{0}', space=vmem, size = 0x10000, scoped, tag = 'input window, operand 7, single buffered']
    #allocation11 [shape = 'u8[4096]{0}', space=vmem, size = 0x1000, scoped, tag = 'output window, operand 0, single buffered']
    %14 = vsyncpa [#allocation3], 0
    %15 = vsyncpa [#allocation6], 0
    %16 = vsyncpa [#allocation9], 0
    %17 = vsyncpa [#allocation4], 0
    // Predicated region
    $region2: #{tpu_custom_call.1} parent=1 // pred_check
      _
    $region3: #{tpu_custom_call.1} parent=1 // pred_check_branch
      %19 = sbr.rel (0) target = $region5
    $region4: #{tpu_custom_call.1} parent=1 // pred_region
      %s21 = ssub.s32 16384, 16384
      %22 = vsyncadd [#allocation3], %s21
      %s23 = sshll.u32 [#allocation2], 4
      %s24 = int_to_ptr.vmem [resolvable:$true] %s23
      %29 = dma.hbm_to_vmem [thread:$0]  %s0, 16384, %s24, [#allocation3], 256, 256, 16
    $region5: #{tpu_custom_call.1} parent=1 // pred_fallthru
      _
    // Predicated region
    $region6: #{tpu_custom_call.1} parent=1 // pred_check
      _
    $region7: #{tpu_custom_call.1} parent=1 // pred_check_branch
      %31 = sbr.rel (0) target = $region9
    $region8: #{tpu_custom_call.1} parent=1 // pred_region
      %s33 = ssub.s32 4096, 4096
      %34 = vsyncadd [#allocation6], %s33
      %s35 = sshll.u32 [#allocation5], 4
      %s36 = int_to_ptr.vmem [resolvable:$true] %s35
      %41 = dma.hbm_to_vmem [thread:$0]  %s1, 4096, %s36, [#allocation6], 64, 64, 4
    $region9: #{tpu_custom_call.1} parent=1 // pred_fallthru
      _
    // Predicated region
    $region10: #{tpu_custom_call.1} parent=1 // pred_check
      _
    $region11: #{tpu_custom_call.1} parent=1 // pred_check_branch
      %43 = sbr.rel (0) target = $region13
    $region12: #{tpu_custom_call.1} parent=1 // pred_region
      _
    $region13: #{tpu_custom_call.1} parent=1 // pred_fallthru
      _
    // Predicated region
    $region14: #{tpu_custom_call.1} parent=1 // pred_check
      _
    $region15: #{tpu_custom_call.1} parent=1 // pred_check_branch
      %45 = sbr.rel (0) target = $region17
    $region16: #{tpu_custom_call.1} parent=1 // pred_region
      %s47 = ssub.s32 1024, 1024
      %48 = vsyncadd [#allocation6], %s47
      %s49 = sshll.u32 [#allocation7], 4
      %s50 = int_to_ptr.vmem [resolvable:$true] %s49
      %55 = dma.hbm_to_vmem [thread:$0]  %s3, 1024, %s50, [#allocation6], 64, 64, 4
    $region17: #{tpu_custom_call.1} parent=1 // pred_fallthru
      _
    // Predicated region
    $region18: #{tpu_custom_call.1} parent=1 // pred_check
      _
    $region19: #{tpu_custom_call.1} parent=1 // pred_check_branch
      %57 = sbr.rel (0) target = $region21
    $region20: #{tpu_custom_call.1} parent=1 // pred_region
      _
    $region21: #{tpu_custom_call.1} parent=1 // pred_fallthru
      _
    // Predicated region
    $region22: #{tpu_custom_call.1} parent=1 // pred_check
      _
    $region23: #{tpu_custom_call.1} parent=1 // pred_check_branch
      %59 = sbr.rel (0) target = $region25
    $region24: #{tpu_custom_call.1} parent=1 // pred_region
      %s61 = ssub.s32 1024, 1024
      %62 = vsyncadd [#allocation9], %s61
      %s63 = sshll.u32 [#allocation8], 4
      %s64 = int_to_ptr.vmem [resolvable:$true] %s63
      %69 = dma.hbm_to_vmem [thread:$0]  %s5, 1024, %s64, [#allocation9], 64, 64, 4
    $region25: #{tpu_custom_call.1} parent=1 // pred_fallthru
      _
    // Predicated region
    $region26: #{tpu_custom_call.1} parent=1 // pred_check
      _
    $region27: #{tpu_custom_call.1} parent=1 // pred_check_branch
      %71 = sbr.rel (0) target = $region29
    $region28: #{tpu_custom_call.1} parent=1 // pred_region
      _
    $region29: #{tpu_custom_call.1} parent=1 // pred_fallthru
      _
    // Predicated region
    $region30: #{tpu_custom_call.1} parent=1 // pred_check
      _
    $region31: #{tpu_custom_call.1} parent=1 // pred_check_branch
      %73 = sbr.rel (0) target = $region33
    $region32: #{tpu_custom_call.1} parent=1 // pred_region
      %s75 = ssub.s32 2048, 2048
      %76 = vsyncadd [#allocation9], %s75
      %s77 = sshll.u32 [#allocation10], 4
      %s78 = int_to_ptr.vmem [resolvable:$true] %s77
      %83 = dma.hbm_to_vmem [thread:$0]  %s7, 2048, %s78, [#allocation9], 128, 128, 8
    $region33: #{tpu_custom_call.1} parent=1 // pred_fallthru
      _
    // Predicated region
    $region34: #{tpu_custom_call.1} parent=1 // pred_check
      _
    $region35: #{tpu_custom_call.1} parent=1 // pred_check_branch
      %85 = sbr.rel (0) target = $region37
    $region36: #{tpu_custom_call.1} parent=1 // pred_region
      _
    $region37: #{tpu_custom_call.1} parent=1 // pred_fallthru
      _
    // Predicated region
    $region38: #{tpu_custom_call.1} parent=1 // pred_check
      _
    $region39: #{tpu_custom_call.1} parent=1 // pred_check_branch
      %87 = sbr.rel (0) target = $region41
    $region40: #{tpu_custom_call.1} parent=1 // pred_region
      %88 = dma.done [#allocation3], 16384
    $region41: #{tpu_custom_call.1} parent=1 // pred_fallthru
      _
    // Predicated region
    $region42: #{tpu_custom_call.1} parent=1 // pred_check
      _
    $region43: #{tpu_custom_call.1} parent=1 // pred_check_branch
      %90 = sbr.rel (0) target = $region45
    $region44: #{tpu_custom_call.1} parent=1 // pred_region
      %91 = dma.done [#allocation6], 4096
    $region45: #{tpu_custom_call.1} parent=1 // pred_fallthru
      _
    // Predicated region
    $region46: #{tpu_custom_call.1} parent=1 // pred_check
      _
    $region47: #{tpu_custom_call.1} parent=1 // pred_check_branch
      %93 = sbr.rel (0) target = $region49
    $region48: #{tpu_custom_call.1} parent=1 // pred_region
      %94 = dma.done [#allocation6], 1024
    $region49: #{tpu_custom_call.1} parent=1 // pred_fallthru
      _
    // Predicated region
    $region50: #{tpu_custom_call.1} parent=1 // pred_check
      _
    $region51: #{tpu_custom_call.1} parent=1 // pred_check_branch
      %96 = sbr.rel (0) target = $region53
    $region52: #{tpu_custom_call.1} parent=1 // pred_region
      %97 = dma.done [#allocation9], 1024
    $region53: #{tpu_custom_call.1} parent=1 // pred_fallthru
      _
    // Predicated region
    $region54: #{tpu_custom_call.1} parent=1 // pred_check
      _
    $region55: #{tpu_custom_call.1} parent=1 // pred_check_branch
      %99 = sbr.rel (0) target = $region57
    $region56: #{tpu_custom_call.1} parent=1 // pred_region
      %100 = dma.done [#allocation9], 2048
    $region57: #{tpu_custom_call.1} parent=1 // pred_fallthru
      _
    %v102 = vld [vmem:[#allocation2] sm:$0xff]
    %v103 = vld [vmem:[#allocation2 + $0x8] sm:$0xff]
    %v104 = vld [vmem:[#allocation2 + $0x10] sm:$0xff]
    %v105 = vld [vmem:[#allocation2 + $0x18] sm:$0xff]
    %v106 = vld [vmem:[#allocation2 + $0x20] sm:$0xff]
    %v107 = vld [vmem:[#allocation2 + $0x28] sm:$0xff]
    %v108 = vld [vmem:[#allocation2 + $0x30] sm:$0xff]
    %v109 = vld [vmem:[#allocation2 + $0x38] sm:$0xff]
    %v110 = vld [vmem:[#allocation2 + $0x40] sm:$0xff]
    %v111 = vld [vmem:[#allocation2 + $0x48] sm:$0xff]
    %v112 = vld [vmem:[#allocation2 + $0x50] sm:$0xff]
    %v113 = vld [vmem:[#allocation2 + $0x58] sm:$0xff]
    %v114 = vld [vmem:[#allocation2 + $0x60] sm:$0xff]
    %v115 = vld [vmem:[#allocation2 + $0x68] sm:$0xff]
    %v116 = vld [vmem:[#allocation2 + $0x70] sm:$0xff]
    %v117 = vld [vmem:[#allocation2 + $0x78] sm:$0xff]
    %v118 = vld [vmem:[#allocation2 + $0x80] sm:$0xff]
    %v119 = vld [vmem:[#allocation2 + $0x88] sm:$0xff]
    %v120 = vld [vmem:[#allocation2 + $0x90] sm:$0xff]
    %v121 = vld [vmem:[#allocation2 + $0x98] sm:$0xff]
    %v122 = vld [vmem:[#allocation2 + $0xa0] sm:$0xff]
    %v123 = vld [vmem:[#allocation2 + $0xa8] sm:$0xff]
    %v124 = vld [vmem:[#allocation2 + $0xb0] sm:$0xff]
    %v125 = vld [vmem:[#allocation2 + $0xb8] sm:$0xff]
    %v126 = vld [vmem:[#allocation2 + $0xc0] sm:$0xff]
    %v127 = vld [vmem:[#allocation2 + $0xc8] sm:$0xff]
    %v128 = vld [vmem:[#allocation2 + $0xd0] sm:$0xff]
    %v129 = vld [vmem:[#allocation2 + $0xd8] sm:$0xff]
    %v130 = vld [vmem:[#allocation2 + $0xe0] sm:$0xff]
    %v131 = vld [vmem:[#allocation2 + $0xe8] sm:$0xff]
    %v132 = vld [vmem:[#allocation2 + $0xf0] sm:$0xff]
    %v133 = vld [vmem:[#allocation2 + $0xf8] sm:$0xff]
    %v134 = vld [vmem:[#allocation2 + $0x100] sm:$0xff]
    %v135 = vld [vmem:[#allocation2 + $0x108] sm:$0xff]
    %v136 = vld [vmem:[#allocation2 + $0x110] sm:$0xff]
    %v137 = vld [vmem:[#allocation2 + $0x118] sm:$0xff]
    %v138 = vld [vmem:[#allocation2 + $0x120] sm:$0xff]
    %v139 = vld [vmem:[#allocation2 + $0x128] sm:$0xff]
    %v140 = vld [vmem:[#allocation2 + $0x130] sm:$0xff]
    %v141 = vld [vmem:[#allocation2 + $0x138] sm:$0xff]
    %v142 = vld [vmem:[#allocation2 + $0x140] sm:$0xff]
    %v143 = vld [vmem:[#allocation2 + $0x148] sm:$0xff]
    %v144 = vld [vmem:[#allocation2 + $0x150] sm:$0xff]
    %v145 = vld [vmem:[#allocation2 + $0x158] sm:$0xff]
    %v146 = vld [vmem:[#allocation2 + $0x160] sm:$0xff]
    %v147 = vld [vmem:[#allocation2 + $0x168] sm:$0xff]
    %v148 = vld [vmem:[#allocation2 + $0x170] sm:$0xff]
    %v149 = vld [vmem:[#allocation2 + $0x178] sm:$0xff]
    %v150 = vld [vmem:[#allocation2 + $0x180] sm:$0xff]
    %v151 = vld [vmem:[#allocation2 + $0x188] sm:$0xff]
    %v152 = vld [vmem:[#allocation2 + $0x190] sm:$0xff]
    %v153 = vld [vmem:[#allocation2 + $0x198] sm:$0xff]
    %v154 = vld [vmem:[#allocation2 + $0x1a0] sm:$0xff]
    %v155 = vld [vmem:[#allocation2 + $0x1a8] sm:$0xff]
    %v156 = vld [vmem:[#allocation2 + $0x1b0] sm:$0xff]
    %v157 = vld [vmem:[#allocation2 + $0x1b8] sm:$0xff]
    %v158 = vld [vmem:[#allocation2 + $0x1c0] sm:$0xff]
    %v159 = vld [vmem:[#allocation2 + $0x1c8] sm:$0xff]
    %v160 = vld [vmem:[#allocation2 + $0x1d0] sm:$0xff]
    %v161 = vld [vmem:[#allocation2 + $0x1d8] sm:$0xff]
    %v162 = vld [vmem:[#allocation2 + $0x1e0] sm:$0xff]
    %v163 = vld [vmem:[#allocation2 + $0x1e8] sm:$0xff]
    %v164 = vld [vmem:[#allocation2 + $0x1f0] sm:$0xff]
    %v165 = vld [vmem:[#allocation2 + $0x1f8] sm:$0xff]
    %v166 = vld [vmem:[#allocation2 + $0x200] sm:$0xff]
    %v167 = vld [vmem:[#allocation2 + $0x208] sm:$0xff]
    %v168 = vld [vmem:[#allocation2 + $0x210] sm:$0xff]
    %v169 = vld [vmem:[#allocation2 + $0x218] sm:$0xff]
    %v170 = vld [vmem:[#allocation2 + $0x220] sm:$0xff]
    %v171 = vld [vmem:[#allocation2 + $0x228] sm:$0xff]
    %v172 = vld [vmem:[#allocation2 + $0x230] sm:$0xff]
    %v173 = vld [vmem:[#allocation2 + $0x238] sm:$0xff]
    %v174 = vld [vmem:[#allocation2 + $0x240] sm:$0xff]
    %v175 = vld [vmem:[#allocation2 + $0x248] sm:$0xff]
    %v176 = vld [vmem:[#allocation2 + $0x250] sm:$0xff]
    %v177 = vld [vmem:[#allocation2 + $0x258] sm:$0xff]
    %v178 = vld [vmem:[#allocation2 + $0x260] sm:$0xff]
    %v179 = vld [vmem:[#allocation2 + $0x268] sm:$0xff]
    %v180 = vld [vmem:[#allocation2 + $0x270] sm:$0xff]
    %v181 = vld [vmem:[#allocation2 + $0x278] sm:$0xff]
    %v182 = vld [vmem:[#allocation2 + $0x280] sm:$0xff]
    %v183 = vld [vmem:[#allocation2 + $0x288] sm:$0xff]
    %v184 = vld [vmem:[#allocation2 + $0x290] sm:$0xff]
    %v185 = vld [vmem:[#allocation2 + $0x298] sm:$0xff]
    %v186 = vld [vmem:[#allocation2 + $0x2a0] sm:$0xff]
    %v187 = vld [vmem:[#allocation2 + $0x2a8] sm:$0xff]
    %v188 = vld [vmem:[#allocation2 + $0x2b0] sm:$0xff]
    %v189 = vld [vmem:[#allocation2 + $0x2b8] sm:$0xff]
    %v190 = vld [vmem:[#allocation2 + $0x2c0] sm:$0xff]
    %v191 = vld [vmem:[#allocation2 + $0x2c8] sm:$0xff]
    %v192 = vld [vmem:[#allocation2 + $0x2d0] sm:$0xff]
    %v193 = vld [vmem:[#allocation2 + $0x2d8] sm:$0xff]
    %v194 = vld [vmem:[#allocation2 + $0x2e0] sm:$0xff]
    %v195 = vld [vmem:[#allocation2 + $0x2e8] sm:$0xff]
    %v196 = vld [vmem:[#allocation2 + $0x2f0] sm:$0xff]
    %v197 = vld [vmem:[#allocation2 + $0x2f8] sm:$0xff]
    %v198 = vld [vmem:[#allocation2 + $0x300] sm:$0xff]
    %v199 = vld [vmem:[#allocation2 + $0x308] sm:$0xff]
    %v200 = vld [vmem:[#allocation2 + $0x310] sm:$0xff]
    %v201 = vld [vmem:[#allocation2 + $0x318] sm:$0xff]
    %v202 = vld [vmem:[#allocation2 + $0x320] sm:$0xff]
    %v203 = vld [vmem:[#allocation2 + $0x328] sm:$0xff]
    %v204 = vld [vmem:[#allocation2 + $0x330] sm:$0xff]
    %v205 = vld [vmem:[#allocation2 + $0x338] sm:$0xff]
    %v206 = vld [vmem:[#allocation2 + $0x340] sm:$0xff]
    %v207 = vld [vmem:[#allocation2 + $0x348] sm:$0xff]
    %v208 = vld [vmem:[#allocation2 + $0x350] sm:$0xff]
    %v209 = vld [vmem:[#allocation2 + $0x358] sm:$0xff]
    %v210 = vld [vmem:[#allocation2 + $0x360] sm:$0xff]
    %v211 = vld [vmem:[#allocation2 + $0x368] sm:$0xff]
    %v212 = vld [vmem:[#allocation2 + $0x370] sm:$0xff]
    %v213 = vld [vmem:[#allocation2 + $0x378] sm:$0xff]
    %v214 = vld [vmem:[#allocation2 + $0x380] sm:$0xff]
    %v215 = vld [vmem:[#allocation2 + $0x388] sm:$0xff]
    %v216 = vld [vmem:[#allocation2 + $0x390] sm:$0xff]
    %v217 = vld [vmem:[#allocation2 + $0x398] sm:$0xff]
    %v218 = vld [vmem:[#allocation2 + $0x3a0] sm:$0xff]
    %v219 = vld [vmem:[#allocation2 + $0x3a8] sm:$0xff]
    %v220 = vld [vmem:[#allocation2 + $0x3b0] sm:$0xff]
    %v221 = vld [vmem:[#allocation2 + $0x3b8] sm:$0xff]
    %v222 = vld [vmem:[#allocation2 + $0x3c0] sm:$0xff]
    %v223 = vld [vmem:[#allocation2 + $0x3c8] sm:$0xff]
    %v224 = vld [vmem:[#allocation2 + $0x3d0] sm:$0xff]
    %v225 = vld [vmem:[#allocation2 + $0x3d8] sm:$0xff]
    %v226 = vld [vmem:[#allocation2 + $0x3e0] sm:$0xff]
    %v227 = vld [vmem:[#allocation2 + $0x3e8] sm:$0xff]
    %v228 = vld [vmem:[#allocation2 + $0x3f0] sm:$0xff]
    %v229 = vld [vmem:[#allocation2 + $0x3f8] sm:$0xff]
    %v230 = vld [vmem:[#allocation5] sm:$0xf]
    %v231 = vld [vmem:[#allocation5 + $0x4] sm:$0xf]
    %v232 = vld [vmem:[#allocation5 + $0x8] sm:$0xf]
    %v233 = vld [vmem:[#allocation5 + $0xc] sm:$0xf]
    %v234 = vld [vmem:[#allocation5 + $0x10] sm:$0xf]
    %v235 = vld [vmem:[#allocation5 + $0x14] sm:$0xf]
    %v236 = vld [vmem:[#allocation5 + $0x18] sm:$0xf]
    %v237 = vld [vmem:[#allocation5 + $0x1c] sm:$0xf]
    %v238 = vld [vmem:[#allocation5 + $0x20] sm:$0xf]
    %v239 = vld [vmem:[#allocation5 + $0x24] sm:$0xf]
    %v240 = vld [vmem:[#allocation5 + $0x28] sm:$0xf]
    %v241 = vld [vmem:[#allocation5 + $0x2c] sm:$0xf]
    %v242 = vld [vmem:[#allocation5 + $0x30] sm:$0xf]
    %v243 = vld [vmem:[#allocation5 + $0x34] sm:$0xf]
    %v244 = vld [vmem:[#allocation5 + $0x38] sm:$0xf]
    %v245 = vld [vmem:[#allocation5 + $0x3c] sm:$0xf]
    %v246 = vld [vmem:[#allocation5 + $0x40] sm:$0xf]
    %v247 = vld [vmem:[#allocation5 + $0x44] sm:$0xf]
    %v248 = vld [vmem:[#allocation5 + $0x48] sm:$0xf]
    %v249 = vld [vmem:[#allocation5 + $0x4c] sm:$0xf]
    %v250 = vld [vmem:[#allocation5 + $0x50] sm:$0xf]
    %v251 = vld [vmem:[#allocation5 + $0x54] sm:$0xf]
    %v252 = vld [vmem:[#allocation5 + $0x58] sm:$0xf]
    %v253 = vld [vmem:[#allocation5 + $0x5c] sm:$0xf]
    %v254 = vld [vmem:[#allocation5 + $0x60] sm:$0xf]
    %v255 = vld [vmem:[#allocation5 + $0x64] sm:$0xf]
    %v256 = vld [vmem:[#allocation5 + $0x68] sm:$0xf]
    %v257 = vld [vmem:[#allocation5 + $0x6c] sm:$0xf]
    %v258 = vld [vmem:[#allocation5 + $0x70] sm:$0xf]
    %v259 = vld [vmem:[#allocation5 + $0x74] sm:$0xf]
    %v260 = vld [vmem:[#allocation5 + $0x78] sm:$0xf]
    %v261 = vld [vmem:[#allocation5 + $0x7c] sm:$0xf]
    %v262 = vld [vmem:[#allocation5 + $0x80] sm:$0xf]
    %v263 = vld [vmem:[#allocation5 + $0x84] sm:$0xf]
    %v264 = vld [vmem:[#allocation5 + $0x88] sm:$0xf]
    %v265 = vld [vmem:[#allocation5 + $0x8c] sm:$0xf]
    %v266 = vld [vmem:[#allocation5 + $0x90] sm:$0xf]
    %v267 = vld [vmem:[#allocation5 + $0x94] sm:$0xf]
    %v268 = vld [vmem:[#allocation5 + $0x98] sm:$0xf]
    %v269 = vld [vmem:[#allocation5 + $0x9c] sm:$0xf]
    %v270 = vld [vmem:[#allocation5 + $0xa0] sm:$0xf]
    %v271 = vld [vmem:[#allocation5 + $0xa4] sm:$0xf]
    %v272 = vld [vmem:[#allocation5 + $0xa8] sm:$0xf]
    %v273 = vld [vmem:[#allocation5 + $0xac] sm:$0xf]
    %v274 = vld [vmem:[#allocation5 + $0xb0] sm:$0xf]
    %v275 = vld [vmem:[#allocation5 + $0xb4] sm:$0xf]
    %v276 = vld [vmem:[#allocation5 + $0xb8] sm:$0xf]
    %v277 = vld [vmem:[#allocation5 + $0xbc] sm:$0xf]
    %v278 = vld [vmem:[#allocation5 + $0xc0] sm:$0xf]
    %v279 = vld [vmem:[#allocation5 + $0xc4] sm:$0xf]
    %v280 = vld [vmem:[#allocation5 + $0xc8] sm:$0xf]
    %v281 = vld [vmem:[#allocation5 + $0xcc] sm:$0xf]
    %v282 = vld [vmem:[#allocation5 + $0xd0] sm:$0xf]
    %v283 = vld [vmem:[#allocation5 + $0xd4] sm:$0xf]
    %v284 = vld [vmem:[#allocation5 + $0xd8] sm:$0xf]
    %v285 = vld [vmem:[#allocation5 + $0xdc] sm:$0xf]
    %v286 = vld [vmem:[#allocation5 + $0xe0] sm:$0xf]
    %v287 = vld [vmem:[#allocation5 + $0xe4] sm:$0xf]
    %v288 = vld [vmem:[#allocation5 + $0xe8] sm:$0xf]
    %v289 = vld [vmem:[#allocation5 + $0xec] sm:$0xf]
    %v290 = vld [vmem:[#allocation5 + $0xf0] sm:$0xf]
    %v291 = vld [vmem:[#allocation5 + $0xf4] sm:$0xf]
    %v292 = vld [vmem:[#allocation5 + $0xf8] sm:$0xf]
    %v293 = vld [vmem:[#allocation5 + $0xfc] sm:$0xf]
    %v294 = vld [vmem:[#allocation7] sm:$0xf]
    %v295 = vld [vmem:[#allocation7 + $0x4] sm:$0xf]
    %v296 = vld [vmem:[#allocation7 + $0x8] sm:$0xf]
    %v297 = vld [vmem:[#allocation7 + $0xc] sm:$0xf]
    %v298 = vld [vmem:[#allocation7 + $0x10] sm:$0xf]
    %v299 = vld [vmem:[#allocation7 + $0x14] sm:$0xf]
    %v300 = vld [vmem:[#allocation7 + $0x18] sm:$0xf]
    %v301 = vld [vmem:[#allocation7 + $0x1c] sm:$0xf]
    %v302 = vld [vmem:[#allocation7 + $0x20] sm:$0xf]
    %v303 = vld [vmem:[#allocation7 + $0x24] sm:$0xf]
    %v304 = vld [vmem:[#allocation7 + $0x28] sm:$0xf]
    %v305 = vld [vmem:[#allocation7 + $0x2c] sm:$0xf]
    %v306 = vld [vmem:[#allocation7 + $0x30] sm:$0xf]
    %v307 = vld [vmem:[#allocation7 + $0x34] sm:$0xf]
    %v308 = vld [vmem:[#allocation7 + $0x38] sm:$0xf]
    %v309 = vld [vmem:[#allocation7 + $0x3c] sm:$0xf]
    %v374 = vunpack.c.l.b16 %v230
    %v375 = vunpack.c.l.b16 %v231
    %v376 = vunpack.c.l.b16 %v232
    %v377 = vunpack.c.l.b16 %v233
    %v378 = vunpack.c.l.b16 %v234
    %v379 = vunpack.c.l.b16 %v235
    %v380 = vunpack.c.l.b16 %v236
    %v381 = vunpack.c.l.b16 %v237
    %v382 = vunpack.c.l.b16 %v238
    %v383 = vunpack.c.l.b16 %v239
    %v384 = vunpack.c.l.b16 %v240
    %v385 = vunpack.c.l.b16 %v241
    %v386 = vunpack.c.l.b16 %v242
    %v387 = vunpack.c.l.b16 %v243
    %v388 = vunpack.c.l.b16 %v244
    %v389 = vunpack.c.l.b16 %v245
    %v390 = vunpack.c.l.b16 %v246
    %v391 = vunpack.c.l.b16 %v247
    %v392 = vunpack.c.l.b16 %v248
    %v393 = vunpack.c.l.b16 %v249
    %v394 = vunpack.c.l.b16 %v250
    %v395 = vunpack.c.l.b16 %v251
    %v396 = vunpack.c.l.b16 %v252
    %v397 = vunpack.c.l.b16 %v253
    %v398 = vunpack.c.l.b16 %v254
    %v399 = vunpack.c.l.b16 %v255
    %v400 = vunpack.c.l.b16 %v256
    %v401 = vunpack.c.l.b16 %v257
    %v402 = vunpack.c.l.b16 %v258
    %v403 = vunpack.c.l.b16 %v259
    %v404 = vunpack.c.l.b16 %v260
    %v405 = vunpack.c.l.b16 %v261
    %v406 = vunpack.c.l.b16 %v262
    %v407 = vunpack.c.l.b16 %v263
    %v408 = vunpack.c.l.b16 %v264
    %v409 = vunpack.c.l.b16 %v265
    %v410 = vunpack.c.l.b16 %v266
    %v411 = vunpack.c.l.b16 %v267
    %v412 = vunpack.c.l.b16 %v268
    %v413 = vunpack.c.l.b16 %v269
    %v414 = vunpack.c.l.b16 %v270
    %v415 = vunpack.c.l.b16 %v271
    %v416 = vunpack.c.l.b16 %v272
    %v417 = vunpack.c.l.b16 %v273
    %v418 = vunpack.c.l.b16 %v274
    %v419 = vunpack.c.l.b16 %v275
    %v420 = vunpack.c.l.b16 %v276
    %v421 = vunpack.c.l.b16 %v277
    %v422 = vunpack.c.l.b16 %v278
    %v423 = vunpack.c.l.b16 %v279
    %v424 = vunpack.c.l.b16 %v280
    %v425 = vunpack.c.l.b16 %v281
    %v426 = vunpack.c.l.b16 %v282
    %v427 = vunpack.c.l.b16 %v283
    %v428 = vunpack.c.l.b16 %v284
    %v429 = vunpack.c.l.b16 %v285
    %v430 = vunpack.c.l.b16 %v286
    %v431 = vunpack.c.l.b16 %v287
    %v432 = vunpack.c.l.b16 %v288
    %v433 = vunpack.c.l.b16 %v289
    %v434 = vunpack.c.l.b16 %v290
    %v435 = vunpack.c.l.b16 %v291
    %v436 = vunpack.c.l.b16 %v292
    %v437 = vunpack.c.l.b16 %v293
    %v438 = vpack.c.b16 %v375, %v374
    %v439 = vpack.c.b16 %v377, %v376
    %v440 = vpack.c.b16 %v379, %v378
    %v441 = vpack.c.b16 %v381, %v380
    %v442 = vpack.c.b16 %v383, %v382
    %v443 = vpack.c.b16 %v385, %v384
    %v444 = vpack.c.b16 %v387, %v386
    %v445 = vpack.c.b16 %v389, %v388
    %v446 = vpack.c.b16 %v391, %v390
    %v447 = vpack.c.b16 %v393, %v392
    %v448 = vpack.c.b16 %v395, %v394
    %v449 = vpack.c.b16 %v397, %v396
    %v450 = vpack.c.b16 %v399, %v398
    %v451 = vpack.c.b16 %v401, %v400
    %v452 = vpack.c.b16 %v403, %v402
    %v453 = vpack.c.b16 %v405, %v404
    %v454 = vpack.c.b16 %v407, %v406
    %v455 = vpack.c.b16 %v409, %v408
    %v456 = vpack.c.b16 %v411, %v410
    %v457 = vpack.c.b16 %v413, %v412
    %v458 = vpack.c.b16 %v415, %v414
    %v459 = vpack.c.b16 %v417, %v416
    %v460 = vpack.c.b16 %v419, %v418
    %v461 = vpack.c.b16 %v421, %v420
    %v462 = vpack.c.b16 %v423, %v422
    %v463 = vpack.c.b16 %v425, %v424
    %v464 = vpack.c.b16 %v427, %v426
    %v465 = vpack.c.b16 %v429, %v428
    %v466 = vpack.c.b16 %v431, %v430
    %v467 = vpack.c.b16 %v433, %v432
    %v468 = vpack.c.b16 %v435, %v434
    %v469 = vpack.c.b16 %v437, %v436
    %v518 = vunpack.c.l.b16 %v294
    %v519 = vunpack.c.l.b16 %v295
    %v520 = vunpack.c.l.b16 %v296
    %v521 = vunpack.c.l.b16 %v297
    %v522 = vunpack.c.l.b16 %v298
    %v523 = vunpack.c.l.b16 %v299
    %v524 = vunpack.c.l.b16 %v300
    %v525 = vunpack.c.l.b16 %v301
    %v526 = vunpack.c.l.b16 %v302
    %v527 = vunpack.c.l.b16 %v303
    %v528 = vunpack.c.l.b16 %v304
    %v529 = vunpack.c.l.b16 %v305
    %v530 = vunpack.c.l.b16 %v306
    %v531 = vunpack.c.l.b16 %v307
    %v532 = vunpack.c.l.b16 %v308
    %v533 = vunpack.c.l.b16 %v309
    %v534 = vpack.c.b16 %v519, %v518
    %v535 = vpack.c.b16 %v521, %v520
    %v536 = vpack.c.b16 %v523, %v522
    %v537 = vpack.c.b16 %v525, %v524
    %v538 = vpack.c.b16 %v527, %v526
    %v539 = vpack.c.b16 %v529, %v528
    %v540 = vpack.c.b16 %v531, %v530
    %v541 = vpack.c.b16 %v533, %v532
    %550 = vmatprep.subr.bf16.mxu0 0
    %551 = vmatpush1.bf16.msra.mxu0 %v534
    %552 = vmatprep.subr.bf16.mxu0 0
    %553 = vmatpush1.bf16.msra.mxu0 %v535
    %554 = vmatprep.subr.bf16.mxu0 0
    %555 = vmatpush1.bf16.msra.mxu0 %v536
    %556 = vmatprep.subr.bf16.mxu0 0
    %557 = vmatpush1.bf16.msra.mxu0 %v537
    %558 = vmatprep.subr.bf16.mxu0 0
    %559 = vmatpush1.bf16.msra.mxu0 %v538
    %560 = vmatprep.subr.bf16.mxu0 0
    %561 = vmatpush1.bf16.msra.mxu0 %v539
    %562 = vmatprep.subr.bf16.mxu0 0
    %563 = vmatpush1.bf16.msra.mxu0 %v540
    %564 = vmatprep.subr.bf16.mxu0 0
    %565 = vmatpush1.bf16.msra.mxu0 %v541
    %566 = vmatprep.subr.bf16.mxu0 0
    %567 = vmatpush1.bf16.msra.mxu0 0
    %568 = vmatprep.subr.bf16.mxu0 0
    %569 = vmatpush1.bf16.msra.mxu0 0
    %570 = vmatprep.subr.bf16.mxu0 0
    %571 = vmatpush1.bf16.msra.mxu0 0
    %572 = vmatprep.subr.bf16.mxu0 0
    %573 = vmatpush1.bf16.msra.mxu0 0
    %574 = vmatprep.subr.bf16.mxu0 0
    %575 = vmatpush1.bf16.msra.mxu0 0
    %576 = vmatprep.subr.bf16.mxu0 0
    %577 = vmatpush1.bf16.msra.mxu0 0
    %578 = vmatprep.subr.bf16.mxu0 0
    %579 = vmatpush1.bf16.msra.mxu0 0
    %580 = vmatprep.subr.bf16.mxu0 0
    %581 = vmatpush1.bf16.msra.mxu0 0
    %582 = vmatprep.mubr.bf16.mxu0 0
    %583 = vmatmul.mubr.bf16.gmra.mrb[0].mxu0 %v438
    %v584 = vpop.f32.mrb[0].mxu0
    %v585 = vadd.f32 0.0, %v584
    %v586 = vpop.f32.mrb[0].mxu0
    %v587 = vpop.f32.mrb[0].mxu0
    %v588 = vadd.f32 0.0, %v587
    %v589 = vpop.f32.mrb[0].mxu0
    %590 = vmatprep.mubr.bf16.mxu0 0
    %591 = vmatmul.mubr.bf16.gmra.mrb[0].mxu0 %v439
    %v592 = vpop.f32.mrb[0].mxu0
    %v593 = vadd.f32 0.0, %v592
    %v594 = vpop.f32.mrb[0].mxu0
    %v595 = vpop.f32.mrb[0].mxu0
    %v596 = vadd.f32 0.0, %v595
    %v597 = vpop.f32.mrb[0].mxu0
    %598 = vmatprep.mubr.bf16.mxu0 0
    %599 = vmatmul.mubr.bf16.gmra.mrb[0].mxu0 %v440
    %v600 = vpop.f32.mrb[0].mxu0
    %v601 = vadd.f32 0.0, %v600
    %v602 = vpop.f32.mrb[0].mxu0
    %v603 = vpop.f32.mrb[0].mxu0
    %v604 = vadd.f32 0.0, %v603
    %v605 = vpop.f32.mrb[0].mxu0
    %606 = vmatprep.mubr.bf16.mxu0 0
    %607 = vmatmul.mubr.bf16.gmra.mrb[0].mxu0 %v441
    %v608 = vpop.f32.mrb[0].mxu0
    %v609 = vadd.f32 0.0, %v608
    %v610 = vpop.f32.mrb[0].mxu0
    %v611 = vpop.f32.mrb[0].mxu0
    %v612 = vadd.f32 0.0, %v611
    %v613 = vpop.f32.mrb[0].mxu0
    %614 = vmatprep.mubr.bf16.mxu0 0
    %615 = vmatmul.mubr.bf16.gmra.mrb[0].mxu0 %v442
    %v616 = vpop.f32.mrb[0].mxu0
    %v617 = vadd.f32 0.0, %v616
    %v618 = vpop.f32.mrb[0].mxu0
    %v619 = vpop.f32.mrb[0].mxu0
    %v620 = vadd.f32 0.0, %v619
    %v621 = vpop.f32.mrb[0].mxu0
    %622 = vmatprep.mubr.bf16.mxu0 0
    %623 = vmatmul.mubr.bf16.gmra.mrb[0].mxu0 %v443
    %v624 = vpop.f32.mrb[0].mxu0
    %v625 = vadd.f32 0.0, %v624
    %v626 = vpop.f32.mrb[0].mxu0
    %v627 = vpop.f32.mrb[0].mxu0
    %v628 = vadd.f32 0.0, %v627
    %v629 = vpop.f32.mrb[0].mxu0
    %630 = vmatprep.mubr.bf16.mxu0 0
    %631 = vmatmul.mubr.bf16.gmra.mrb[0].mxu0 %v444
    %v632 = vpop.f32.mrb[0].mxu0
    %v633 = vadd.f32 0.0, %v632
    %v634 = vpop.f32.mrb[0].mxu0
    %v635 = vpop.f32.mrb[0].mxu0
    %v636 = vadd.f32 0.0, %v635
    %v637 = vpop.f32.mrb[0].mxu0
    %638 = vmatprep.mubr.bf16.mxu0 0
    %639 = vmatmul.mubr.bf16.gmra.mrb[0].mxu0 %v445
    %v640 = vpop.f32.mrb[0].mxu0
    %v641 = vadd.f32 0.0, %v640
    %v642 = vpop.f32.mrb[0].mxu0
    %v643 = vpop.f32.mrb[0].mxu0
    %v644 = vadd.f32 0.0, %v643
    %v645 = vpop.f32.mrb[0].mxu0
    %646 = vmatprep.mubr.bf16.mxu0 0
    %647 = vmatmul.mubr.bf16.gmra.mrb[0].mxu0 %v446
    %v648 = vpop.f32.mrb[0].mxu0
    %v649 = vadd.f32 0.0, %v648
    %v650 = vpop.f32.mrb[0].mxu0
    %v651 = vpop.f32.mrb[0].mxu0
    %v652 = vadd.f32 0.0, %v651
    %v653 = vpop.f32.mrb[0].mxu0
    %654 = vmatprep.mubr.bf16.mxu0 0
    %655 = vmatmul.mubr.bf16.gmra.mrb[0].mxu0 %v447
    %v656 = vpop.f32.mrb[0].mxu0
    %v657 = vadd.f32 0.0, %v656
    %v658 = vpop.f32.mrb[0].mxu0
    %v659 = vpop.f32.mrb[0].mxu0
    %v660 = vadd.f32 0.0, %v659
    %v661 = vpop.f32.mrb[0].mxu0
    %662 = vmatprep.mubr.bf16.mxu0 0
    %663 = vmatmul.mubr.bf16.gmra.mrb[0].mxu0 %v448
    %v664 = vpop.f32.mrb[0].mxu0
    %v665 = vadd.f32 0.0, %v664
    %v666 = vpop.f32.mrb[0].mxu0
    %v667 = vpop.f32.mrb[0].mxu0
    %v668 = vadd.f32 0.0, %v667
    %v669 = vpop.f32.mrb[0].mxu0
    %670 = vmatprep.mubr.bf16.mxu0 0
    %671 = vmatmul.mubr.bf16.gmra.mrb[0].mxu0 %v449
    %v672 = vpop.f32.mrb[0].mxu0
    %v673 = vadd.f32 0.0, %v672
    %v674 = vpop.f32.mrb[0].mxu0
    %v675 = vpop.f32.mrb[0].mxu0
    %v676 = vadd.f32 0.0, %v675
    %v677 = vpop.f32.mrb[0].mxu0
    %678 = vmatprep.mubr.bf16.mxu0 0
    %679 = vmatmul.mubr.bf16.gmra.mrb[0].mxu0 %v450
    %v680 = vpop.f32.mrb[0].mxu0
    %v681 = vadd.f32 0.0, %v680
    %v682 = vpop.f32.mrb[0].mxu0
    %v683 = vpop.f32.mrb[0].mxu0
    %v684 = vadd.f32 0.0, %v683
    %v685 = vpop.f32.mrb[0].mxu0
    %686 = vmatprep.mubr.bf16.mxu0 0
    %687 = vmatmul.mubr.bf16.gmra.mrb[0].mxu0 %v451
    %v688 = vpop.f32.mrb[0].mxu0
    %v689 = vadd.f32 0.0, %v688
    %v690 = vpop.f32.mrb[0].mxu0
    %v691 = vpop.f32.mrb[0].mxu0
    %v692 = vadd.f32 0.0, %v691
    %v693 = vpop.f32.mrb[0].mxu0
    %694 = vmatprep.mubr.bf16.mxu0 0
    %695 = vmatmul.mubr.bf16.gmra.mrb[0].mxu0 %v452
    %v696 = vpop.f32.mrb[0].mxu0
    %v697 = vadd.f32 0.0, %v696
    %v698 = vpop.f32.mrb[0].mxu0
    %v699 = vpop.f32.mrb[0].mxu0
    %v700 = vadd.f32 0.0, %v699
    %v701 = vpop.f32.mrb[0].mxu0
    %702 = vmatprep.mubr.bf16.mxu0 0
    %703 = vmatmul.mubr.bf16.gmra.mrb[0].mxu0 %v453
    %v704 = vpop.f32.mrb[0].mxu0
    %v705 = vadd.f32 0.0, %v704
    %v706 = vpop.f32.mrb[0].mxu0
    %v707 = vpop.f32.mrb[0].mxu0
    %v708 = vadd.f32 0.0, %v707
    %v709 = vpop.f32.mrb[0].mxu0
    %710 = vmatprep.mubr.bf16.mxu0 0
    %711 = vmatmul.mubr.bf16.gmra.mrb[0].mxu0 %v454
    %v712 = vpop.f32.mrb[0].mxu0
    %v713 = vadd.f32 0.0, %v712
    %v714 = vpop.f32.mrb[0].mxu0
    %v715 = vpop.f32.mrb[0].mxu0
    %v716 = vadd.f32 0.0, %v715
    %v717 = vpop.f32.mrb[0].mxu0
    %718 = vmatprep.mubr.bf16.mxu0 0
    %719 = vmatmul.mubr.bf16.gmra.mrb[0].mxu0 %v455
    %v720 = vpop.f32.mrb[0].mxu0
    %v721 = vadd.f32 0.0, %v720
    %v722 = vpop.f32.mrb[0].mxu0
    %v723 = vpop.f32.mrb[0].mxu0
    %v724 = vadd.f32 0.0, %v723
    %v725 = vpop.f32.mrb[0].mxu0
    %726 = vmatprep.mubr.bf16.mxu0 0
    %727 = vmatmul.mubr.bf16.gmra.mrb[0].mxu0 %v456
    %v728 = vpop.f32.mrb[0].mxu0
    %v729 = vadd.f32 0.0, %v728
    %v730 = vpop.f32.mrb[0].mxu0
    %v731 = vpop.f32.mrb[0].mxu0
    %v732 = vadd.f32 0.0, %v731
    %v733 = vpop.f32.mrb[0].mxu0
    %734 = vmatprep.mubr.bf16.mxu0 0
    %735 = vmatmul.mubr.bf16.gmra.mrb[0].mxu0 %v457
    %v736 = vpop.f32.mrb[0].mxu0
    %v737 = vadd.f32 0.0, %v736
    %v738 = vpop.f32.mrb[0].mxu0
    %v739 = vpop.f32.mrb[0].mxu0
    %v740 = vadd.f32 0.0, %v739
    %v741 = vpop.f32.mrb[0].mxu0
    %742 = vmatprep.mubr.bf16.mxu0 0
    %743 = vmatmul.mubr.bf16.gmra.mrb[0].mxu0 %v458
    %v744 = vpop.f32.mrb[0].mxu0
    %v745 = vadd.f32 0.0, %v744
    %v746 = vpop.f32.mrb[0].mxu0
    %v747 = vpop.f32.mrb[0].mxu0
    %v748 = vadd.f32 0.0, %v747
    %v749 = vpop.f32.mrb[0].mxu0
    %750 = vmatprep.mubr.bf16.mxu0 0
    %751 = vmatmul.mubr.bf16.gmra.mrb[0].mxu0 %v459
    %v752 = vpop.f32.mrb[0].mxu0
    %v753 = vadd.f32 0.0, %v752
    %v754 = vpop.f32.mrb[0].mxu0
    %v755 = vpop.f32.mrb[0].mxu0
    %v756 = vadd.f32 0.0, %v755
    %v757 = vpop.f32.mrb[0].mxu0
    %758 = vmatprep.mubr.bf16.mxu0 0
    %759 = vmatmul.mubr.bf16.gmra.mrb[0].mxu0 %v460
    %v760 = vpop.f32.mrb[0].mxu0
    %v761 = vadd.f32 0.0, %v760
    %v762 = vpop.f32.mrb[0].mxu0
    %v763 = vpop.f32.mrb[0].mxu0
    %v764 = vadd.f32 0.0, %v763
    %v765 = vpop.f32.mrb[0].mxu0
    %766 = vmatprep.mubr.bf16.mxu0 0
    %767 = vmatmul.mubr.bf16.gmra.mrb[0].mxu0 %v461
    %v768 = vpop.f32.mrb[0].mxu0
    %v769 = vadd.f32 0.0, %v768
    %v770 = vpop.f32.mrb[0].mxu0
    %v771 = vpop.f32.mrb[0].mxu0
    %v772 = vadd.f32 0.0, %v771
    %v773 = vpop.f32.mrb[0].mxu0
    %774 = vmatprep.mubr.bf16.mxu0 0
    %775 = vmatmul.mubr.bf16.gmra.mrb[0].mxu0 %v462
    %v776 = vpop.f32.mrb[0].mxu0
    %v777 = vadd.f32 0.0, %v776
    %v778 = vpop.f32.mrb[0].mxu0
    %v779 = vpop.f32.mrb[0].mxu0
    %v780 = vadd.f32 0.0, %v779
    %v781 = vpop.f32.mrb[0].mxu0
    %782 = vmatprep.mubr.bf16.mxu0 0
    %783 = vmatmul.mubr.bf16.gmra.mrb[0].mxu0 %v463
    %v784 = vpop.f32.mrb[0].mxu0
    %v785 = vadd.f32 0.0, %v784
    %v786 = vpop.f32.mrb[0].mxu0
    %v787 = vpop.f32.mrb[0].mxu0
    %v788 = vadd.f32 0.0, %v787
    %v789 = vpop.f32.mrb[0].mxu0
    %790 = vmatprep.mubr.bf16.mxu0 0
    %791 = vmatmul.mubr.bf16.gmra.mrb[0].mxu0 %v464
    %v792 = vpop.f32.mrb[0].mxu0
    %v793 = vadd.f32 0.0, %v792
    %v794 = vpop.f32.mrb[0].mxu0
    %v795 = vpop.f32.mrb[0].mxu0
    %v796 = vadd.f32 0.0, %v795
    %v797 = vpop.f32.mrb[0].mxu0
    %798 = vmatprep.mubr.bf16.mxu0 0
    %799 = vmatmul.mubr.bf16.gmra.mrb[0].mxu0 %v465
    %v800 = vpop.f32.mrb[0].mxu0
    %v801 = vadd.f32 0.0, %v800
    %v802 = vpop.f32.mrb[0].mxu0
    %v803 = vpop.f32.mrb[0].mxu0
    %v804 = vadd.f32 0.0, %v803
    %v805 = vpop.f32.mrb[0].mxu0
    %806 = vmatprep.mubr.bf16.mxu0 0
    %807 = vmatmul.mubr.bf16.gmra.mrb[0].mxu0 %v466
    %v808 = vpop.f32.mrb[0].mxu0
    %v809 = vadd.f32 0.0, %v808
    %v810 = vpop.f32.mrb[0].mxu0
    %v811 = vpop.f32.mrb[0].mxu0
    %v812 = vadd.f32 0.0, %v811
    %v813 = vpop.f32.mrb[0].mxu0
    %814 = vmatprep.mubr.bf16.mxu0 0
    %815 = vmatmul.mubr.bf16.gmra.mrb[0].mxu0 %v467
    %v816 = vpop.f32.mrb[0].mxu0
    %v817 = vadd.f32 0.0, %v816
    %v818 = vpop.f32.mrb[0].mxu0
    %v819 = vpop.f32.mrb[0].mxu0
    %v820 = vadd.f32 0.0, %v819
    %v821 = vpop.f32.mrb[0].mxu0
    %822 = vmatprep.mubr.bf16.mxu0 0
    %823 = vmatmul.mubr.bf16.gmra.mrb[0].mxu0 %v468
    %v824 = vpop.f32.mrb[0].mxu0
    %v825 = vadd.f32 0.0, %v824
    %v826 = vpop.f32.mrb[0].mxu0
    %v827 = vpop.f32.mrb[0].mxu0
    %v828 = vadd.f32 0.0, %v827
    %v829 = vpop.f32.mrb[0].mxu0
    %830 = vmatprep.mubr.bf16.mxu0 0
    %831 = vmatmul.mubr.bf16.gmra.mrb[0].mxu0 %v469
    %v832 = vpop.f32.mrb[0].mxu0
    %v833 = vadd.f32 0.0, %v832
    %v834 = vpop.f32.mrb[0].mxu0
    %v835 = vpop.f32.mrb[0].mxu0
    %v836 = vadd.f32 0.0, %v835
    %v837 = vpop.f32.mrb[0].mxu0
    %838 = vdwg.mxu0
    %v839 = vpack.c.bf16 %v588, %v585
    %v840 = vpack.c.bf16 %v596, %v593
    %v841 = vpack.c.bf16 %v604, %v601
    %v842 = vpack.c.bf16 %v612, %v609
    %v843 = vpack.c.bf16 %v620, %v617
    %v844 = vpack.c.bf16 %v628, %v625
    %v845 = vpack.c.bf16 %v636, %v633
    %v846 = vpack.c.bf16 %v644, %v641
    %v847 = vpack.c.bf16 %v652, %v649
    %v848 = vpack.c.bf16 %v660, %v657
    %v849 = vpack.c.bf16 %v668, %v665
    %v850 = vpack.c.bf16 %v676, %v673
    %v851 = vpack.c.bf16 %v684, %v681
    %v852 = vpack.c.bf16 %v692, %v689
    %v853 = vpack.c.bf16 %v700, %v697
    %v854 = vpack.c.bf16 %v708, %v705
    %v855 = vpack.c.bf16 %v716, %v713
    %v856 = vpack.c.bf16 %v724, %v721
    %v857 = vpack.c.bf16 %v732, %v729
    %v858 = vpack.c.bf16 %v740, %v737
    %v859 = vpack.c.bf16 %v748, %v745
    %v860 = vpack.c.bf16 %v756, %v753
    %v861 = vpack.c.bf16 %v764, %v761
    %v862 = vpack.c.bf16 %v772, %v769
    %v863 = vpack.c.bf16 %v780, %v777
    %v864 = vpack.c.bf16 %v788, %v785
    %v865 = vpack.c.bf16 %v796, %v793
    %v866 = vpack.c.bf16 %v804, %v801
    %v867 = vpack.c.bf16 %v812, %v809
    %v868 = vpack.c.bf16 %v820, %v817
    %v869 = vpack.c.bf16 %v828, %v825
    %v870 = vpack.c.bf16 %v836, %v833
    %v871 = vld [vmem:[%s4] sm:$0x1]
    %v873 = vlaneseq
    %v874 = vshrl.u32 %v873, 7
    %v875 = vsub.s32 0, %v874
    %v876 = vrot.slane %v871, %v875
    %v1006 = vunpack.c.l.b16 %v102
    %v1007 = vunpack.c.h.b16 %v102
    %v1008 = vunpack.c.l.b16 %v103
    %v1009 = vunpack.c.h.b16 %v103
    %v1010 = vunpack.c.l.b16 %v104
    %v1011 = vunpack.c.h.b16 %v104
    %v1012 = vunpack.c.l.b16 %v105
    %v1013 = vunpack.c.h.b16 %v105
    %v1014 = vunpack.c.l.b16 %v106
    %v1015 = vunpack.c.h.b16 %v106
    %v1016 = vunpack.c.l.b16 %v107
    %v1017 = vunpack.c.h.b16 %v107
    %v1018 = vunpack.c.l.b16 %v108
    %v1019 = vunpack.c.h.b16 %v108
    %v1020 = vunpack.c.l.b16 %v109
    %v1021 = vunpack.c.h.b16 %v109
    %v1022 = vunpack.c.l.b16 %v110
    %v1023 = vunpack.c.h.b16 %v110
    %v1024 = vunpack.c.l.b16 %v111
    %v1025 = vunpack.c.h.b16 %v111
    %v1026 = vunpack.c.l.b16 %v112
    %v1027 = vunpack.c.h.b16 %v112
    %v1028 = vunpack.c.l.b16 %v113
    %v1029 = vunpack.c.h.b16 %v113
    %v1030 = vunpack.c.l.b16 %v114
    %v1031 = vunpack.c.h.b16 %v114
    %v1032 = vunpack.c.l.b16 %v115
    %v1033 = vunpack.c.h.b16 %v115
    %v1034 = vunpack.c.l.b16 %v116
    %v1035 = vunpack.c.h.b16 %v116
    %v1036 = vunpack.c.l.b16 %v117
    %v1037 = vunpack.c.h.b16 %v117
    %v1038 = vunpack.c.l.b16 %v118
    %v1039 = vunpack.c.h.b16 %v118
    %v1040 = vunpack.c.l.b16 %v119
    %v1041 = vunpack.c.h.b16 %v119
    %v1042 = vunpack.c.l.b16 %v120
    %v1043 = vunpack.c.h.b16 %v120
    %v1044 = vunpack.c.l.b16 %v121
    %v1045 = vunpack.c.h.b16 %v121
    %v1046 = vunpack.c.l.b16 %v122
    %v1047 = vunpack.c.h.b16 %v122
    %v1048 = vunpack.c.l.b16 %v123
    %v1049 = vunpack.c.h.b16 %v123
    %v1050 = vunpack.c.l.b16 %v124
    %v1051 = vunpack.c.h.b16 %v124
    %v1052 = vunpack.c.l.b16 %v125
    %v1053 = vunpack.c.h.b16 %v125
    %v1054 = vunpack.c.l.b16 %v126
    %v1055 = vunpack.c.h.b16 %v126
    %v1056 = vunpack.c.l.b16 %v127
    %v1057 = vunpack.c.h.b16 %v127
    %v1058 = vunpack.c.l.b16 %v128
    %v1059 = vunpack.c.h.b16 %v128
    %v1060 = vunpack.c.l.b16 %v129
    %v1061 = vunpack.c.h.b16 %v129
    %v1062 = vunpack.c.l.b16 %v130
    %v1063 = vunpack.c.h.b16 %v130
    %v1064 = vunpack.c.l.b16 %v131
    %v1065 = vunpack.c.h.b16 %v131
    %v1066 = vunpack.c.l.b16 %v132
    %v1067 = vunpack.c.h.b16 %v132
    %v1068 = vunpack.c.l.b16 %v133
    %v1069 = vunpack.c.h.b16 %v133
    %v1070 = vunpack.c.l.b16 %v134
    %v1071 = vunpack.c.h.b16 %v134
    %v1072 = vunpack.c.l.b16 %v135
    %v1073 = vunpack.c.h.b16 %v135
    %v1074 = vunpack.c.l.b16 %v136
    %v1075 = vunpack.c.h.b16 %v136
    %v1076 = vunpack.c.l.b16 %v137
    %v1077 = vunpack.c.h.b16 %v137
    %v1078 = vunpack.c.l.b16 %v138
    %v1079 = vunpack.c.h.b16 %v138
    %v1080 = vunpack.c.l.b16 %v139
    %v1081 = vunpack.c.h.b16 %v139
    %v1082 = vunpack.c.l.b16 %v140
    %v1083 = vunpack.c.h.b16 %v140
    %v1084 = vunpack.c.l.b16 %v141
    %v1085 = vunpack.c.h.b16 %v141
    %v1086 = vunpack.c.l.b16 %v142
    %v1087 = vunpack.c.h.b16 %v142
    %v1088 = vunpack.c.l.b16 %v143
    %v1089 = vunpack.c.h.b16 %v143
    %v1090 = vunpack.c.l.b16 %v144
    %v1091 = vunpack.c.h.b16 %v144
    %v1092 = vunpack.c.l.b16 %v145
    %v1093 = vunpack.c.h.b16 %v145
    %v1094 = vunpack.c.l.b16 %v146
    %v1095 = vunpack.c.h.b16 %v146
    %v1096 = vunpack.c.l.b16 %v147
    %v1097 = vunpack.c.h.b16 %v147
    %v1098 = vunpack.c.l.b16 %v148
    %v1099 = vunpack.c.h.b16 %v148
    %v1100 = vunpack.c.l.b16 %v149
    %v1101 = vunpack.c.h.b16 %v149
    %v1102 = vunpack.c.l.b16 %v150
    %v1103 = vunpack.c.h.b16 %v150
    %v1104 = vunpack.c.l.b16 %v151
    %v1105 = vunpack.c.h.b16 %v151
    %v1106 = vunpack.c.l.b16 %v152
    %v1107 = vunpack.c.h.b16 %v152
    %v1108 = vunpack.c.l.b16 %v153
    %v1109 = vunpack.c.h.b16 %v153
    %v1110 = vunpack.c.l.b16 %v154
    %v1111 = vunpack.c.h.b16 %v154
    %v1112 = vunpack.c.l.b16 %v155
    %v1113 = vunpack.c.h.b16 %v155
    %v1114 = vunpack.c.l.b16 %v156
    %v1115 = vunpack.c.h.b16 %v156
    %v1116 = vunpack.c.l.b16 %v157
    %v1117 = vunpack.c.h.b16 %v157
    %v1118 = vunpack.c.l.b16 %v158
    %v1119 = vunpack.c.h.b16 %v158
    %v1120 = vunpack.c.l.b16 %v159
    %v1121 = vunpack.c.h.b16 %v159
    %v1122 = vunpack.c.l.b16 %v160
    %v1123 = vunpack.c.h.b16 %v160
    %v1124 = vunpack.c.l.b16 %v161
    %v1125 = vunpack.c.h.b16 %v161
    %v1126 = vunpack.c.l.b16 %v162
    %v1127 = vunpack.c.h.b16 %v162
    %v1128 = vunpack.c.l.b16 %v163
    %v1129 = vunpack.c.h.b16 %v163
    %v1130 = vunpack.c.l.b16 %v164
    %v1131 = vunpack.c.h.b16 %v164
    %v1132 = vunpack.c.l.b16 %v165
    %v1133 = vunpack.c.h.b16 %v165
    %v1134 = vunpack.c.l.b16 %v166
    %v1135 = vunpack.c.h.b16 %v166
    %v1136 = vunpack.c.l.b16 %v167
    %v1137 = vunpack.c.h.b16 %v167
    %v1138 = vunpack.c.l.b16 %v168
    %v1139 = vunpack.c.h.b16 %v168
    %v1140 = vunpack.c.l.b16 %v169
    %v1141 = vunpack.c.h.b16 %v169
    %v1142 = vunpack.c.l.b16 %v170
    %v1143 = vunpack.c.h.b16 %v170
    %v1144 = vunpack.c.l.b16 %v171
    %v1145 = vunpack.c.h.b16 %v171
    %v1146 = vunpack.c.l.b16 %v172
    %v1147 = vunpack.c.h.b16 %v172
    %v1148 = vunpack.c.l.b16 %v173
    %v1149 = vunpack.c.h.b16 %v173
    %v1150 = vunpack.c.l.b16 %v174
    %v1151 = vunpack.c.h.b16 %v174
    %v1152 = vunpack.c.l.b16 %v175
    %v1153 = vunpack.c.h.b16 %v175
    %v1154 = vunpack.c.l.b16 %v176
    %v1155 = vunpack.c.h.b16 %v176
    %v1156 = vunpack.c.l.b16 %v177
    %v1157 = vunpack.c.h.b16 %v177
    %v1158 = vunpack.c.l.b16 %v178
    %v1159 = vunpack.c.h.b16 %v178
    %v1160 = vunpack.c.l.b16 %v179
    %v1161 = vunpack.c.h.b16 %v179
    %v1162 = vunpack.c.l.b16 %v180
    %v1163 = vunpack.c.h.b16 %v180
    %v1164 = vunpack.c.l.b16 %v181
    %v1165 = vunpack.c.h.b16 %v181
    %v1166 = vunpack.c.l.b16 %v182
    %v1167 = vunpack.c.h.b16 %v182
    %v1168 = vunpack.c.l.b16 %v183
    %v1169 = vunpack.c.h.b16 %v183
    %v1170 = vunpack.c.l.b16 %v184
    %v1171 = vunpack.c.h.b16 %v184
    %v1172 = vunpack.c.l.b16 %v185
    %v1173 = vunpack.c.h.b16 %v185
    %v1174 = vunpack.c.l.b16 %v186
    %v1175 = vunpack.c.h.b16 %v186
    %v1176 = vunpack.c.l.b16 %v187
    %v1177 = vunpack.c.h.b16 %v187
    %v1178 = vunpack.c.l.b16 %v188
    %v1179 = vunpack.c.h.b16 %v188
    %v1180 = vunpack.c.l.b16 %v189
    %v1181 = vunpack.c.h.b16 %v189
    %v1182 = vunpack.c.l.b16 %v190
    %v1183 = vunpack.c.h.b16 %v190
    %v1184 = vunpack.c.l.b16 %v191
    %v1185 = vunpack.c.h.b16 %v191
    %v1186 = vunpack.c.l.b16 %v192
    %v1187 = vunpack.c.h.b16 %v192
    %v1188 = vunpack.c.l.b16 %v193
    %v1189 = vunpack.c.h.b16 %v193
    %v1190 = vunpack.c.l.b16 %v194
    %v1191 = vunpack.c.h.b16 %v194
    %v1192 = vunpack.c.l.b16 %v195
    %v1193 = vunpack.c.h.b16 %v195
    %v1194 = vunpack.c.l.b16 %v196
    %v1195 = vunpack.c.h.b16 %v196
    %v1196 = vunpack.c.l.b16 %v197
    %v1197 = vunpack.c.h.b16 %v197
    %v1198 = vunpack.c.l.b16 %v198
    %v1199 = vunpack.c.h.b16 %v198
    %v1200 = vunpack.c.l.b16 %v199
    %v1201 = vunpack.c.h.b16 %v199
    %v1202 = vunpack.c.l.b16 %v200
    %v1203 = vunpack.c.h.b16 %v200
    %v1204 = vunpack.c.l.b16 %v201
    %v1205 = vunpack.c.h.b16 %v201
    %v1206 = vunpack.c.l.b16 %v202
    %v1207 = vunpack.c.h.b16 %v202
    %v1208 = vunpack.c.l.b16 %v203
    %v1209 = vunpack.c.h.b16 %v203
    %v1210 = vunpack.c.l.b16 %v204
    %v1211 = vunpack.c.h.b16 %v204
    %v1212 = vunpack.c.l.b16 %v205
    %v1213 = vunpack.c.h.b16 %v205
    %v1214 = vunpack.c.l.b16 %v206
    %v1215 = vunpack.c.h.b16 %v206
    %v1216 = vunpack.c.l.b16 %v207
    %v1217 = vunpack.c.h.b16 %v207
    %v1218 = vunpack.c.l.b16 %v208
    %v1219 = vunpack.c.h.b16 %v208
    %v1220 = vunpack.c.l.b16 %v209
    %v1221 = vunpack.c.h.b16 %v209
    %v1222 = vunpack.c.l.b16 %v210
    %v1223 = vunpack.c.h.b16 %v210
    %v1224 = vunpack.c.l.b16 %v211
    %v1225 = vunpack.c.h.b16 %v211
    %v1226 = vunpack.c.l.b16 %v212
    %v1227 = vunpack.c.h.b16 %v212
    %v1228 = vunpack.c.l.b16 %v213
    %v1229 = vunpack.c.h.b16 %v213
    %v1230 = vunpack.c.l.b16 %v214
    %v1231 = vunpack.c.h.b16 %v214
    %v1232 = vunpack.c.l.b16 %v215
    %v1233 = vunpack.c.h.b16 %v215
    %v1234 = vunpack.c.l.b16 %v216
    %v1235 = vunpack.c.h.b16 %v216
    %v1236 = vunpack.c.l.b16 %v217
    %v1237 = vunpack.c.h.b16 %v217
    %v1238 = vunpack.c.l.b16 %v218
    %v1239 = vunpack.c.h.b16 %v218
    %v1240 = vunpack.c.l.b16 %v219
    %v1241 = vunpack.c.h.b16 %v219
    %v1242 = vunpack.c.l.b16 %v220
    %v1243 = vunpack.c.h.b16 %v220
    %v1244 = vunpack.c.l.b16 %v221
    %v1245 = vunpack.c.h.b16 %v221
    %v1246 = vunpack.c.l.b16 %v222
    %v1247 = vunpack.c.h.b16 %v222
    %v1248 = vunpack.c.l.b16 %v223
    %v1249 = vunpack.c.h.b16 %v223
    %v1250 = vunpack.c.l.b16 %v224
    %v1251 = vunpack.c.h.b16 %v224
    %v1252 = vunpack.c.l.b16 %v225
    %v1253 = vunpack.c.h.b16 %v225
    %v1254 = vunpack.c.l.b16 %v226
    %v1255 = vunpack.c.h.b16 %v226
    %v1256 = vunpack.c.l.b16 %v227
    %v1257 = vunpack.c.h.b16 %v227
    %v1258 = vunpack.c.l.b16 %v228
    %v1259 = vunpack.c.h.b16 %v228
    %v1260 = vunpack.c.l.b16 %v229
    %v1261 = vunpack.c.h.b16 %v229
    %v1262 = vpack.c.b16 %v1010, %v1006
    %v1263 = vpack.c.b16 %v1011, %v1007
    %v1264 = vpack.c.b16 %v1012, %v1008
    %v1265 = vpack.c.b16 %v1013, %v1009
    %v1266 = vpack.c.b16 %v1018, %v1014
    %v1267 = vpack.c.b16 %v1019, %v1015
    %v1268 = vpack.c.b16 %v1020, %v1016
    %v1269 = vpack.c.b16 %v1021, %v1017
    %v1270 = vpack.c.b16 %v1026, %v1022
    %v1271 = vpack.c.b16 %v1027, %v1023
    %v1272 = vpack.c.b16 %v1028, %v1024
    %v1273 = vpack.c.b16 %v1029, %v1025
    %v1274 = vpack.c.b16 %v1034, %v1030
    %v1275 = vpack.c.b16 %v1035, %v1031
    %v1276 = vpack.c.b16 %v1036, %v1032
    %v1277 = vpack.c.b16 %v1037, %v1033
    %v1278 = vpack.c.b16 %v1042, %v1038
    %v1279 = vpack.c.b16 %v1043, %v1039
    %v1280 = vpack.c.b16 %v1044, %v1040
    %v1281 = vpack.c.b16 %v1045, %v1041
    %v1282 = vpack.c.b16 %v1050, %v1046
    %v1283 = vpack.c.b16 %v1051, %v1047
    %v1284 = vpack.c.b16 %v1052, %v1048
    %v1285 = vpack.c.b16 %v1053, %v1049
    %v1286 = vpack.c.b16 %v1058, %v1054
    %v1287 = vpack.c.b16 %v1059, %v1055
    %v1288 = vpack.c.b16 %v1060, %v1056
    %v1289 = vpack.c.b16 %v1061, %v1057
    %v1290 = vpack.c.b16 %v1066, %v1062
    %v1291 = vpack.c.b16 %v1067, %v1063
    %v1292 = vpack.c.b16 %v1068, %v1064
    %v1293 = vpack.c.b16 %v1069, %v1065
    %v1294 = vpack.c.b16 %v1074, %v1070
    %v1295 = vpack.c.b16 %v1075, %v1071
    %v1296 = vpack.c.b16 %v1076, %v1072
    %v1297 = vpack.c.b16 %v1077, %v1073
    %v1298 = vpack.c.b16 %v1082, %v1078
    %v1299 = vpack.c.b16 %v1083, %v1079
    %v1300 = vpack.c.b16 %v1084, %v1080
    %v1301 = vpack.c.b16 %v1085, %v1081
    %v1302 = vpack.c.b16 %v1090, %v1086
    %v1303 = vpack.c.b16 %v1091, %v1087
    %v1304 = vpack.c.b16 %v1092, %v1088
    %v1305 = vpack.c.b16 %v1093, %v1089
    %v1306 = vpack.c.b16 %v1098, %v1094
    %v1307 = vpack.c.b16 %v1099, %v1095
    %v1308 = vpack.c.b16 %v1100, %v1096
    %v1309 = vpack.c.b16 %v1101, %v1097
    %v1310 = vpack.c.b16 %v1106, %v1102
    %v1311 = vpack.c.b16 %v1107, %v1103
    %v1312 = vpack.c.b16 %v1108, %v1104
    %v1313 = vpack.c.b16 %v1109, %v1105
    %v1314 = vpack.c.b16 %v1114, %v1110
    %v1315 = vpack.c.b16 %v1115, %v1111
    %v1316 = vpack.c.b16 %v1116, %v1112
    %v1317 = vpack.c.b16 %v1117, %v1113
    %v1318 = vpack.c.b16 %v1122, %v1118
    %v1319 = vpack.c.b16 %v1123, %v1119
    %v1320 = vpack.c.b16 %v1124, %v1120
    %v1321 = vpack.c.b16 %v1125, %v1121
    %v1322 = vpack.c.b16 %v1130, %v1126
    %v1323 = vpack.c.b16 %v1131, %v1127
    %v1324 = vpack.c.b16 %v1132, %v1128
    %v1325 = vpack.c.b16 %v1133, %v1129
    %v1326 = vpack.c.b16 %v1138, %v1134
    %v1327 = vpack.c.b16 %v1139, %v1135
    %v1328 = vpack.c.b16 %v1140, %v1136
    %v1329 = vpack.c.b16 %v1141, %v1137
    %v1330 = vpack.c.b16 %v1146, %v1142
    %v1331 = vpack.c.b16 %v1147, %v1143
    %v1332 = vpack.c.b16 %v1148, %v1144
    %v1333 = vpack.c.b16 %v1149, %v1145
    %v1334 = vpack.c.b16 %v1154, %v1150
    %v1335 = vpack.c.b16 %v1155, %v1151
    %v1336 = vpack.c.b16 %v1156, %v1152
    %v1337 = vpack.c.b16 %v1157, %v1153
    %v1338 = vpack.c.b16 %v1162, %v1158
    %v1339 = vpack.c.b16 %v1163, %v1159
    %v1340 = vpack.c.b16 %v1164, %v1160
    %v1341 = vpack.c.b16 %v1165, %v1161
    %v1342 = vpack.c.b16 %v1170, %v1166
    %v1343 = vpack.c.b16 %v1171, %v1167
    %v1344 = vpack.c.b16 %v1172, %v1168
    %v1345 = vpack.c.b16 %v1173, %v1169
    %v1346 = vpack.c.b16 %v1178, %v1174
    %v1347 = vpack.c.b16 %v1179, %v1175
    %v1348 = vpack.c.b16 %v1180, %v1176
    %v1349 = vpack.c.b16 %v1181, %v1177
    %v1350 = vpack.c.b16 %v1186, %v1182
    %v1351 = vpack.c.b16 %v1187, %v1183
    %v1352 = vpack.c.b16 %v1188, %v1184
    %v1353 = vpack.c.b16 %v1189, %v1185
    %v1354 = vpack.c.b16 %v1194, %v1190
    %v1355 = vpack.c.b16 %v1195, %v1191
    %v1356 = vpack.c.b16 %v1196, %v1192
    %v1357 = vpack.c.b16 %v1197, %v1193
    %v1358 = vpack.c.b16 %v1202, %v1198
    %v1359 = vpack.c.b16 %v1203, %v1199
    %v1360 = vpack.c.b16 %v1204, %v1200
    %v1361 = vpack.c.b16 %v1205, %v1201
    %v1362 = vpack.c.b16 %v1210, %v1206
    %v1363 = vpack.c.b16 %v1211, %v1207
    %v1364 = vpack.c.b16 %v1212, %v1208
    %v1365 = vpack.c.b16 %v1213, %v1209
    %v1366 = vpack.c.b16 %v1218, %v1214
    %v1367 = vpack.c.b16 %v1219, %v1215
    %v1368 = vpack.c.b16 %v1220, %v1216
    %v1369 = vpack.c.b16 %v1221, %v1217
    %v1370 = vpack.c.b16 %v1226, %v1222
    %v1371 = vpack.c.b16 %v1227, %v1223
    %v1372 = vpack.c.b16 %v1228, %v1224
    %v1373 = vpack.c.b16 %v1229, %v1225
    %v1374 = vpack.c.b16 %v1234, %v1230
    %v1375 = vpack.c.b16 %v1235, %v1231
    %v1376 = vpack.c.b16 %v1236, %v1232
    %v1377 = vpack.c.b16 %v1237, %v1233
    %v1378 = vpack.c.b16 %v1242, %v1238
    %v1379 = vpack.c.b16 %v1243, %v1239
    %v1380 = vpack.c.b16 %v1244, %v1240
    %v1381 = vpack.c.b16 %v1245, %v1241
    %v1382 = vpack.c.b16 %v1250, %v1246
    %v1383 = vpack.c.b16 %v1251, %v1247
    %v1384 = vpack.c.b16 %v1252, %v1248
    %v1385 = vpack.c.b16 %v1253, %v1249
    %v1386 = vpack.c.b16 %v1258, %v1254
    %v1387 = vpack.c.b16 %v1259, %v1255
    %v1388 = vpack.c.b16 %v1260, %v1256
    %v1389 = vpack.c.b16 %v1261, %v1257
    %1518 = vmatprep.subr.bf16.mxu0 0
    %1519 = vmatpush1.bf16.msra.mxu0 %v839
    %1520 = vmatprep.subr.bf16.mxu0 0
    %1521 = vmatpush1.bf16.msra.mxu0 %v840
    %1522 = vmatprep.subr.bf16.mxu0 0
    %1523 = vmatpush1.bf16.msra.mxu0 %v841
    %1524 = vmatprep.subr.bf16.mxu0 0
    %1525 = vmatpush1.bf16.msra.mxu0 %v842
    %1526 = vmatprep.subr.bf16.mxu0 0
    %1527 = vmatpush1.bf16.msra.mxu0 %v843
    %1528 = vmatprep.subr.bf16.mxu0 0
    %1529 = vmatpush1.bf16.msra.mxu0 %v844
    %1530 = vmatprep.subr.bf16.mxu0 0
    %1531 = vmatpush1.bf16.msra.mxu0 %v845
    %1532 = vmatprep.subr.bf16.mxu0 0
    %1533 = vmatpush1.bf16.msra.mxu0 %v846
    %1534 = vmatprep.subr.bf16.mxu0 0
    %1535 = vmatpush1.bf16.msra.mxu0 %v847
    %1536 = vmatprep.subr.bf16.mxu0 0
    %1537 = vmatpush1.bf16.msra.mxu0 %v848
    %1538 = vmatprep.subr.bf16.mxu0 0
    %1539 = vmatpush1.bf16.msra.mxu0 %v849
    %1540 = vmatprep.subr.bf16.mxu0 0
    %1541 = vmatpush1.bf16.msra.mxu0 %v850
    %1542 = vmatprep.subr.bf16.mxu0 0
    %1543 = vmatpush1.bf16.msra.mxu0 %v851
    %1544 = vmatprep.subr.bf16.mxu0 0
    %1545 = vmatpush1.bf16.msra.mxu0 %v852
    %1546 = vmatprep.subr.bf16.mxu0 0
    %1547 = vmatpush1.bf16.msra.mxu0 %v853
    %1548 = vmatprep.subr.bf16.mxu0 0
    %1549 = vmatpush1.bf16.msra.mxu0 %v854
    %1550 = vmatprep.mubr.bf16.mxu0 %v1263
    %1551 = vmatmul.mubr.bf16.gmra.mrb[0].mxu0 %v1262
    %v1552 = vpop.f32.mrb[0].mxu0
    %v1553 = vadd.f32 %v876, %v1552
    %v1554 = vpop.f32.mrb[0].mxu0
    %v1555 = vpop.f32.mrb[0].mxu0
    %v1556 = vadd.f32 %v876, %v1555
    %v1557 = vpop.f32.mrb[0].mxu0
    %1558 = vmatprep.mubr.bf16.mxu0 %v1267
    %1559 = vmatmul.mubr.bf16.gmra.mrb[0].mxu0 %v1266
    %v1560 = vpop.f32.mrb[0].mxu0
    %v1561 = vadd.f32 %v876, %v1560
    %v1562 = vpop.f32.mrb[0].mxu0
    %v1563 = vpop.f32.mrb[0].mxu0
    %v1564 = vadd.f32 %v876, %v1563
    %v1565 = vpop.f32.mrb[0].mxu0
    %1566 = vmatprep.mubr.bf16.mxu0 %v1271
    %1567 = vmatmul.mubr.bf16.gmra.mrb[0].mxu0 %v1270
    %v1568 = vpop.f32.mrb[0].mxu0
    %v1569 = vadd.f32 %v876, %v1568
    %v1570 = vpop.f32.mrb[0].mxu0
    %v1571 = vpop.f32.mrb[0].mxu0
    %v1572 = vadd.f32 %v876, %v1571
    %v1573 = vpop.f32.mrb[0].mxu0
    %1574 = vmatprep.mubr.bf16.mxu0 %v1275
    %1575 = vmatmul.mubr.bf16.gmra.mrb[0].mxu0 %v1274
    %v1576 = vpop.f32.mrb[0].mxu0
    %v1577 = vadd.f32 %v876, %v1576
    %v1578 = vpop.f32.mrb[0].mxu0
    %v1579 = vpop.f32.mrb[0].mxu0
    %v1580 = vadd.f32 %v876, %v1579
    %v1581 = vpop.f32.mrb[0].mxu0
    %1582 = vmatprep.mubr.bf16.mxu0 %v1279
    %1583 = vmatmul.mubr.bf16.gmra.mrb[0].mxu0 %v1278
    %v1584 = vpop.f32.mrb[0].mxu0
    %v1585 = vadd.f32 %v876, %v1584
    %v1586 = vpop.f32.mrb[0].mxu0
    %v1587 = vpop.f32.mrb[0].mxu0
    %v1588 = vadd.f32 %v876, %v1587
    %v1589 = vpop.f32.mrb[0].mxu0
    %1590 = vmatprep.mubr.bf16.mxu0 %v1283
    %1591 = vmatmul.mubr.bf16.gmra.mrb[0].mxu0 %v1282
    %v1592 = vpop.f32.mrb[0].mxu0
    %v1593 = vadd.f32 %v876, %v1592
    %v1594 = vpop.f32.mrb[0].mxu0
    %v1595 = vpop.f32.mrb[0].mxu0
    %v1596 = vadd.f32 %v876, %v1595
    %v1597 = vpop.f32.mrb[0].mxu0
    %1598 = vmatprep.mubr.bf16.mxu0 %v1287
    %1599 = vmatmul.mubr.bf16.gmra.mrb[0].mxu0 %v1286
    %v1600 = vpop.f32.mrb[0].mxu0
    %v1601 = vadd.f32 %v876, %v1600
    %v1602 = vpop.f32.mrb[0].mxu0
    %v1603 = vpop.f32.mrb[0].mxu0
    %v1604 = vadd.f32 %v876, %v1603
    %v1605 = vpop.f32.mrb[0].mxu0
    %1606 = vmatprep.mubr.bf16.mxu0 %v1291
    %1607 = vmatmul.mubr.bf16.gmra.mrb[0].mxu0 %v1290
    %v1608 = vpop.f32.mrb[0].mxu0
    %v1609 = vadd.f32 %v876, %v1608
    %v1610 = vpop.f32.mrb[0].mxu0
    %v1611 = vpop.f32.mrb[0].mxu0
    %v1612 = vadd.f32 %v876, %v1611
    %v1613 = vpop.f32.mrb[0].mxu0
    %1614 = vmatprep.mubr.bf16.mxu0 %v1295
    %1615 = vmatmul.mubr.bf16.gmra.mrb[0].mxu0 %v1294
    %v1616 = vpop.f32.mrb[0].mxu0
    %v1617 = vadd.f32 %v876, %v1616
    %v1618 = vpop.f32.mrb[0].mxu0
    %v1619 = vpop.f32.mrb[0].mxu0
    %v1620 = vadd.f32 %v876, %v1619
    %v1621 = vpop.f32.mrb[0].mxu0
    %1622 = vmatprep.mubr.bf16.mxu0 %v1299
    %1623 = vmatmul.mubr.bf16.gmra.mrb[0].mxu0 %v1298
    %v1624 = vpop.f32.mrb[0].mxu0
    %v1625 = vadd.f32 %v876, %v1624
    %v1626 = vpop.f32.mrb[0].mxu0
    %v1627 = vpop.f32.mrb[0].mxu0
    %v1628 = vadd.f32 %v876, %v1627
    %v1629 = vpop.f32.mrb[0].mxu0
    %1630 = vmatprep.mubr.bf16.mxu0 %v1303
    %1631 = vmatmul.mubr.bf16.gmra.mrb[0].mxu0 %v1302
    %v1632 = vpop.f32.mrb[0].mxu0
    %v1633 = vadd.f32 %v876, %v1632
    %v1634 = vpop.f32.mrb[0].mxu0
    %v1635 = vpop.f32.mrb[0].mxu0
    %v1636 = vadd.f32 %v876, %v1635
    %v1637 = vpop.f32.mrb[0].mxu0
    %1638 = vmatprep.mubr.bf16.mxu0 %v1307
    %1639 = vmatmul.mubr.bf16.gmra.mrb[0].mxu0 %v1306
    %v1640 = vpop.f32.mrb[0].mxu0
    %v1641 = vadd.f32 %v876, %v1640
    %v1642 = vpop.f32.mrb[0].mxu0
    %v1643 = vpop.f32.mrb[0].mxu0
    %v1644 = vadd.f32 %v876, %v1643
    %v1645 = vpop.f32.mrb[0].mxu0
    %1646 = vmatprep.mubr.bf16.mxu0 %v1311
    %1647 = vmatmul.mubr.bf16.gmra.mrb[0].mxu0 %v1310
    %v1648 = vpop.f32.mrb[0].mxu0
    %v1649 = vadd.f32 %v876, %v1648
    %v1650 = vpop.f32.mrb[0].mxu0
    %v1651 = vpop.f32.mrb[0].mxu0
    %v1652 = vadd.f32 %v876, %v1651
    %v1653 = vpop.f32.mrb[0].mxu0
    %1654 = vmatprep.mubr.bf16.mxu0 %v1315
    %1655 = vmatmul.mubr.bf16.gmra.mrb[0].mxu0 %v1314
    %v1656 = vpop.f32.mrb[0].mxu0
    %v1657 = vadd.f32 %v876, %v1656
    %v1658 = vpop.f32.mrb[0].mxu0
    %v1659 = vpop.f32.mrb[0].mxu0
    %v1660 = vadd.f32 %v876, %v1659
    %v1661 = vpop.f32.mrb[0].mxu0
    %1662 = vmatprep.mubr.bf16.mxu0 %v1319
    %1663 = vmatmul.mubr.bf16.gmra.mrb[0].mxu0 %v1318
    %v1664 = vpop.f32.mrb[0].mxu0
    %v1665 = vadd.f32 %v876, %v1664
    %v1666 = vpop.f32.mrb[0].mxu0
    %v1667 = vpop.f32.mrb[0].mxu0
    %v1668 = vadd.f32 %v876, %v1667
    %v1669 = vpop.f32.mrb[0].mxu0
    %1670 = vmatprep.mubr.bf16.mxu0 %v1323
    %1671 = vmatmul.mubr.bf16.gmra.mrb[0].mxu0 %v1322
    %v1672 = vpop.f32.mrb[0].mxu0
    %v1673 = vadd.f32 %v876, %v1672
    %v1674 = vpop.f32.mrb[0].mxu0
    %v1675 = vpop.f32.mrb[0].mxu0
    %v1676 = vadd.f32 %v876, %v1675
    %v1677 = vpop.f32.mrb[0].mxu0
    %1678 = vmatprep.mubr.bf16.mxu0 %v1327
    %1679 = vmatmul.mubr.bf16.gmra.mrb[0].mxu0 %v1326
    %v1680 = vpop.f32.mrb[0].mxu0
    %v1681 = vadd.f32 %v876, %v1680
    %v1682 = vpop.f32.mrb[0].mxu0
    %v1683 = vpop.f32.mrb[0].mxu0
    %v1684 = vadd.f32 %v876, %v1683
    %v1685 = vpop.f32.mrb[0].mxu0
    %1686 = vmatprep.mubr.bf16.mxu0 %v1331
    %1687 = vmatmul.mubr.bf16.gmra.mrb[0].mxu0 %v1330
    %v1688 = vpop.f32.mrb[0].mxu0
    %v1689 = vadd.f32 %v876, %v1688
    %v1690 = vpop.f32.mrb[0].mxu0
    %v1691 = vpop.f32.mrb[0].mxu0
    %v1692 = vadd.f32 %v876, %v1691
    %v1693 = vpop.f32.mrb[0].mxu0
    %1694 = vmatprep.mubr.bf16.mxu0 %v1335
    %1695 = vmatmul.mubr.bf16.gmra.mrb[0].mxu0 %v1334
    %v1696 = vpop.f32.mrb[0].mxu0
    %v1697 = vadd.f32 %v876, %v1696
    %v1698 = vpop.f32.mrb[0].mxu0
    %v1699 = vpop.f32.mrb[0].mxu0
    %v1700 = vadd.f32 %v876, %v1699
    %v1701 = vpop.f32.mrb[0].mxu0
    %1702 = vmatprep.mubr.bf16.mxu0 %v1339
    %1703 = vmatmul.mubr.bf16.gmra.mrb[0].mxu0 %v1338
    %v1704 = vpop.f32.mrb[0].mxu0
    %v1705 = vadd.f32 %v876, %v1704
    %v1706 = vpop.f32.mrb[0].mxu0
    %v1707 = vpop.f32.mrb[0].mxu0
    %v1708 = vadd.f32 %v876, %v1707
    %v1709 = vpop.f32.mrb[0].mxu0
    %1710 = vmatprep.mubr.bf16.mxu0 %v1343
    %1711 = vmatmul.mubr.bf16.gmra.mrb[0].mxu0 %v1342
    %v1712 = vpop.f32.mrb[0].mxu0
    %v1713 = vadd.f32 %v876, %v1712
    %v1714 = vpop.f32.mrb[0].mxu0
    %v1715 = vpop.f32.mrb[0].mxu0
    %v1716 = vadd.f32 %v876, %v1715
    %v1717 = vpop.f32.mrb[0].mxu0
    %1718 = vmatprep.mubr.bf16.mxu0 %v1347
    %1719 = vmatmul.mubr.bf16.gmra.mrb[0].mxu0 %v1346
    %v1720 = vpop.f32.mrb[0].mxu0
    %v1721 = vadd.f32 %v876, %v1720
    %v1722 = vpop.f32.mrb[0].mxu0
    %v1723 = vpop.f32.mrb[0].mxu0
    %v1724 = vadd.f32 %v876, %v1723
    %v1725 = vpop.f32.mrb[0].mxu0
    %1726 = vmatprep.mubr.bf16.mxu0 %v1351
    %1727 = vmatmul.mubr.bf16.gmra.mrb[0].mxu0 %v1350
    %v1728 = vpop.f32.mrb[0].mxu0
    %v1729 = vadd.f32 %v876, %v1728
    %v1730 = vpop.f32.mrb[0].mxu0
    %v1731 = vpop.f32.mrb[0].mxu0
    %v1732 = vadd.f32 %v876, %v1731
    %v1733 = vpop.f32.mrb[0].mxu0
    %1734 = vmatprep.mubr.bf16.mxu0 %v1355
    %1735 = vmatmul.mubr.bf16.gmra.mrb[0].mxu0 %v1354
    %v1736 = vpop.f32.mrb[0].mxu0
    %v1737 = vadd.f32 %v876, %v1736
    %v1738 = vpop.f32.mrb[0].mxu0
    %v1739 = vpop.f32.mrb[0].mxu0
    %v1740 = vadd.f32 %v876, %v1739
    %v1741 = vpop.f32.mrb[0].mxu0
    %1742 = vmatprep.mubr.bf16.mxu0 %v1359
    %1743 = vmatmul.mubr.bf16.gmra.mrb[0].mxu0 %v1358
    %v1744 = vpop.f32.mrb[0].mxu0
    %v1745 = vadd.f32 %v876, %v1744
    %v1746 = vpop.f32.mrb[0].mxu0
    %v1747 = vpop.f32.mrb[0].mxu0
    %v1748 = vadd.f32 %v876, %v1747
    %v1749 = vpop.f32.mrb[0].mxu0
    %1750 = vmatprep.mubr.bf16.mxu0 %v1363
    %1751 = vmatmul.mubr.bf16.gmra.mrb[0].mxu0 %v1362
    %v1752 = vpop.f32.mrb[0].mxu0
    %v1753 = vadd.f32 %v876, %v1752
    %v1754 = vpop.f32.mrb[0].mxu0
    %v1755 = vpop.f32.mrb[0].mxu0
    %v1756 = vadd.f32 %v876, %v1755
    %v1757 = vpop.f32.mrb[0].mxu0
    %1758 = vmatprep.mubr.bf16.mxu0 %v1367
    %1759 = vmatmul.mubr.bf16.gmra.mrb[0].mxu0 %v1366
    %v1760 = vpop.f32.mrb[0].mxu0
    %v1761 = vadd.f32 %v876, %v1760
    %v1762 = vpop.f32.mrb[0].mxu0
    %v1763 = vpop.f32.mrb[0].mxu0
    %v1764 = vadd.f32 %v876, %v1763
    %v1765 = vpop.f32.mrb[0].mxu0
    %1766 = vmatprep.mubr.bf16.mxu0 %v1371
    %1767 = vmatmul.mubr.bf16.gmra.mrb[0].mxu0 %v1370
    %v1768 = vpop.f32.mrb[0].mxu0
    %v1769 = vadd.f32 %v876, %v1768
    %v1770 = vpop.f32.mrb[0].mxu0
    %v1771 = vpop.f32.mrb[0].mxu0
    %v1772 = vadd.f32 %v876, %v1771
    %v1773 = vpop.f32.mrb[0].mxu0
    %1774 = vmatprep.mubr.bf16.mxu0 %v1375
    %1775 = vmatmul.mubr.bf16.gmra.mrb[0].mxu0 %v1374
    %v1776 = vpop.f32.mrb[0].mxu0
    %v1777 = vadd.f32 %v876, %v1776
    %v1778 = vpop.f32.mrb[0].mxu0
    %v1779 = vpop.f32.mrb[0].mxu0
    %v1780 = vadd.f32 %v876, %v1779
    %v1781 = vpop.f32.mrb[0].mxu0
    %1782 = vmatprep.mubr.bf16.mxu0 %v1379
    %1783 = vmatmul.mubr.bf16.gmra.mrb[0].mxu0 %v1378
    %v1784 = vpop.f32.mrb[0].mxu0
    %v1785 = vadd.f32 %v876, %v1784
    %v1786 = vpop.f32.mrb[0].mxu0
    %v1787 = vpop.f32.mrb[0].mxu0
    %v1788 = vadd.f32 %v876, %v1787
    %v1789 = vpop.f32.mrb[0].mxu0
    %1790 = vmatprep.mubr.bf16.mxu0 %v1383
    %1791 = vmatmul.mubr.bf16.gmra.mrb[0].mxu0 %v1382
    %v1792 = vpop.f32.mrb[0].mxu0
    %v1793 = vadd.f32 %v876, %v1792
    %v1794 = vpop.f32.mrb[0].mxu0
    %v1795 = vpop.f32.mrb[0].mxu0
    %v1796 = vadd.f32 %v876, %v1795
    %v1797 = vpop.f32.mrb[0].mxu0
    %1798 = vmatprep.mubr.bf16.mxu0 %v1387
    %1799 = vmatmul.mubr.bf16.gmra.mrb[0].mxu0 %v1386
    %v1800 = vpop.f32.mrb[0].mxu0
    %v1801 = vadd.f32 %v876, %v1800
    %v1802 = vpop.f32.mrb[0].mxu0
    %v1803 = vpop.f32.mrb[0].mxu0
    %v1804 = vadd.f32 %v876, %v1803
    %v1805 = vpop.f32.mrb[0].mxu0
    %1806 = vdwg.mxu0
    %1807 = vmatprep.subr.bf16.mxu0 0
    %1808 = vmatpush1.bf16.msra.mxu0 %v855
    %1809 = vmatprep.subr.bf16.mxu0 0
    %1810 = vmatpush1.bf16.msra.mxu0 %v856
    %1811 = vmatprep.subr.bf16.mxu0 0
    %1812 = vmatpush1.bf16.msra.mxu0 %v857
    %1813 = vmatprep.subr.bf16.mxu0 0
    %1814 = vmatpush1.bf16.msra.mxu0 %v858
    %1815 = vmatprep.subr.bf16.mxu0 0
    %1816 = vmatpush1.bf16.msra.mxu0 %v859
    %1817 = vmatprep.subr.bf16.mxu0 0
    %1818 = vmatpush1.bf16.msra.mxu0 %v860
    %1819 = vmatprep.subr.bf16.mxu0 0
    %1820 = vmatpush1.bf16.msra.mxu0 %v861
    %1821 = vmatprep.subr.bf16.mxu0 0
    %1822 = vmatpush1.bf16.msra.mxu0 %v862
    %1823 = vmatprep.subr.bf16.mxu0 0
    %1824 = vmatpush1.bf16.msra.mxu0 %v863
    %1825 = vmatprep.subr.bf16.mxu0 0
    %1826 = vmatpush1.bf16.msra.mxu0 %v864
    %1827 = vmatprep.subr.bf16.mxu0 0
    %1828 = vmatpush1.bf16.msra.mxu0 %v865
    %1829 = vmatprep.subr.bf16.mxu0 0
    %1830 = vmatpush1.bf16.msra.mxu0 %v866
    %1831 = vmatprep.subr.bf16.mxu0 0
    %1832 = vmatpush1.bf16.msra.mxu0 %v867
    %1833 = vmatprep.subr.bf16.mxu0 0
    %1834 = vmatpush1.bf16.msra.mxu0 %v868
    %1835 = vmatprep.subr.bf16.mxu0 0
    %1836 = vmatpush1.bf16.msra.mxu0 %v869
    %1837 = vmatprep.subr.bf16.mxu0 0
    %1838 = vmatpush1.bf16.msra.mxu0 %v870
    %1839 = vmatprep.mubr.bf16.mxu0 %v1265
    %1840 = vmatmul.mubr.bf16.gmra.mrb[0].mxu0 %v1264
    %v1841 = vpop.f32.mrb[0].mxu0
    %v1842 = vadd.f32 %v1553, %v1841
    %v1843 = vpop.f32.mrb[0].mxu0
    %v1844 = vpop.f32.mrb[0].mxu0
    %v1845 = vadd.f32 %v1556, %v1844
    %v1846 = vpop.f32.mrb[0].mxu0
    %1847 = vmatprep.mubr.bf16.mxu0 %v1269
    %1848 = vmatmul.mubr.bf16.gmra.mrb[0].mxu0 %v1268
    %v1849 = vpop.f32.mrb[0].mxu0
    %v1850 = vadd.f32 %v1561, %v1849
    %v1851 = vpop.f32.mrb[0].mxu0
    %v1852 = vpop.f32.mrb[0].mxu0
    %v1853 = vadd.f32 %v1564, %v1852
    %v1854 = vpop.f32.mrb[0].mxu0
    %1855 = vmatprep.mubr.bf16.mxu0 %v1273
    %1856 = vmatmul.mubr.bf16.gmra.mrb[0].mxu0 %v1272
    %v1857 = vpop.f32.mrb[0].mxu0
    %v1858 = vadd.f32 %v1569, %v1857
    %v1859 = vpop.f32.mrb[0].mxu0
    %v1860 = vpop.f32.mrb[0].mxu0
    %v1861 = vadd.f32 %v1572, %v1860
    %v1862 = vpop.f32.mrb[0].mxu0
    %1863 = vmatprep.mubr.bf16.mxu0 %v1277
    %1864 = vmatmul.mubr.bf16.gmra.mrb[0].mxu0 %v1276
    %v1865 = vpop.f32.mrb[0].mxu0
    %v1866 = vadd.f32 %v1577, %v1865
    %v1867 = vpop.f32.mrb[0].mxu0
    %v1868 = vpop.f32.mrb[0].mxu0
    %v1869 = vadd.f32 %v1580, %v1868
    %v1870 = vpop.f32.mrb[0].mxu0
    %1871 = vmatprep.mubr.bf16.mxu0 %v1281
    %1872 = vmatmul.mubr.bf16.gmra.mrb[0].mxu0 %v1280
    %v1873 = vpop.f32.mrb[0].mxu0
    %v1874 = vadd.f32 %v1585, %v1873
    %v1875 = vpop.f32.mrb[0].mxu0
    %v1876 = vpop.f32.mrb[0].mxu0
    %v1877 = vadd.f32 %v1588, %v1876
    %v1878 = vpop.f32.mrb[0].mxu0
    %1879 = vmatprep.mubr.bf16.mxu0 %v1285
    %1880 = vmatmul.mubr.bf16.gmra.mrb[0].mxu0 %v1284
    %v1881 = vpop.f32.mrb[0].mxu0
    %v1882 = vadd.f32 %v1593, %v1881
    %v1883 = vpop.f32.mrb[0].mxu0
    %v1884 = vpop.f32.mrb[0].mxu0
    %v1885 = vadd.f32 %v1596, %v1884
    %v1886 = vpop.f32.mrb[0].mxu0
    %1887 = vmatprep.mubr.bf16.mxu0 %v1289
    %1888 = vmatmul.mubr.bf16.gmra.mrb[0].mxu0 %v1288
    %v1889 = vpop.f32.mrb[0].mxu0
    %v1890 = vadd.f32 %v1601, %v1889
    %v1891 = vpop.f32.mrb[0].mxu0
    %v1892 = vpop.f32.mrb[0].mxu0
    %v1893 = vadd.f32 %v1604, %v1892
    %v1894 = vpop.f32.mrb[0].mxu0
    %1895 = vmatprep.mubr.bf16.mxu0 %v1293
    %1896 = vmatmul.mubr.bf16.gmra.mrb[0].mxu0 %v1292
    %v1897 = vpop.f32.mrb[0].mxu0
    %v1898 = vadd.f32 %v1609, %v1897
    %v1899 = vpop.f32.mrb[0].mxu0
    %v1900 = vpop.f32.mrb[0].mxu0
    %v1901 = vadd.f32 %v1612, %v1900
    %v1902 = vpop.f32.mrb[0].mxu0
    %1903 = vmatprep.mubr.bf16.mxu0 %v1297
    %1904 = vmatmul.mubr.bf16.gmra.mrb[0].mxu0 %v1296
    %v1905 = vpop.f32.mrb[0].mxu0
    %v1906 = vadd.f32 %v1617, %v1905
    %v1907 = vpop.f32.mrb[0].mxu0
    %v1908 = vpop.f32.mrb[0].mxu0
    %v1909 = vadd.f32 %v1620, %v1908
    %v1910 = vpop.f32.mrb[0].mxu0
    %1911 = vmatprep.mubr.bf16.mxu0 %v1301
    %1912 = vmatmul.mubr.bf16.gmra.mrb[0].mxu0 %v1300
    %v1913 = vpop.f32.mrb[0].mxu0
    %v1914 = vadd.f32 %v1625, %v1913
    %v1915 = vpop.f32.mrb[0].mxu0
    %v1916 = vpop.f32.mrb[0].mxu0
    %v1917 = vadd.f32 %v1628, %v1916
    %v1918 = vpop.f32.mrb[0].mxu0
    %1919 = vmatprep.mubr.bf16.mxu0 %v1305
    %1920 = vmatmul.mubr.bf16.gmra.mrb[0].mxu0 %v1304
    %v1921 = vpop.f32.mrb[0].mxu0
    %v1922 = vadd.f32 %v1633, %v1921
    %v1923 = vpop.f32.mrb[0].mxu0
    %v1924 = vpop.f32.mrb[0].mxu0
    %v1925 = vadd.f32 %v1636, %v1924
    %v1926 = vpop.f32.mrb[0].mxu0
    %1927 = vmatprep.mubr.bf16.mxu0 %v1309
    %1928 = vmatmul.mubr.bf16.gmra.mrb[0].mxu0 %v1308
    %v1929 = vpop.f32.mrb[0].mxu0
    %v1930 = vadd.f32 %v1641, %v1929
    %v1931 = vpop.f32.mrb[0].mxu0
    %v1932 = vpop.f32.mrb[0].mxu0
    %v1933 = vadd.f32 %v1644, %v1932
    %v1934 = vpop.f32.mrb[0].mxu0
    %1935 = vmatprep.mubr.bf16.mxu0 %v1313
    %1936 = vmatmul.mubr.bf16.gmra.mrb[0].mxu0 %v1312
    %v1937 = vpop.f32.mrb[0].mxu0
    %v1938 = vadd.f32 %v1649, %v1937
    %v1939 = vpop.f32.mrb[0].mxu0
    %v1940 = vpop.f32.mrb[0].mxu0
    %v1941 = vadd.f32 %v1652, %v1940
    %v1942 = vpop.f32.mrb[0].mxu0
    %1943 = vmatprep.mubr.bf16.mxu0 %v1317
    %1944 = vmatmul.mubr.bf16.gmra.mrb[0].mxu0 %v1316
    %v1945 = vpop.f32.mrb[0].mxu0
    %v1946 = vadd.f32 %v1657, %v1945
    %v1947 = vpop.f32.mrb[0].mxu0
    %v1948 = vpop.f32.mrb[0].mxu0
    %v1949 = vadd.f32 %v1660, %v1948
    %v1950 = vpop.f32.mrb[0].mxu0
    %1951 = vmatprep.mubr.bf16.mxu0 %v1321
    %1952 = vmatmul.mubr.bf16.gmra.mrb[0].mxu0 %v1320
    %v1953 = vpop.f32.mrb[0].mxu0
    %v1954 = vadd.f32 %v1665, %v1953
    %v1955 = vpop.f32.mrb[0].mxu0
    %v1956 = vpop.f32.mrb[0].mxu0
    %v1957 = vadd.f32 %v1668, %v1956
    %v1958 = vpop.f32.mrb[0].mxu0
    %1959 = vmatprep.mubr.bf16.mxu0 %v1325
    %1960 = vmatmul.mubr.bf16.gmra.mrb[0].mxu0 %v1324
    %v1961 = vpop.f32.mrb[0].mxu0
    %v1962 = vadd.f32 %v1673, %v1961
    %v1963 = vpop.f32.mrb[0].mxu0
    %v1964 = vpop.f32.mrb[0].mxu0
    %v1965 = vadd.f32 %v1676, %v1964
    %v1966 = vpop.f32.mrb[0].mxu0
    %1967 = vmatprep.mubr.bf16.mxu0 %v1329
    %1968 = vmatmul.mubr.bf16.gmra.mrb[0].mxu0 %v1328
    %v1969 = vpop.f32.mrb[0].mxu0
    %v1970 = vadd.f32 %v1681, %v1969
    %v1971 = vpop.f32.mrb[0].mxu0
    %v1972 = vpop.f32.mrb[0].mxu0
    %v1973 = vadd.f32 %v1684, %v1972
    %v1974 = vpop.f32.mrb[0].mxu0
    %1975 = vmatprep.mubr.bf16.mxu0 %v1333
    %1976 = vmatmul.mubr.bf16.gmra.mrb[0].mxu0 %v1332
    %v1977 = vpop.f32.mrb[0].mxu0
    %v1978 = vadd.f32 %v1689, %v1977
    %v1979 = vpop.f32.mrb[0].mxu0
    %v1980 = vpop.f32.mrb[0].mxu0
    %v1981 = vadd.f32 %v1692, %v1980
    %v1982 = vpop.f32.mrb[0].mxu0
    %1983 = vmatprep.mubr.bf16.mxu0 %v1337
    %1984 = vmatmul.mubr.bf16.gmra.mrb[0].mxu0 %v1336
    %v1985 = vpop.f32.mrb[0].mxu0
    %v1986 = vadd.f32 %v1697, %v1985
    %v1987 = vpop.f32.mrb[0].mxu0
    %v1988 = vpop.f32.mrb[0].mxu0
    %v1989 = vadd.f32 %v1700, %v1988
    %v1990 = vpop.f32.mrb[0].mxu0
    %1991 = vmatprep.mubr.bf16.mxu0 %v1341
    %1992 = vmatmul.mubr.bf16.gmra.mrb[0].mxu0 %v1340
    %v1993 = vpop.f32.mrb[0].mxu0
    %v1994 = vadd.f32 %v1705, %v1993
    %v1995 = vpop.f32.mrb[0].mxu0
    %v1996 = vpop.f32.mrb[0].mxu0
    %v1997 = vadd.f32 %v1708, %v1996
    %v1998 = vpop.f32.mrb[0].mxu0
    %1999 = vmatprep.mubr.bf16.mxu0 %v1345
    %2000 = vmatmul.mubr.bf16.gmra.mrb[0].mxu0 %v1344
    %v2001 = vpop.f32.mrb[0].mxu0
    %v2002 = vadd.f32 %v1713, %v2001
    %v2003 = vpop.f32.mrb[0].mxu0
    %v2004 = vpop.f32.mrb[0].mxu0
    %v2005 = vadd.f32 %v1716, %v2004
    %v2006 = vpop.f32.mrb[0].mxu0
    %2007 = vmatprep.mubr.bf16.mxu0 %v1349
    %2008 = vmatmul.mubr.bf16.gmra.mrb[0].mxu0 %v1348
    %v2009 = vpop.f32.mrb[0].mxu0
    %v2010 = vadd.f32 %v1721, %v2009
    %v2011 = vpop.f32.mrb[0].mxu0
    %v2012 = vpop.f32.mrb[0].mxu0
    %v2013 = vadd.f32 %v1724, %v2012
    %v2014 = vpop.f32.mrb[0].mxu0
    %2015 = vmatprep.mubr.bf16.mxu0 %v1353
    %2016 = vmatmul.mubr.bf16.gmra.mrb[0].mxu0 %v1352
    %v2017 = vpop.f32.mrb[0].mxu0
    %v2018 = vadd.f32 %v1729, %v2017
    %v2019 = vpop.f32.mrb[0].mxu0
    %v2020 = vpop.f32.mrb[0].mxu0
    %v2021 = vadd.f32 %v1732, %v2020
    %v2022 = vpop.f32.mrb[0].mxu0
    %2023 = vmatprep.mubr.bf16.mxu0 %v1357
    %2024 = vmatmul.mubr.bf16.gmra.mrb[0].mxu0 %v1356
    %v2025 = vpop.f32.mrb[0].mxu0
    %v2026 = vadd.f32 %v1737, %v2025
    %v2027 = vpop.f32.mrb[0].mxu0
    %v2028 = vpop.f32.mrb[0].mxu0
    %v2029 = vadd.f32 %v1740, %v2028
    %v2030 = vpop.f32.mrb[0].mxu0
    %2031 = vmatprep.mubr.bf16.mxu0 %v1361
    %2032 = vmatmul.mubr.bf16.gmra.mrb[0].mxu0 %v1360
    %v2033 = vpop.f32.mrb[0].mxu0
    %v2034 = vadd.f32 %v1745, %v2033
    %v2035 = vpop.f32.mrb[0].mxu0
    %v2036 = vpop.f32.mrb[0].mxu0
    %v2037 = vadd.f32 %v1748, %v2036
    %v2038 = vpop.f32.mrb[0].mxu0
    %2039 = vmatprep.mubr.bf16.mxu0 %v1365
    %2040 = vmatmul.mubr.bf16.gmra.mrb[0].mxu0 %v1364
    %v2041 = vpop.f32.mrb[0].mxu0
    %v2042 = vadd.f32 %v1753, %v2041
    %v2043 = vpop.f32.mrb[0].mxu0
    %v2044 = vpop.f32.mrb[0].mxu0
    %v2045 = vadd.f32 %v1756, %v2044
    %v2046 = vpop.f32.mrb[0].mxu0
    %2047 = vmatprep.mubr.bf16.mxu0 %v1369
    %2048 = vmatmul.mubr.bf16.gmra.mrb[0].mxu0 %v1368
    %v2049 = vpop.f32.mrb[0].mxu0
    %v2050 = vadd.f32 %v1761, %v2049
    %v2051 = vpop.f32.mrb[0].mxu0
    %v2052 = vpop.f32.mrb[0].mxu0
    %v2053 = vadd.f32 %v1764, %v2052
    %v2054 = vpop.f32.mrb[0].mxu0
    %2055 = vmatprep.mubr.bf16.mxu0 %v1373
    %2056 = vmatmul.mubr.bf16.gmra.mrb[0].mxu0 %v1372
    %v2057 = vpop.f32.mrb[0].mxu0
    %v2058 = vadd.f32 %v1769, %v2057
    %v2059 = vpop.f32.mrb[0].mxu0
    %v2060 = vpop.f32.mrb[0].mxu0
    %v2061 = vadd.f32 %v1772, %v2060
    %v2062 = vpop.f32.mrb[0].mxu0
    %2063 = vmatprep.mubr.bf16.mxu0 %v1377
    %2064 = vmatmul.mubr.bf16.gmra.mrb[0].mxu0 %v1376
    %v2065 = vpop.f32.mrb[0].mxu0
    %v2066 = vadd.f32 %v1777, %v2065
    %v2067 = vpop.f32.mrb[0].mxu0
    %v2068 = vpop.f32.mrb[0].mxu0
    %v2069 = vadd.f32 %v1780, %v2068
    %v2070 = vpop.f32.mrb[0].mxu0
    %2071 = vmatprep.mubr.bf16.mxu0 %v1381
    %2072 = vmatmul.mubr.bf16.gmra.mrb[0].mxu0 %v1380
    %v2073 = vpop.f32.mrb[0].mxu0
    %v2074 = vadd.f32 %v1785, %v2073
    %v2075 = vpop.f32.mrb[0].mxu0
    %v2076 = vpop.f32.mrb[0].mxu0
    %v2077 = vadd.f32 %v1788, %v2076
    %v2078 = vpop.f32.mrb[0].mxu0
    %2079 = vmatprep.mubr.bf16.mxu0 %v1385
    %2080 = vmatmul.mubr.bf16.gmra.mrb[0].mxu0 %v1384
    %v2081 = vpop.f32.mrb[0].mxu0
    %v2082 = vadd.f32 %v1793, %v2081
    %v2083 = vpop.f32.mrb[0].mxu0
    %v2084 = vpop.f32.mrb[0].mxu0
    %v2085 = vadd.f32 %v1796, %v2084
    %v2086 = vpop.f32.mrb[0].mxu0
    %2087 = vmatprep.mubr.bf16.mxu0 %v1389
    %2088 = vmatmul.mubr.bf16.gmra.mrb[0].mxu0 %v1388
    %v2089 = vpop.f32.mrb[0].mxu0
    %v2090 = vadd.f32 %v1801, %v2089
    %v2091 = vpop.f32.mrb[0].mxu0
    %v2092 = vpop.f32.mrb[0].mxu0
    %v2093 = vadd.f32 %v1804, %v2092
    %v2094 = vpop.f32.mrb[0].mxu0
    %2095 = vdwg.mxu0
    %v2096 = vmax.f32 %v1842, 0.0
    %v2097 = vmax.f32 %v1845, 0.0
    %v2098 = vmax.f32 %v1850, 0.0
    %v2099 = vmax.f32 %v1853, 0.0
    %v2100 = vmax.f32 %v1858, 0.0
    %v2101 = vmax.f32 %v1861, 0.0
    %v2102 = vmax.f32 %v1866, 0.0
    %v2103 = vmax.f32 %v1869, 0.0
    %v2104 = vmax.f32 %v1874, 0.0
    %v2105 = vmax.f32 %v1877, 0.0
    %v2106 = vmax.f32 %v1882, 0.0
    %v2107 = vmax.f32 %v1885, 0.0
    %v2108 = vmax.f32 %v1890, 0.0
    %v2109 = vmax.f32 %v1893, 0.0
    %v2110 = vmax.f32 %v1898, 0.0
    %v2111 = vmax.f32 %v1901, 0.0
    %v2112 = vmax.f32 %v1906, 0.0
    %v2113 = vmax.f32 %v1909, 0.0
    %v2114 = vmax.f32 %v1914, 0.0
    %v2115 = vmax.f32 %v1917, 0.0
    %v2116 = vmax.f32 %v1922, 0.0
    %v2117 = vmax.f32 %v1925, 0.0
    %v2118 = vmax.f32 %v1930, 0.0
    %v2119 = vmax.f32 %v1933, 0.0
    %v2120 = vmax.f32 %v1938, 0.0
    %v2121 = vmax.f32 %v1941, 0.0
    %v2122 = vmax.f32 %v1946, 0.0
    %v2123 = vmax.f32 %v1949, 0.0
    %v2124 = vmax.f32 %v1954, 0.0
    %v2125 = vmax.f32 %v1957, 0.0
    %v2126 = vmax.f32 %v1962, 0.0
    %v2127 = vmax.f32 %v1965, 0.0
    %v2128 = vmax.f32 %v1970, 0.0
    %v2129 = vmax.f32 %v1973, 0.0
    %v2130 = vmax.f32 %v1978, 0.0
    %v2131 = vmax.f32 %v1981, 0.0
    %v2132 = vmax.f32 %v1986, 0.0
    %v2133 = vmax.f32 %v1989, 0.0
    %v2134 = vmax.f32 %v1994, 0.0
    %v2135 = vmax.f32 %v1997, 0.0
    %v2136 = vmax.f32 %v2002, 0.0
    %v2137 = vmax.f32 %v2005, 0.0
    %v2138 = vmax.f32 %v2010, 0.0
    %v2139 = vmax.f32 %v2013, 0.0
    %v2140 = vmax.f32 %v2018, 0.0
    %v2141 = vmax.f32 %v2021, 0.0
    %v2142 = vmax.f32 %v2026, 0.0
    %v2143 = vmax.f32 %v2029, 0.0
    %v2144 = vmax.f32 %v2034, 0.0
    %v2145 = vmax.f32 %v2037, 0.0
    %v2146 = vmax.f32 %v2042, 0.0
    %v2147 = vmax.f32 %v2045, 0.0
    %v2148 = vmax.f32 %v2050, 0.0
    %v2149 = vmax.f32 %v2053, 0.0
    %v2150 = vmax.f32 %v2058, 0.0
    %v2151 = vmax.f32 %v2061, 0.0
    %v2152 = vmax.f32 %v2066, 0.0
    %v2153 = vmax.f32 %v2069, 0.0
    %v2154 = vmax.f32 %v2074, 0.0
    %v2155 = vmax.f32 %v2077, 0.0
    %v2156 = vmax.f32 %v2082, 0.0
    %v2157 = vmax.f32 %v2085, 0.0
    %v2158 = vmax.f32 %v2090, 0.0
    %v2159 = vmax.f32 %v2093, 0.0
    %v2160 = vpack.c.bf16 %v2097, %v2096
    %v2161 = vpack.c.bf16 %v2099, %v2098
    %v2162 = vpack.c.bf16 %v2101, %v2100
    %v2163 = vpack.c.bf16 %v2103, %v2102
    %v2164 = vpack.c.bf16 %v2105, %v2104
    %v2165 = vpack.c.bf16 %v2107, %v2106
    %v2166 = vpack.c.bf16 %v2109, %v2108
    %v2167 = vpack.c.bf16 %v2111, %v2110
    %v2168 = vpack.c.bf16 %v2113, %v2112
    %v2169 = vpack.c.bf16 %v2115, %v2114
    %v2170 = vpack.c.bf16 %v2117, %v2116
    %v2171 = vpack.c.bf16 %v2119, %v2118
    %v2172 = vpack.c.bf16 %v2121, %v2120
    %v2173 = vpack.c.bf16 %v2123, %v2122
    %v2174 = vpack.c.bf16 %v2125, %v2124
    %v2175 = vpack.c.bf16 %v2127, %v2126
    %v2176 = vpack.c.bf16 %v2129, %v2128
    %v2177 = vpack.c.bf16 %v2131, %v2130
    %v2178 = vpack.c.bf16 %v2133, %v2132
    %v2179 = vpack.c.bf16 %v2135, %v2134
    %v2180 = vpack.c.bf16 %v2137, %v2136
    %v2181 = vpack.c.bf16 %v2139, %v2138
    %v2182 = vpack.c.bf16 %v2141, %v2140
    %v2183 = vpack.c.bf16 %v2143, %v2142
    %v2184 = vpack.c.bf16 %v2145, %v2144
    %v2185 = vpack.c.bf16 %v2147, %v2146
    %v2186 = vpack.c.bf16 %v2149, %v2148
    %v2187 = vpack.c.bf16 %v2151, %v2150
    %v2188 = vpack.c.bf16 %v2153, %v2152
    %v2189 = vpack.c.bf16 %v2155, %v2154
    %v2190 = vpack.c.bf16 %v2157, %v2156
    %v2191 = vpack.c.bf16 %v2159, %v2158
    %v2192 = vld [vmem:[#allocation8] sm:$0xf]
    %v2193 = vld [vmem:[#allocation8 + $0x4] sm:$0xf]
    %v2194 = vld [vmem:[#allocation8 + $0x8] sm:$0xf]
    %v2195 = vld [vmem:[#allocation8 + $0xc] sm:$0xf]
    %v2196 = vld [vmem:[#allocation8 + $0x10] sm:$0xf]
    %v2197 = vld [vmem:[#allocation8 + $0x14] sm:$0xf]
    %v2198 = vld [vmem:[#allocation8 + $0x18] sm:$0xf]
    %v2199 = vld [vmem:[#allocation8 + $0x1c] sm:$0xf]
    %v2200 = vld [vmem:[#allocation8 + $0x20] sm:$0xf]
    %v2201 = vld [vmem:[#allocation8 + $0x24] sm:$0xf]
    %v2202 = vld [vmem:[#allocation8 + $0x28] sm:$0xf]
    %v2203 = vld [vmem:[#allocation8 + $0x2c] sm:$0xf]
    %v2204 = vld [vmem:[#allocation8 + $0x30] sm:$0xf]
    %v2205 = vld [vmem:[#allocation8 + $0x34] sm:$0xf]
    %v2206 = vld [vmem:[#allocation8 + $0x38] sm:$0xf]
    %v2207 = vld [vmem:[#allocation8 + $0x3c] sm:$0xf]
    %v2224 = vunpack.c.l.b16 %v2192
    %v2225 = vunpack.c.l.b16 %v2193
    %v2226 = vunpack.c.l.b16 %v2194
    %v2227 = vunpack.c.l.b16 %v2195
    %v2228 = vunpack.c.l.b16 %v2196
    %v2229 = vunpack.c.l.b16 %v2197
    %v2230 = vunpack.c.l.b16 %v2198
    %v2231 = vunpack.c.l.b16 %v2199
    %v2232 = vunpack.c.l.b16 %v2200
    %v2233 = vunpack.c.l.b16 %v2201
    %v2234 = vunpack.c.l.b16 %v2202
    %v2235 = vunpack.c.l.b16 %v2203
    %v2236 = vunpack.c.l.b16 %v2204
    %v2237 = vunpack.c.l.b16 %v2205
    %v2238 = vunpack.c.l.b16 %v2206
    %v2239 = vunpack.c.l.b16 %v2207
    %v2240 = vpack.c.b16 %v2225, %v2224
    %v2241 = vpack.c.b16 %v2227, %v2226
    %v2242 = vpack.c.b16 %v2229, %v2228
    %v2243 = vpack.c.b16 %v2231, %v2230
    %v2244 = vpack.c.b16 %v2233, %v2232
    %v2245 = vpack.c.b16 %v2235, %v2234
    %v2246 = vpack.c.b16 %v2237, %v2236
    %v2247 = vpack.c.b16 %v2239, %v2238
    %2256 = vmatprep.subr.bf16.mxu0 0
    %2257 = vmatpush1.bf16.msra.mxu0 %v2240
    %2258 = vmatprep.subr.bf16.mxu0 0
    %2259 = vmatpush1.bf16.msra.mxu0 %v2241
    %2260 = vmatprep.subr.bf16.mxu0 0
    %2261 = vmatpush1.bf16.msra.mxu0 %v2242
    %2262 = vmatprep.subr.bf16.mxu0 0
    %2263 = vmatpush1.bf16.msra.mxu0 %v2243
    %2264 = vmatprep.subr.bf16.mxu0 0
    %2265 = vmatpush1.bf16.msra.mxu0 %v2244
    %2266 = vmatprep.subr.bf16.mxu0 0
    %2267 = vmatpush1.bf16.msra.mxu0 %v2245
    %2268 = vmatprep.subr.bf16.mxu0 0
    %2269 = vmatpush1.bf16.msra.mxu0 %v2246
    %2270 = vmatprep.subr.bf16.mxu0 0
    %2271 = vmatpush1.bf16.msra.mxu0 %v2247
    %2272 = vmatprep.subr.bf16.mxu0 0
    %2273 = vmatpush1.bf16.msra.mxu0 0
    %2274 = vmatprep.subr.bf16.mxu0 0
    %2275 = vmatpush1.bf16.msra.mxu0 0
    %2276 = vmatprep.subr.bf16.mxu0 0
    %2277 = vmatpush1.bf16.msra.mxu0 0
    %2278 = vmatprep.subr.bf16.mxu0 0
    %2279 = vmatpush1.bf16.msra.mxu0 0
    %2280 = vmatprep.subr.bf16.mxu0 0
    %2281 = vmatpush1.bf16.msra.mxu0 0
    %2282 = vmatprep.subr.bf16.mxu0 0
    %2283 = vmatpush1.bf16.msra.mxu0 0
    %2284 = vmatprep.subr.bf16.mxu0 0
    %2285 = vmatpush1.bf16.msra.mxu0 0
    %2286 = vmatprep.subr.bf16.mxu0 0
    %2287 = vmatpush1.bf16.msra.mxu0 0
    %2288 = vmatprep.mubr.bf16.mxu0 0
    %2289 = vmatmul.mubr.bf16.gmra.mrb[0].mxu0 %v2160
    %v2290 = vpop.f32.mrb[0].mxu0
    %v2291 = vadd.f32 0.0, %v2290
    %v2292 = vpop.f32.mrb[0].mxu0
    %v2293 = vpop.f32.mrb[0].mxu0
    %v2294 = vadd.f32 0.0, %v2293
    %v2295 = vpop.f32.mrb[0].mxu0
    %2296 = vmatprep.mubr.bf16.mxu0 0
    %2297 = vmatmul.mubr.bf16.gmra.mrb[0].mxu0 %v2161
    %v2298 = vpop.f32.mrb[0].mxu0
    %v2299 = vadd.f32 0.0, %v2298
    %v2300 = vpop.f32.mrb[0].mxu0
    %v2301 = vpop.f32.mrb[0].mxu0
    %v2302 = vadd.f32 0.0, %v2301
    %v2303 = vpop.f32.mrb[0].mxu0
    %2304 = vmatprep.mubr.bf16.mxu0 0
    %2305 = vmatmul.mubr.bf16.gmra.mrb[0].mxu0 %v2162
    %v2306 = vpop.f32.mrb[0].mxu0
    %v2307 = vadd.f32 0.0, %v2306
    %v2308 = vpop.f32.mrb[0].mxu0
    %v2309 = vpop.f32.mrb[0].mxu0
    %v2310 = vadd.f32 0.0, %v2309
    %v2311 = vpop.f32.mrb[0].mxu0
    %2312 = vmatprep.mubr.bf16.mxu0 0
    %2313 = vmatmul.mubr.bf16.gmra.mrb[0].mxu0 %v2163
    %v2314 = vpop.f32.mrb[0].mxu0
    %v2315 = vadd.f32 0.0, %v2314
    %v2316 = vpop.f32.mrb[0].mxu0
    %v2317 = vpop.f32.mrb[0].mxu0
    %v2318 = vadd.f32 0.0, %v2317
    %v2319 = vpop.f32.mrb[0].mxu0
    %2320 = vmatprep.mubr.bf16.mxu0 0
    %2321 = vmatmul.mubr.bf16.gmra.mrb[0].mxu0 %v2164
    %v2322 = vpop.f32.mrb[0].mxu0
    %v2323 = vadd.f32 0.0, %v2322
    %v2324 = vpop.f32.mrb[0].mxu0
    %v2325 = vpop.f32.mrb[0].mxu0
    %v2326 = vadd.f32 0.0, %v2325
    %v2327 = vpop.f32.mrb[0].mxu0
    %2328 = vmatprep.mubr.bf16.mxu0 0
    %2329 = vmatmul.mubr.bf16.gmra.mrb[0].mxu0 %v2165
    %v2330 = vpop.f32.mrb[0].mxu0
    %v2331 = vadd.f32 0.0, %v2330
    %v2332 = vpop.f32.mrb[0].mxu0
    %v2333 = vpop.f32.mrb[0].mxu0
    %v2334 = vadd.f32 0.0, %v2333
    %v2335 = vpop.f32.mrb[0].mxu0
    %2336 = vmatprep.mubr.bf16.mxu0 0
    %2337 = vmatmul.mubr.bf16.gmra.mrb[0].mxu0 %v2166
    %v2338 = vpop.f32.mrb[0].mxu0
    %v2339 = vadd.f32 0.0, %v2338
    %v2340 = vpop.f32.mrb[0].mxu0
    %v2341 = vpop.f32.mrb[0].mxu0
    %v2342 = vadd.f32 0.0, %v2341
    %v2343 = vpop.f32.mrb[0].mxu0
    %2344 = vmatprep.mubr.bf16.mxu0 0
    %2345 = vmatmul.mubr.bf16.gmra.mrb[0].mxu0 %v2167
    %v2346 = vpop.f32.mrb[0].mxu0
    %v2347 = vadd.f32 0.0, %v2346
    %v2348 = vpop.f32.mrb[0].mxu0
    %v2349 = vpop.f32.mrb[0].mxu0
    %v2350 = vadd.f32 0.0, %v2349
    %v2351 = vpop.f32.mrb[0].mxu0
    %2352 = vmatprep.mubr.bf16.mxu0 0
    %2353 = vmatmul.mubr.bf16.gmra.mrb[0].mxu0 %v2168
    %v2354 = vpop.f32.mrb[0].mxu0
    %v2355 = vadd.f32 0.0, %v2354
    %v2356 = vpop.f32.mrb[0].mxu0
    %v2357 = vpop.f32.mrb[0].mxu0
    %v2358 = vadd.f32 0.0, %v2357
    %v2359 = vpop.f32.mrb[0].mxu0
    %2360 = vmatprep.mubr.bf16.mxu0 0
    %2361 = vmatmul.mubr.bf16.gmra.mrb[0].mxu0 %v2169
    %v2362 = vpop.f32.mrb[0].mxu0
    %v2363 = vadd.f32 0.0, %v2362
    %v2364 = vpop.f32.mrb[0].mxu0
    %v2365 = vpop.f32.mrb[0].mxu0
    %v2366 = vadd.f32 0.0, %v2365
    %v2367 = vpop.f32.mrb[0].mxu0
    %2368 = vmatprep.mubr.bf16.mxu0 0
    %2369 = vmatmul.mubr.bf16.gmra.mrb[0].mxu0 %v2170
    %v2370 = vpop.f32.mrb[0].mxu0
    %v2371 = vadd.f32 0.0, %v2370
    %v2372 = vpop.f32.mrb[0].mxu0
    %v2373 = vpop.f32.mrb[0].mxu0
    %v2374 = vadd.f32 0.0, %v2373
    %v2375 = vpop.f32.mrb[0].mxu0
    %2376 = vmatprep.mubr.bf16.mxu0 0
    %2377 = vmatmul.mubr.bf16.gmra.mrb[0].mxu0 %v2171
    %v2378 = vpop.f32.mrb[0].mxu0
    %v2379 = vadd.f32 0.0, %v2378
    %v2380 = vpop.f32.mrb[0].mxu0
    %v2381 = vpop.f32.mrb[0].mxu0
    %v2382 = vadd.f32 0.0, %v2381
    %v2383 = vpop.f32.mrb[0].mxu0
    %2384 = vmatprep.mubr.bf16.mxu0 0
    %2385 = vmatmul.mubr.bf16.gmra.mrb[0].mxu0 %v2172
    %v2386 = vpop.f32.mrb[0].mxu0
    %v2387 = vadd.f32 0.0, %v2386
    %v2388 = vpop.f32.mrb[0].mxu0
    %v2389 = vpop.f32.mrb[0].mxu0
    %v2390 = vadd.f32 0.0, %v2389
    %v2391 = vpop.f32.mrb[0].mxu0
    %2392 = vmatprep.mubr.bf16.mxu0 0
    %2393 = vmatmul.mubr.bf16.gmra.mrb[0].mxu0 %v2173
    %v2394 = vpop.f32.mrb[0].mxu0
    %v2395 = vadd.f32 0.0, %v2394
    %v2396 = vpop.f32.mrb[0].mxu0
    %v2397 = vpop.f32.mrb[0].mxu0
    %v2398 = vadd.f32 0.0, %v2397
    %v2399 = vpop.f32.mrb[0].mxu0
    %2400 = vmatprep.mubr.bf16.mxu0 0
    %2401 = vmatmul.mubr.bf16.gmra.mrb[0].mxu0 %v2174
    %v2402 = vpop.f32.mrb[0].mxu0
    %v2403 = vadd.f32 0.0, %v2402
    %v2404 = vpop.f32.mrb[0].mxu0
    %v2405 = vpop.f32.mrb[0].mxu0
    %v2406 = vadd.f32 0.0, %v2405
    %v2407 = vpop.f32.mrb[0].mxu0
    %2408 = vmatprep.mubr.bf16.mxu0 0
    %2409 = vmatmul.mubr.bf16.gmra.mrb[0].mxu0 %v2175
    %v2410 = vpop.f32.mrb[0].mxu0
    %v2411 = vadd.f32 0.0, %v2410
    %v2412 = vpop.f32.mrb[0].mxu0
    %v2413 = vpop.f32.mrb[0].mxu0
    %v2414 = vadd.f32 0.0, %v2413
    %v2415 = vpop.f32.mrb[0].mxu0
    %2416 = vmatprep.mubr.bf16.mxu0 0
    %2417 = vmatmul.mubr.bf16.gmra.mrb[0].mxu0 %v2176
    %v2418 = vpop.f32.mrb[0].mxu0
    %v2419 = vadd.f32 0.0, %v2418
    %v2420 = vpop.f32.mrb[0].mxu0
    %v2421 = vpop.f32.mrb[0].mxu0
    %v2422 = vadd.f32 0.0, %v2421
    %v2423 = vpop.f32.mrb[0].mxu0
    %2424 = vmatprep.mubr.bf16.mxu0 0
    %2425 = vmatmul.mubr.bf16.gmra.mrb[0].mxu0 %v2177
    %v2426 = vpop.f32.mrb[0].mxu0
    %v2427 = vadd.f32 0.0, %v2426
    %v2428 = vpop.f32.mrb[0].mxu0
    %v2429 = vpop.f32.mrb[0].mxu0
    %v2430 = vadd.f32 0.0, %v2429
    %v2431 = vpop.f32.mrb[0].mxu0
    %2432 = vmatprep.mubr.bf16.mxu0 0
    %2433 = vmatmul.mubr.bf16.gmra.mrb[0].mxu0 %v2178
    %v2434 = vpop.f32.mrb[0].mxu0
    %v2435 = vadd.f32 0.0, %v2434
    %v2436 = vpop.f32.mrb[0].mxu0
    %v2437 = vpop.f32.mrb[0].mxu0
    %v2438 = vadd.f32 0.0, %v2437
    %v2439 = vpop.f32.mrb[0].mxu0
    %2440 = vmatprep.mubr.bf16.mxu0 0
    %2441 = vmatmul.mubr.bf16.gmra.mrb[0].mxu0 %v2179
    %v2442 = vpop.f32.mrb[0].mxu0
    %v2443 = vadd.f32 0.0, %v2442
    %v2444 = vpop.f32.mrb[0].mxu0
    %v2445 = vpop.f32.mrb[0].mxu0
    %v2446 = vadd.f32 0.0, %v2445
    %v2447 = vpop.f32.mrb[0].mxu0
    %2448 = vmatprep.mubr.bf16.mxu0 0
    %2449 = vmatmul.mubr.bf16.gmra.mrb[0].mxu0 %v2180
    %v2450 = vpop.f32.mrb[0].mxu0
    %v2451 = vadd.f32 0.0, %v2450
    %v2452 = vpop.f32.mrb[0].mxu0
    %v2453 = vpop.f32.mrb[0].mxu0
    %v2454 = vadd.f32 0.0, %v2453
    %v2455 = vpop.f32.mrb[0].mxu0
    %2456 = vmatprep.mubr.bf16.mxu0 0
    %2457 = vmatmul.mubr.bf16.gmra.mrb[0].mxu0 %v2181
    %v2458 = vpop.f32.mrb[0].mxu0
    %v2459 = vadd.f32 0.0, %v2458
    %v2460 = vpop.f32.mrb[0].mxu0
    %v2461 = vpop.f32.mrb[0].mxu0
    %v2462 = vadd.f32 0.0, %v2461
    %v2463 = vpop.f32.mrb[0].mxu0
    %2464 = vmatprep.mubr.bf16.mxu0 0
    %2465 = vmatmul.mubr.bf16.gmra.mrb[0].mxu0 %v2182
    %v2466 = vpop.f32.mrb[0].mxu0
    %v2467 = vadd.f32 0.0, %v2466
    %v2468 = vpop.f32.mrb[0].mxu0
    %v2469 = vpop.f32.mrb[0].mxu0
    %v2470 = vadd.f32 0.0, %v2469
    %v2471 = vpop.f32.mrb[0].mxu0
    %2472 = vmatprep.mubr.bf16.mxu0 0
    %2473 = vmatmul.mubr.bf16.gmra.mrb[0].mxu0 %v2183
    %v2474 = vpop.f32.mrb[0].mxu0
    %v2475 = vadd.f32 0.0, %v2474
    %v2476 = vpop.f32.mrb[0].mxu0
    %v2477 = vpop.f32.mrb[0].mxu0
    %v2478 = vadd.f32 0.0, %v2477
    %v2479 = vpop.f32.mrb[0].mxu0
    %2480 = vmatprep.mubr.bf16.mxu0 0
    %2481 = vmatmul.mubr.bf16.gmra.mrb[0].mxu0 %v2184
    %v2482 = vpop.f32.mrb[0].mxu0
    %v2483 = vadd.f32 0.0, %v2482
    %v2484 = vpop.f32.mrb[0].mxu0
    %v2485 = vpop.f32.mrb[0].mxu0
    %v2486 = vadd.f32 0.0, %v2485
    %v2487 = vpop.f32.mrb[0].mxu0
    %2488 = vmatprep.mubr.bf16.mxu0 0
    %2489 = vmatmul.mubr.bf16.gmra.mrb[0].mxu0 %v2185
    %v2490 = vpop.f32.mrb[0].mxu0
    %v2491 = vadd.f32 0.0, %v2490
    %v2492 = vpop.f32.mrb[0].mxu0
    %v2493 = vpop.f32.mrb[0].mxu0
    %v2494 = vadd.f32 0.0, %v2493
    %v2495 = vpop.f32.mrb[0].mxu0
    %2496 = vmatprep.mubr.bf16.mxu0 0
    %2497 = vmatmul.mubr.bf16.gmra.mrb[0].mxu0 %v2186
    %v2498 = vpop.f32.mrb[0].mxu0
    %v2499 = vadd.f32 0.0, %v2498
    %v2500 = vpop.f32.mrb[0].mxu0
    %v2501 = vpop.f32.mrb[0].mxu0
    %v2502 = vadd.f32 0.0, %v2501
    %v2503 = vpop.f32.mrb[0].mxu0
    %2504 = vmatprep.mubr.bf16.mxu0 0
    %2505 = vmatmul.mubr.bf16.gmra.mrb[0].mxu0 %v2187
    %v2506 = vpop.f32.mrb[0].mxu0
    %v2507 = vadd.f32 0.0, %v2506
    %v2508 = vpop.f32.mrb[0].mxu0
    %v2509 = vpop.f32.mrb[0].mxu0
    %v2510 = vadd.f32 0.0, %v2509
    %v2511 = vpop.f32.mrb[0].mxu0
    %2512 = vmatprep.mubr.bf16.mxu0 0
    %2513 = vmatmul.mubr.bf16.gmra.mrb[0].mxu0 %v2188
    %v2514 = vpop.f32.mrb[0].mxu0
    %v2515 = vadd.f32 0.0, %v2514
    %v2516 = vpop.f32.mrb[0].mxu0
    %v2517 = vpop.f32.mrb[0].mxu0
    %v2518 = vadd.f32 0.0, %v2517
    %v2519 = vpop.f32.mrb[0].mxu0
    %2520 = vmatprep.mubr.bf16.mxu0 0
    %2521 = vmatmul.mubr.bf16.gmra.mrb[0].mxu0 %v2189
    %v2522 = vpop.f32.mrb[0].mxu0
    %v2523 = vadd.f32 0.0, %v2522
    %v2524 = vpop.f32.mrb[0].mxu0
    %v2525 = vpop.f32.mrb[0].mxu0
    %v2526 = vadd.f32 0.0, %v2525
    %v2527 = vpop.f32.mrb[0].mxu0
    %2528 = vmatprep.mubr.bf16.mxu0 0
    %2529 = vmatmul.mubr.bf16.gmra.mrb[0].mxu0 %v2190
    %v2530 = vpop.f32.mrb[0].mxu0
    %v2531 = vadd.f32 0.0, %v2530
    %v2532 = vpop.f32.mrb[0].mxu0
    %v2533 = vpop.f32.mrb[0].mxu0
    %v2534 = vadd.f32 0.0, %v2533
    %v2535 = vpop.f32.mrb[0].mxu0
    %2536 = vmatprep.mubr.bf16.mxu0 0
    %2537 = vmatmul.mubr.bf16.gmra.mrb[0].mxu0 %v2191
    %v2538 = vpop.f32.mrb[0].mxu0
    %v2539 = vadd.f32 0.0, %v2538
    %v2540 = vpop.f32.mrb[0].mxu0
    %v2541 = vpop.f32.mrb[0].mxu0
    %v2542 = vadd.f32 0.0, %v2541
    %v2543 = vpop.f32.mrb[0].mxu0
    %2544 = vdwg.mxu0
    %v2545 = vpack.c.bf16 %v2294, %v2291
    %v2546 = vpack.c.bf16 %v2302, %v2299
    %v2547 = vpack.c.bf16 %v2310, %v2307
    %v2548 = vpack.c.bf16 %v2318, %v2315
    %v2549 = vpack.c.bf16 %v2326, %v2323
    %v2550 = vpack.c.bf16 %v2334, %v2331
    %v2551 = vpack.c.bf16 %v2342, %v2339
    %v2552 = vpack.c.bf16 %v2350, %v2347
    %v2553 = vpack.c.bf16 %v2358, %v2355
    %v2554 = vpack.c.bf16 %v2366, %v2363
    %v2555 = vpack.c.bf16 %v2374, %v2371
    %v2556 = vpack.c.bf16 %v2382, %v2379
    %v2557 = vpack.c.bf16 %v2390, %v2387
    %v2558 = vpack.c.bf16 %v2398, %v2395
    %v2559 = vpack.c.bf16 %v2406, %v2403
    %v2560 = vpack.c.bf16 %v2414, %v2411
    %v2561 = vpack.c.bf16 %v2422, %v2419
    %v2562 = vpack.c.bf16 %v2430, %v2427
    %v2563 = vpack.c.bf16 %v2438, %v2435
    %v2564 = vpack.c.bf16 %v2446, %v2443
    %v2565 = vpack.c.bf16 %v2454, %v2451
    %v2566 = vpack.c.bf16 %v2462, %v2459
    %v2567 = vpack.c.bf16 %v2470, %v2467
    %v2568 = vpack.c.bf16 %v2478, %v2475
    %v2569 = vpack.c.bf16 %v2486, %v2483
    %v2570 = vpack.c.bf16 %v2494, %v2491
    %v2571 = vpack.c.bf16 %v2502, %v2499
    %v2572 = vpack.c.bf16 %v2510, %v2507
    %v2573 = vpack.c.bf16 %v2518, %v2515
    %v2574 = vpack.c.bf16 %v2526, %v2523
    %v2575 = vpack.c.bf16 %v2534, %v2531
    %v2576 = vpack.c.bf16 %v2542, %v2539
    %v2577 = vld [vmem:[%s6] sm:$0x1]
    %v2579 = vlaneseq
    %v2580 = vshrl.u32 %v2579, 7
    %v2581 = vsub.s32 0, %v2580
    %v2582 = vrot.slane %v2577, %v2581
    %2584 = vmatprep.subr.bf16.mxu0 0
    %2585 = vmatpush1.bf16.msra.mxu0 %v2545
    %2586 = vmatprep.subr.bf16.mxu0 0
    %2587 = vmatpush1.bf16.msra.mxu0 %v2546
    %2588 = vmatprep.subr.bf16.mxu0 0
    %2589 = vmatpush1.bf16.msra.mxu0 %v2547
    %2590 = vmatprep.subr.bf16.mxu0 0
    %2591 = vmatpush1.bf16.msra.mxu0 %v2548
    %2592 = vmatprep.subr.bf16.mxu0 0
    %2593 = vmatpush1.bf16.msra.mxu0 %v2549
    %2594 = vmatprep.subr.bf16.mxu0 0
    %2595 = vmatpush1.bf16.msra.mxu0 %v2550
    %2596 = vmatprep.subr.bf16.mxu0 0
    %2597 = vmatpush1.bf16.msra.mxu0 %v2551
    %2598 = vmatprep.subr.bf16.mxu0 0
    %2599 = vmatpush1.bf16.msra.mxu0 %v2552
    %2600 = vmatprep.subr.bf16.mxu0 0
    %2601 = vmatpush1.bf16.msra.mxu0 %v2553
    %2602 = vmatprep.subr.bf16.mxu0 0
    %2603 = vmatpush1.bf16.msra.mxu0 %v2554
    %2604 = vmatprep.subr.bf16.mxu0 0
    %2605 = vmatpush1.bf16.msra.mxu0 %v2555
    %2606 = vmatprep.subr.bf16.mxu0 0
    %2607 = vmatpush1.bf16.msra.mxu0 %v2556
    %2608 = vmatprep.subr.bf16.mxu0 0
    %2609 = vmatpush1.bf16.msra.mxu0 %v2557
    %2610 = vmatprep.subr.bf16.mxu0 0
    %2611 = vmatpush1.bf16.msra.mxu0 %v2558
    %2612 = vmatprep.subr.bf16.mxu0 0
    %2613 = vmatpush1.bf16.msra.mxu0 %v2559
    %2614 = vmatprep.subr.bf16.mxu0 0
    %2615 = vmatpush1.bf16.msra.mxu0 %v2560
    %2616 = vmatprep.mubr.bf16.mxu0 %v1263
    %2617 = vmatmul.mubr.bf16.gmra.mrb[0].mxu0 %v1262
    %v2618 = vpop.f32.mrb[0].mxu0
    %v2619 = vadd.f32 %v2582, %v2618
    %v2620 = vpop.f32.mrb[0].mxu0
    %v2621 = vpop.f32.mrb[0].mxu0
    %v2622 = vadd.f32 %v2582, %v2621
    %v2623 = vpop.f32.mrb[0].mxu0
    %2624 = vmatprep.mubr.bf16.mxu0 %v1267
    %2625 = vmatmul.mubr.bf16.gmra.mrb[0].mxu0 %v1266
    %v2626 = vpop.f32.mrb[0].mxu0
    %v2627 = vadd.f32 %v2582, %v2626
    %v2628 = vpop.f32.mrb[0].mxu0
    %v2629 = vpop.f32.mrb[0].mxu0
    %v2630 = vadd.f32 %v2582, %v2629
    %v2631 = vpop.f32.mrb[0].mxu0
    %2632 = vmatprep.mubr.bf16.mxu0 %v1271
    %2633 = vmatmul.mubr.bf16.gmra.mrb[0].mxu0 %v1270
    %v2634 = vpop.f32.mrb[0].mxu0
    %v2635 = vadd.f32 %v2582, %v2634
    %v2636 = vpop.f32.mrb[0].mxu0
    %v2637 = vpop.f32.mrb[0].mxu0
    %v2638 = vadd.f32 %v2582, %v2637
    %v2639 = vpop.f32.mrb[0].mxu0
    %2640 = vmatprep.mubr.bf16.mxu0 %v1275
    %2641 = vmatmul.mubr.bf16.gmra.mrb[0].mxu0 %v1274
    %v2642 = vpop.f32.mrb[0].mxu0
    %v2643 = vadd.f32 %v2582, %v2642
    %v2644 = vpop.f32.mrb[0].mxu0
    %v2645 = vpop.f32.mrb[0].mxu0
    %v2646 = vadd.f32 %v2582, %v2645
    %v2647 = vpop.f32.mrb[0].mxu0
    %2648 = vmatprep.mubr.bf16.mxu0 %v1279
    %2649 = vmatmul.mubr.bf16.gmra.mrb[0].mxu0 %v1278
    %v2650 = vpop.f32.mrb[0].mxu0
    %v2651 = vadd.f32 %v2582, %v2650
    %v2652 = vpop.f32.mrb[0].mxu0
    %v2653 = vpop.f32.mrb[0].mxu0
    %v2654 = vadd.f32 %v2582, %v2653
    %v2655 = vpop.f32.mrb[0].mxu0
    %2656 = vmatprep.mubr.bf16.mxu0 %v1283
    %2657 = vmatmul.mubr.bf16.gmra.mrb[0].mxu0 %v1282
    %v2658 = vpop.f32.mrb[0].mxu0
    %v2659 = vadd.f32 %v2582, %v2658
    %v2660 = vpop.f32.mrb[0].mxu0
    %v2661 = vpop.f32.mrb[0].mxu0
    %v2662 = vadd.f32 %v2582, %v2661
    %v2663 = vpop.f32.mrb[0].mxu0
    %2664 = vmatprep.mubr.bf16.mxu0 %v1287
    %2665 = vmatmul.mubr.bf16.gmra.mrb[0].mxu0 %v1286
    %v2666 = vpop.f32.mrb[0].mxu0
    %v2667 = vadd.f32 %v2582, %v2666
    %v2668 = vpop.f32.mrb[0].mxu0
    %v2669 = vpop.f32.mrb[0].mxu0
    %v2670 = vadd.f32 %v2582, %v2669
    %v2671 = vpop.f32.mrb[0].mxu0
    %2672 = vmatprep.mubr.bf16.mxu0 %v1291
    %2673 = vmatmul.mubr.bf16.gmra.mrb[0].mxu0 %v1290
    %v2674 = vpop.f32.mrb[0].mxu0
    %v2675 = vadd.f32 %v2582, %v2674
    %v2676 = vpop.f32.mrb[0].mxu0
    %v2677 = vpop.f32.mrb[0].mxu0
    %v2678 = vadd.f32 %v2582, %v2677
    %v2679 = vpop.f32.mrb[0].mxu0
    %2680 = vmatprep.mubr.bf16.mxu0 %v1295
    %2681 = vmatmul.mubr.bf16.gmra.mrb[0].mxu0 %v1294
    %v2682 = vpop.f32.mrb[0].mxu0
    %v2683 = vadd.f32 %v2582, %v2682
    %v2684 = vpop.f32.mrb[0].mxu0
    %v2685 = vpop.f32.mrb[0].mxu0
    %v2686 = vadd.f32 %v2582, %v2685
    %v2687 = vpop.f32.mrb[0].mxu0
    %2688 = vmatprep.mubr.bf16.mxu0 %v1299
    %2689 = vmatmul.mubr.bf16.gmra.mrb[0].mxu0 %v1298
    %v2690 = vpop.f32.mrb[0].mxu0
    %v2691 = vadd.f32 %v2582, %v2690
    %v2692 = vpop.f32.mrb[0].mxu0
    %v2693 = vpop.f32.mrb[0].mxu0
    %v2694 = vadd.f32 %v2582, %v2693
    %v2695 = vpop.f32.mrb[0].mxu0
    %2696 = vmatprep.mubr.bf16.mxu0 %v1303
    %2697 = vmatmul.mubr.bf16.gmra.mrb[0].mxu0 %v1302
    %v2698 = vpop.f32.mrb[0].mxu0
    %v2699 = vadd.f32 %v2582, %v2698
    %v2700 = vpop.f32.mrb[0].mxu0
    %v2701 = vpop.f32.mrb[0].mxu0
    %v2702 = vadd.f32 %v2582, %v2701
    %v2703 = vpop.f32.mrb[0].mxu0
    %2704 = vmatprep.mubr.bf16.mxu0 %v1307
    %2705 = vmatmul.mubr.bf16.gmra.mrb[0].mxu0 %v1306
    %v2706 = vpop.f32.mrb[0].mxu0
    %v2707 = vadd.f32 %v2582, %v2706
    %v2708 = vpop.f32.mrb[0].mxu0
    %v2709 = vpop.f32.mrb[0].mxu0
    %v2710 = vadd.f32 %v2582, %v2709
    %v2711 = vpop.f32.mrb[0].mxu0
    %2712 = vmatprep.mubr.bf16.mxu0 %v1311
    %2713 = vmatmul.mubr.bf16.gmra.mrb[0].mxu0 %v1310
    %v2714 = vpop.f32.mrb[0].mxu0
    %v2715 = vadd.f32 %v2582, %v2714
    %v2716 = vpop.f32.mrb[0].mxu0
    %v2717 = vpop.f32.mrb[0].mxu0
    %v2718 = vadd.f32 %v2582, %v2717
    %v2719 = vpop.f32.mrb[0].mxu0
    %2720 = vmatprep.mubr.bf16.mxu0 %v1315
    %2721 = vmatmul.mubr.bf16.gmra.mrb[0].mxu0 %v1314
    %v2722 = vpop.f32.mrb[0].mxu0
    %v2723 = vadd.f32 %v2582, %v2722
    %v2724 = vpop.f32.mrb[0].mxu0
    %v2725 = vpop.f32.mrb[0].mxu0
    %v2726 = vadd.f32 %v2582, %v2725
    %v2727 = vpop.f32.mrb[0].mxu0
    %2728 = vmatprep.mubr.bf16.mxu0 %v1319
    %2729 = vmatmul.mubr.bf16.gmra.mrb[0].mxu0 %v1318
    %v2730 = vpop.f32.mrb[0].mxu0
    %v2731 = vadd.f32 %v2582, %v2730
    %v2732 = vpop.f32.mrb[0].mxu0
    %v2733 = vpop.f32.mrb[0].mxu0
    %v2734 = vadd.f32 %v2582, %v2733
    %v2735 = vpop.f32.mrb[0].mxu0
    %2736 = vmatprep.mubr.bf16.mxu0 %v1323
    %2737 = vmatmul.mubr.bf16.gmra.mrb[0].mxu0 %v1322
    %v2738 = vpop.f32.mrb[0].mxu0
    %v2739 = vadd.f32 %v2582, %v2738
    %v2740 = vpop.f32.mrb[0].mxu0
    %v2741 = vpop.f32.mrb[0].mxu0
    %v2742 = vadd.f32 %v2582, %v2741
    %v2743 = vpop.f32.mrb[0].mxu0
    %2744 = vmatprep.mubr.bf16.mxu0 %v1327
    %2745 = vmatmul.mubr.bf16.gmra.mrb[0].mxu0 %v1326
    %v2746 = vpop.f32.mrb[0].mxu0
    %v2747 = vadd.f32 %v2582, %v2746
    %v2748 = vpop.f32.mrb[0].mxu0
    %v2749 = vpop.f32.mrb[0].mxu0
    %v2750 = vadd.f32 %v2582, %v2749
    %v2751 = vpop.f32.mrb[0].mxu0
    %2752 = vmatprep.mubr.bf16.mxu0 %v1331
    %2753 = vmatmul.mubr.bf16.gmra.mrb[0].mxu0 %v1330
    %v2754 = vpop.f32.mrb[0].mxu0
    %v2755 = vadd.f32 %v2582, %v2754
    %v2756 = vpop.f32.mrb[0].mxu0
    %v2757 = vpop.f32.mrb[0].mxu0
    %v2758 = vadd.f32 %v2582, %v2757
    %v2759 = vpop.f32.mrb[0].mxu0
    %2760 = vmatprep.mubr.bf16.mxu0 %v1335
    %2761 = vmatmul.mubr.bf16.gmra.mrb[0].mxu0 %v1334
    %v2762 = vpop.f32.mrb[0].mxu0
    %v2763 = vadd.f32 %v2582, %v2762
    %v2764 = vpop.f32.mrb[0].mxu0
    %v2765 = vpop.f32.mrb[0].mxu0
    %v2766 = vadd.f32 %v2582, %v2765
    %v2767 = vpop.f32.mrb[0].mxu0
    %2768 = vmatprep.mubr.bf16.mxu0 %v1339
    %2769 = vmatmul.mubr.bf16.gmra.mrb[0].mxu0 %v1338
    %v2770 = vpop.f32.mrb[0].mxu0
    %v2771 = vadd.f32 %v2582, %v2770
    %v2772 = vpop.f32.mrb[0].mxu0
    %v2773 = vpop.f32.mrb[0].mxu0
    %v2774 = vadd.f32 %v2582, %v2773
    %v2775 = vpop.f32.mrb[0].mxu0
    %2776 = vmatprep.mubr.bf16.mxu0 %v1343
    %2777 = vmatmul.mubr.bf16.gmra.mrb[0].mxu0 %v1342
    %v2778 = vpop.f32.mrb[0].mxu0
    %v2779 = vadd.f32 %v2582, %v2778
    %v2780 = vpop.f32.mrb[0].mxu0
    %v2781 = vpop.f32.mrb[0].mxu0
    %v2782 = vadd.f32 %v2582, %v2781
    %v2783 = vpop.f32.mrb[0].mxu0
    %2784 = vmatprep.mubr.bf16.mxu0 %v1347
    %2785 = vmatmul.mubr.bf16.gmra.mrb[0].mxu0 %v1346
    %v2786 = vpop.f32.mrb[0].mxu0
    %v2787 = vadd.f32 %v2582, %v2786
    %v2788 = vpop.f32.mrb[0].mxu0
    %v2789 = vpop.f32.mrb[0].mxu0
    %v2790 = vadd.f32 %v2582, %v2789
    %v2791 = vpop.f32.mrb[0].mxu0
    %2792 = vmatprep.mubr.bf16.mxu0 %v1351
    %2793 = vmatmul.mubr.bf16.gmra.mrb[0].mxu0 %v1350
    %v2794 = vpop.f32.mrb[0].mxu0
    %v2795 = vadd.f32 %v2582, %v2794
    %v2796 = vpop.f32.mrb[0].mxu0
    %v2797 = vpop.f32.mrb[0].mxu0
    %v2798 = vadd.f32 %v2582, %v2797
    %v2799 = vpop.f32.mrb[0].mxu0
    %2800 = vmatprep.mubr.bf16.mxu0 %v1355
    %2801 = vmatmul.mubr.bf16.gmra.mrb[0].mxu0 %v1354
    %v2802 = vpop.f32.mrb[0].mxu0
    %v2803 = vadd.f32 %v2582, %v2802
    %v2804 = vpop.f32.mrb[0].mxu0
    %v2805 = vpop.f32.mrb[0].mxu0
    %v2806 = vadd.f32 %v2582, %v2805
    %v2807 = vpop.f32.mrb[0].mxu0
    %2808 = vmatprep.mubr.bf16.mxu0 %v1359
    %2809 = vmatmul.mubr.bf16.gmra.mrb[0].mxu0 %v1358
    %v2810 = vpop.f32.mrb[0].mxu0
    %v2811 = vadd.f32 %v2582, %v2810
    %v2812 = vpop.f32.mrb[0].mxu0
    %v2813 = vpop.f32.mrb[0].mxu0
    %v2814 = vadd.f32 %v2582, %v2813
    %v2815 = vpop.f32.mrb[0].mxu0
    %2816 = vmatprep.mubr.bf16.mxu0 %v1363
    %2817 = vmatmul.mubr.bf16.gmra.mrb[0].mxu0 %v1362
    %v2818 = vpop.f32.mrb[0].mxu0
    %v2819 = vadd.f32 %v2582, %v2818
    %v2820 = vpop.f32.mrb[0].mxu0
    %v2821 = vpop.f32.mrb[0].mxu0
    %v2822 = vadd.f32 %v2582, %v2821
    %v2823 = vpop.f32.mrb[0].mxu0
    %2824 = vmatprep.mubr.bf16.mxu0 %v1367
    %2825 = vmatmul.mubr.bf16.gmra.mrb[0].mxu0 %v1366
    %v2826 = vpop.f32.mrb[0].mxu0
    %v2827 = vadd.f32 %v2582, %v2826
    %v2828 = vpop.f32.mrb[0].mxu0
    %v2829 = vpop.f32.mrb[0].mxu0
    %v2830 = vadd.f32 %v2582, %v2829
    %v2831 = vpop.f32.mrb[0].mxu0
    %2832 = vmatprep.mubr.bf16.mxu0 %v1371
    %2833 = vmatmul.mubr.bf16.gmra.mrb[0].mxu0 %v1370
    %v2834 = vpop.f32.mrb[0].mxu0
    %v2835 = vadd.f32 %v2582, %v2834
    %v2836 = vpop.f32.mrb[0].mxu0
    %v2837 = vpop.f32.mrb[0].mxu0
    %v2838 = vadd.f32 %v2582, %v2837
    %v2839 = vpop.f32.mrb[0].mxu0
    %2840 = vmatprep.mubr.bf16.mxu0 %v1375
    %2841 = vmatmul.mubr.bf16.gmra.mrb[0].mxu0 %v1374
    %v2842 = vpop.f32.mrb[0].mxu0
    %v2843 = vadd.f32 %v2582, %v2842
    %v2844 = vpop.f32.mrb[0].mxu0
    %v2845 = vpop.f32.mrb[0].mxu0
    %v2846 = vadd.f32 %v2582, %v2845
    %v2847 = vpop.f32.mrb[0].mxu0
    %2848 = vmatprep.mubr.bf16.mxu0 %v1379
    %2849 = vmatmul.mubr.bf16.gmra.mrb[0].mxu0 %v1378
    %v2850 = vpop.f32.mrb[0].mxu0
    %v2851 = vadd.f32 %v2582, %v2850
    %v2852 = vpop.f32.mrb[0].mxu0
    %v2853 = vpop.f32.mrb[0].mxu0
    %v2854 = vadd.f32 %v2582, %v2853
    %v2855 = vpop.f32.mrb[0].mxu0
    %2856 = vmatprep.mubr.bf16.mxu0 %v1383
    %2857 = vmatmul.mubr.bf16.gmra.mrb[0].mxu0 %v1382
    %v2858 = vpop.f32.mrb[0].mxu0
    %v2859 = vadd.f32 %v2582, %v2858
    %v2860 = vpop.f32.mrb[0].mxu0
    %v2861 = vpop.f32.mrb[0].mxu0
    %v2862 = vadd.f32 %v2582, %v2861
    %v2863 = vpop.f32.mrb[0].mxu0
    %2864 = vmatprep.mubr.bf16.mxu0 %v1387
    %2865 = vmatmul.mubr.bf16.gmra.mrb[0].mxu0 %v1386
    %v2866 = vpop.f32.mrb[0].mxu0
    %v2867 = vadd.f32 %v2582, %v2866
    %v2868 = vpop.f32.mrb[0].mxu0
    %v2869 = vpop.f32.mrb[0].mxu0
    %v2870 = vadd.f32 %v2582, %v2869
    %v2871 = vpop.f32.mrb[0].mxu0
    %2872 = vdwg.mxu0
    %2873 = vmatprep.subr.bf16.mxu0 0
    %2874 = vmatpush1.bf16.msra.mxu0 %v2561
    %2875 = vmatprep.subr.bf16.mxu0 0
    %2876 = vmatpush1.bf16.msra.mxu0 %v2562
    %2877 = vmatprep.subr.bf16.mxu0 0
    %2878 = vmatpush1.bf16.msra.mxu0 %v2563
    %2879 = vmatprep.subr.bf16.mxu0 0
    %2880 = vmatpush1.bf16.msra.mxu0 %v2564
    %2881 = vmatprep.subr.bf16.mxu0 0
    %2882 = vmatpush1.bf16.msra.mxu0 %v2565
    %2883 = vmatprep.subr.bf16.mxu0 0
    %2884 = vmatpush1.bf16.msra.mxu0 %v2566
    %2885 = vmatprep.subr.bf16.mxu0 0
    %2886 = vmatpush1.bf16.msra.mxu0 %v2567
    %2887 = vmatprep.subr.bf16.mxu0 0
    %2888 = vmatpush1.bf16.msra.mxu0 %v2568
    %2889 = vmatprep.subr.bf16.mxu0 0
    %2890 = vmatpush1.bf16.msra.mxu0 %v2569
    %2891 = vmatprep.subr.bf16.mxu0 0
    %2892 = vmatpush1.bf16.msra.mxu0 %v2570
    %2893 = vmatprep.subr.bf16.mxu0 0
    %2894 = vmatpush1.bf16.msra.mxu0 %v2571
    %2895 = vmatprep.subr.bf16.mxu0 0
    %2896 = vmatpush1.bf16.msra.mxu0 %v2572
    %2897 = vmatprep.subr.bf16.mxu0 0
    %2898 = vmatpush1.bf16.msra.mxu0 %v2573
    %2899 = vmatprep.subr.bf16.mxu0 0
    %2900 = vmatpush1.bf16.msra.mxu0 %v2574
    %2901 = vmatprep.subr.bf16.mxu0 0
    %2902 = vmatpush1.bf16.msra.mxu0 %v2575
    %2903 = vmatprep.subr.bf16.mxu0 0
    %2904 = vmatpush1.bf16.msra.mxu0 %v2576
    %2905 = vmatprep.mubr.bf16.mxu0 %v1265
    %2906 = vmatmul.mubr.bf16.gmra.mrb[0].mxu0 %v1264
    %v2907 = vpop.f32.mrb[0].mxu0
    %v2908 = vadd.f32 %v2619, %v2907
    %v2909 = vpop.f32.mrb[0].mxu0
    %v2910 = vpop.f32.mrb[0].mxu0
    %v2911 = vadd.f32 %v2622, %v2910
    %v2912 = vpop.f32.mrb[0].mxu0
    %2913 = vmatprep.mubr.bf16.mxu0 %v1269
    %2914 = vmatmul.mubr.bf16.gmra.mrb[0].mxu0 %v1268
    %v2915 = vpop.f32.mrb[0].mxu0
    %v2916 = vadd.f32 %v2627, %v2915
    %v2917 = vpop.f32.mrb[0].mxu0
    %v2918 = vpop.f32.mrb[0].mxu0
    %v2919 = vadd.f32 %v2630, %v2918
    %v2920 = vpop.f32.mrb[0].mxu0
    %2921 = vmatprep.mubr.bf16.mxu0 %v1273
    %2922 = vmatmul.mubr.bf16.gmra.mrb[0].mxu0 %v1272
    %v2923 = vpop.f32.mrb[0].mxu0
    %v2924 = vadd.f32 %v2635, %v2923
    %v2925 = vpop.f32.mrb[0].mxu0
    %v2926 = vpop.f32.mrb[0].mxu0
    %v2927 = vadd.f32 %v2638, %v2926
    %v2928 = vpop.f32.mrb[0].mxu0
    %2929 = vmatprep.mubr.bf16.mxu0 %v1277
    %2930 = vmatmul.mubr.bf16.gmra.mrb[0].mxu0 %v1276
    %v2931 = vpop.f32.mrb[0].mxu0
    %v2932 = vadd.f32 %v2643, %v2931
    %v2933 = vpop.f32.mrb[0].mxu0
    %v2934 = vpop.f32.mrb[0].mxu0
    %v2935 = vadd.f32 %v2646, %v2934
    %v2936 = vpop.f32.mrb[0].mxu0
    %2937 = vmatprep.mubr.bf16.mxu0 %v1281
    %2938 = vmatmul.mubr.bf16.gmra.mrb[0].mxu0 %v1280
    %v2939 = vpop.f32.mrb[0].mxu0
    %v2940 = vadd.f32 %v2651, %v2939
    %v2941 = vpop.f32.mrb[0].mxu0
    %v2942 = vpop.f32.mrb[0].mxu0
    %v2943 = vadd.f32 %v2654, %v2942
    %v2944 = vpop.f32.mrb[0].mxu0
    %2945 = vmatprep.mubr.bf16.mxu0 %v1285
    %2946 = vmatmul.mubr.bf16.gmra.mrb[0].mxu0 %v1284
    %v2947 = vpop.f32.mrb[0].mxu0
    %v2948 = vadd.f32 %v2659, %v2947
    %v2949 = vpop.f32.mrb[0].mxu0
    %v2950 = vpop.f32.mrb[0].mxu0
    %v2951 = vadd.f32 %v2662, %v2950
    %v2952 = vpop.f32.mrb[0].mxu0
    %2953 = vmatprep.mubr.bf16.mxu0 %v1289
    %2954 = vmatmul.mubr.bf16.gmra.mrb[0].mxu0 %v1288
    %v2955 = vpop.f32.mrb[0].mxu0
    %v2956 = vadd.f32 %v2667, %v2955
    %v2957 = vpop.f32.mrb[0].mxu0
    %v2958 = vpop.f32.mrb[0].mxu0
    %v2959 = vadd.f32 %v2670, %v2958
    %v2960 = vpop.f32.mrb[0].mxu0
    %2961 = vmatprep.mubr.bf16.mxu0 %v1293
    %2962 = vmatmul.mubr.bf16.gmra.mrb[0].mxu0 %v1292
    %v2963 = vpop.f32.mrb[0].mxu0
    %v2964 = vadd.f32 %v2675, %v2963
    %v2965 = vpop.f32.mrb[0].mxu0
    %v2966 = vpop.f32.mrb[0].mxu0
    %v2967 = vadd.f32 %v2678, %v2966
    %v2968 = vpop.f32.mrb[0].mxu0
    %2969 = vmatprep.mubr.bf16.mxu0 %v1297
    %2970 = vmatmul.mubr.bf16.gmra.mrb[0].mxu0 %v1296
    %v2971 = vpop.f32.mrb[0].mxu0
    %v2972 = vadd.f32 %v2683, %v2971
    %v2973 = vpop.f32.mrb[0].mxu0
    %v2974 = vpop.f32.mrb[0].mxu0
    %v2975 = vadd.f32 %v2686, %v2974
    %v2976 = vpop.f32.mrb[0].mxu0
    %2977 = vmatprep.mubr.bf16.mxu0 %v1301
    %2978 = vmatmul.mubr.bf16.gmra.mrb[0].mxu0 %v1300
    %v2979 = vpop.f32.mrb[0].mxu0
    %v2980 = vadd.f32 %v2691, %v2979
    %v2981 = vpop.f32.mrb[0].mxu0
    %v2982 = vpop.f32.mrb[0].mxu0
    %v2983 = vadd.f32 %v2694, %v2982
    %v2984 = vpop.f32.mrb[0].mxu0
    %2985 = vmatprep.mubr.bf16.mxu0 %v1305
    %2986 = vmatmul.mubr.bf16.gmra.mrb[0].mxu0 %v1304
    %v2987 = vpop.f32.mrb[0].mxu0
    %v2988 = vadd.f32 %v2699, %v2987
    %v2989 = vpop.f32.mrb[0].mxu0
    %v2990 = vpop.f32.mrb[0].mxu0
    %v2991 = vadd.f32 %v2702, %v2990
    %v2992 = vpop.f32.mrb[0].mxu0
    %2993 = vmatprep.mubr.bf16.mxu0 %v1309
    %2994 = vmatmul.mubr.bf16.gmra.mrb[0].mxu0 %v1308
    %v2995 = vpop.f32.mrb[0].mxu0
    %v2996 = vadd.f32 %v2707, %v2995
    %v2997 = vpop.f32.mrb[0].mxu0
    %v2998 = vpop.f32.mrb[0].mxu0
    %v2999 = vadd.f32 %v2710, %v2998
    %v3000 = vpop.f32.mrb[0].mxu0
    %3001 = vmatprep.mubr.bf16.mxu0 %v1313
    %3002 = vmatmul.mubr.bf16.gmra.mrb[0].mxu0 %v1312
    %v3003 = vpop.f32.mrb[0].mxu0
    %v3004 = vadd.f32 %v2715, %v3003
    %v3005 = vpop.f32.mrb[0].mxu0
    %v3006 = vpop.f32.mrb[0].mxu0
    %v3007 = vadd.f32 %v2718, %v3006
    %v3008 = vpop.f32.mrb[0].mxu0
    %3009 = vmatprep.mubr.bf16.mxu0 %v1317
    %3010 = vmatmul.mubr.bf16.gmra.mrb[0].mxu0 %v1316
    %v3011 = vpop.f32.mrb[0].mxu0
    %v3012 = vadd.f32 %v2723, %v3011
    %v3013 = vpop.f32.mrb[0].mxu0
    %v3014 = vpop.f32.mrb[0].mxu0
    %v3015 = vadd.f32 %v2726, %v3014
    %v3016 = vpop.f32.mrb[0].mxu0
    %3017 = vmatprep.mubr.bf16.mxu0 %v1321
    %3018 = vmatmul.mubr.bf16.gmra.mrb[0].mxu0 %v1320
    %v3019 = vpop.f32.mrb[0].mxu0
    %v3020 = vadd.f32 %v2731, %v3019
    %v3021 = vpop.f32.mrb[0].mxu0
    %v3022 = vpop.f32.mrb[0].mxu0
    %v3023 = vadd.f32 %v2734, %v3022
    %v3024 = vpop.f32.mrb[0].mxu0
    %3025 = vmatprep.mubr.bf16.mxu0 %v1325
    %3026 = vmatmul.mubr.bf16.gmra.mrb[0].mxu0 %v1324
    %v3027 = vpop.f32.mrb[0].mxu0
    %v3028 = vadd.f32 %v2739, %v3027
    %v3029 = vpop.f32.mrb[0].mxu0
    %v3030 = vpop.f32.mrb[0].mxu0
    %v3031 = vadd.f32 %v2742, %v3030
    %v3032 = vpop.f32.mrb[0].mxu0
    %3033 = vmatprep.mubr.bf16.mxu0 %v1329
    %3034 = vmatmul.mubr.bf16.gmra.mrb[0].mxu0 %v1328
    %v3035 = vpop.f32.mrb[0].mxu0
    %v3036 = vadd.f32 %v2747, %v3035
    %v3037 = vpop.f32.mrb[0].mxu0
    %v3038 = vpop.f32.mrb[0].mxu0
    %v3039 = vadd.f32 %v2750, %v3038
    %v3040 = vpop.f32.mrb[0].mxu0
    %3041 = vmatprep.mubr.bf16.mxu0 %v1333
    %3042 = vmatmul.mubr.bf16.gmra.mrb[0].mxu0 %v1332
    %v3043 = vpop.f32.mrb[0].mxu0
    %v3044 = vadd.f32 %v2755, %v3043
    %v3045 = vpop.f32.mrb[0].mxu0
    %v3046 = vpop.f32.mrb[0].mxu0
    %v3047 = vadd.f32 %v2758, %v3046
    %v3048 = vpop.f32.mrb[0].mxu0
    %3049 = vmatprep.mubr.bf16.mxu0 %v1337
    %3050 = vmatmul.mubr.bf16.gmra.mrb[0].mxu0 %v1336
    %v3051 = vpop.f32.mrb[0].mxu0
    %v3052 = vadd.f32 %v2763, %v3051
    %v3053 = vpop.f32.mrb[0].mxu0
    %v3054 = vpop.f32.mrb[0].mxu0
    %v3055 = vadd.f32 %v2766, %v3054
    %v3056 = vpop.f32.mrb[0].mxu0
    %3057 = vmatprep.mubr.bf16.mxu0 %v1341
    %3058 = vmatmul.mubr.bf16.gmra.mrb[0].mxu0 %v1340
    %v3059 = vpop.f32.mrb[0].mxu0
    %v3060 = vadd.f32 %v2771, %v3059
    %v3061 = vpop.f32.mrb[0].mxu0
    %v3062 = vpop.f32.mrb[0].mxu0
    %v3063 = vadd.f32 %v2774, %v3062
    %v3064 = vpop.f32.mrb[0].mxu0
    %3065 = vmatprep.mubr.bf16.mxu0 %v1345
    %3066 = vmatmul.mubr.bf16.gmra.mrb[0].mxu0 %v1344
    %v3067 = vpop.f32.mrb[0].mxu0
    %v3068 = vadd.f32 %v2779, %v3067
    %v3069 = vpop.f32.mrb[0].mxu0
    %v3070 = vpop.f32.mrb[0].mxu0
    %v3071 = vadd.f32 %v2782, %v3070
    %v3072 = vpop.f32.mrb[0].mxu0
    %3073 = vmatprep.mubr.bf16.mxu0 %v1349
    %3074 = vmatmul.mubr.bf16.gmra.mrb[0].mxu0 %v1348
    %v3075 = vpop.f32.mrb[0].mxu0
    %v3076 = vadd.f32 %v2787, %v3075
    %v3077 = vpop.f32.mrb[0].mxu0
    %v3078 = vpop.f32.mrb[0].mxu0
    %v3079 = vadd.f32 %v2790, %v3078
    %v3080 = vpop.f32.mrb[0].mxu0
    %3081 = vmatprep.mubr.bf16.mxu0 %v1353
    %3082 = vmatmul.mubr.bf16.gmra.mrb[0].mxu0 %v1352
    %v3083 = vpop.f32.mrb[0].mxu0
    %v3084 = vadd.f32 %v2795, %v3083
    %v3085 = vpop.f32.mrb[0].mxu0
    %v3086 = vpop.f32.mrb[0].mxu0
    %v3087 = vadd.f32 %v2798, %v3086
    %v3088 = vpop.f32.mrb[0].mxu0
    %3089 = vmatprep.mubr.bf16.mxu0 %v1357
    %3090 = vmatmul.mubr.bf16.gmra.mrb[0].mxu0 %v1356
    %v3091 = vpop.f32.mrb[0].mxu0
    %v3092 = vadd.f32 %v2803, %v3091
    %v3093 = vpop.f32.mrb[0].mxu0
    %v3094 = vpop.f32.mrb[0].mxu0
    %v3095 = vadd.f32 %v2806, %v3094
    %v3096 = vpop.f32.mrb[0].mxu0
    %3097 = vmatprep.mubr.bf16.mxu0 %v1361
    %3098 = vmatmul.mubr.bf16.gmra.mrb[0].mxu0 %v1360
    %v3099 = vpop.f32.mrb[0].mxu0
    %v3100 = vadd.f32 %v2811, %v3099
    %v3101 = vpop.f32.mrb[0].mxu0
    %v3102 = vpop.f32.mrb[0].mxu0
    %v3103 = vadd.f32 %v2814, %v3102
    %v3104 = vpop.f32.mrb[0].mxu0
    %3105 = vmatprep.mubr.bf16.mxu0 %v1365
    %3106 = vmatmul.mubr.bf16.gmra.mrb[0].mxu0 %v1364
    %v3107 = vpop.f32.mrb[0].mxu0
    %v3108 = vadd.f32 %v2819, %v3107
    %v3109 = vpop.f32.mrb[0].mxu0
    %v3110 = vpop.f32.mrb[0].mxu0
    %v3111 = vadd.f32 %v2822, %v3110
    %v3112 = vpop.f32.mrb[0].mxu0
    %3113 = vmatprep.mubr.bf16.mxu0 %v1369
    %3114 = vmatmul.mubr.bf16.gmra.mrb[0].mxu0 %v1368
    %v3115 = vpop.f32.mrb[0].mxu0
    %v3116 = vadd.f32 %v2827, %v3115
    %v3117 = vpop.f32.mrb[0].mxu0
    %v3118 = vpop.f32.mrb[0].mxu0
    %v3119 = vadd.f32 %v2830, %v3118
    %v3120 = vpop.f32.mrb[0].mxu0
    %3121 = vmatprep.mubr.bf16.mxu0 %v1373
    %3122 = vmatmul.mubr.bf16.gmra.mrb[0].mxu0 %v1372
    %v3123 = vpop.f32.mrb[0].mxu0
    %v3124 = vadd.f32 %v2835, %v3123
    %v3125 = vpop.f32.mrb[0].mxu0
    %v3126 = vpop.f32.mrb[0].mxu0
    %v3127 = vadd.f32 %v2838, %v3126
    %v3128 = vpop.f32.mrb[0].mxu0
    %3129 = vmatprep.mubr.bf16.mxu0 %v1377
    %3130 = vmatmul.mubr.bf16.gmra.mrb[0].mxu0 %v1376
    %v3131 = vpop.f32.mrb[0].mxu0
    %v3132 = vadd.f32 %v2843, %v3131
    %v3133 = vpop.f32.mrb[0].mxu0
    %v3134 = vpop.f32.mrb[0].mxu0
    %v3135 = vadd.f32 %v2846, %v3134
    %v3136 = vpop.f32.mrb[0].mxu0
    %3137 = vmatprep.mubr.bf16.mxu0 %v1381
    %3138 = vmatmul.mubr.bf16.gmra.mrb[0].mxu0 %v1380
    %v3139 = vpop.f32.mrb[0].mxu0
    %v3140 = vadd.f32 %v2851, %v3139
    %v3141 = vpop.f32.mrb[0].mxu0
    %v3142 = vpop.f32.mrb[0].mxu0
    %v3143 = vadd.f32 %v2854, %v3142
    %v3144 = vpop.f32.mrb[0].mxu0
    %3145 = vmatprep.mubr.bf16.mxu0 %v1385
    %3146 = vmatmul.mubr.bf16.gmra.mrb[0].mxu0 %v1384
    %v3147 = vpop.f32.mrb[0].mxu0
    %v3148 = vadd.f32 %v2859, %v3147
    %v3149 = vpop.f32.mrb[0].mxu0
    %v3150 = vpop.f32.mrb[0].mxu0
    %v3151 = vadd.f32 %v2862, %v3150
    %v3152 = vpop.f32.mrb[0].mxu0
    %3153 = vmatprep.mubr.bf16.mxu0 %v1389
    %3154 = vmatmul.mubr.bf16.gmra.mrb[0].mxu0 %v1388
    %v3155 = vpop.f32.mrb[0].mxu0
    %v3156 = vadd.f32 %v2867, %v3155
    %v3157 = vpop.f32.mrb[0].mxu0
    %v3158 = vpop.f32.mrb[0].mxu0
    %v3159 = vadd.f32 %v2870, %v3158
    %v3160 = vpop.f32.mrb[0].mxu0
    %3161 = vdwg.mxu0
    %v3162 = vmax.f32 %v2908, 0.0
    %v3163 = vmax.f32 %v2911, 0.0
    %v3164 = vmax.f32 %v2916, 0.0
    %v3165 = vmax.f32 %v2919, 0.0
    %v3166 = vmax.f32 %v2924, 0.0
    %v3167 = vmax.f32 %v2927, 0.0
    %v3168 = vmax.f32 %v2932, 0.0
    %v3169 = vmax.f32 %v2935, 0.0
    %v3170 = vmax.f32 %v2940, 0.0
    %v3171 = vmax.f32 %v2943, 0.0
    %v3172 = vmax.f32 %v2948, 0.0
    %v3173 = vmax.f32 %v2951, 0.0
    %v3174 = vmax.f32 %v2956, 0.0
    %v3175 = vmax.f32 %v2959, 0.0
    %v3176 = vmax.f32 %v2964, 0.0
    %v3177 = vmax.f32 %v2967, 0.0
    %v3178 = vmax.f32 %v2972, 0.0
    %v3179 = vmax.f32 %v2975, 0.0
    %v3180 = vmax.f32 %v2980, 0.0
    %v3181 = vmax.f32 %v2983, 0.0
    %v3182 = vmax.f32 %v2988, 0.0
    %v3183 = vmax.f32 %v2991, 0.0
    %v3184 = vmax.f32 %v2996, 0.0
    %v3185 = vmax.f32 %v2999, 0.0
    %v3186 = vmax.f32 %v3004, 0.0
    %v3187 = vmax.f32 %v3007, 0.0
    %v3188 = vmax.f32 %v3012, 0.0
    %v3189 = vmax.f32 %v3015, 0.0
    %v3190 = vmax.f32 %v3020, 0.0
    %v3191 = vmax.f32 %v3023, 0.0
    %v3192 = vmax.f32 %v3028, 0.0
    %v3193 = vmax.f32 %v3031, 0.0
    %v3194 = vmax.f32 %v3036, 0.0
    %v3195 = vmax.f32 %v3039, 0.0
    %v3196 = vmax.f32 %v3044, 0.0
    %v3197 = vmax.f32 %v3047, 0.0
    %v3198 = vmax.f32 %v3052, 0.0
    %v3199 = vmax.f32 %v3055, 0.0
    %v3200 = vmax.f32 %v3060, 0.0
    %v3201 = vmax.f32 %v3063, 0.0
    %v3202 = vmax.f32 %v3068, 0.0
    %v3203 = vmax.f32 %v3071, 0.0
    %v3204 = vmax.f32 %v3076, 0.0
    %v3205 = vmax.f32 %v3079, 0.0
    %v3206 = vmax.f32 %v3084, 0.0
    %v3207 = vmax.f32 %v3087, 0.0
    %v3208 = vmax.f32 %v3092, 0.0
    %v3209 = vmax.f32 %v3095, 0.0
    %v3210 = vmax.f32 %v3100, 0.0
    %v3211 = vmax.f32 %v3103, 0.0
    %v3212 = vmax.f32 %v3108, 0.0
    %v3213 = vmax.f32 %v3111, 0.0
    %v3214 = vmax.f32 %v3116, 0.0
    %v3215 = vmax.f32 %v3119, 0.0
    %v3216 = vmax.f32 %v3124, 0.0
    %v3217 = vmax.f32 %v3127, 0.0
    %v3218 = vmax.f32 %v3132, 0.0
    %v3219 = vmax.f32 %v3135, 0.0
    %v3220 = vmax.f32 %v3140, 0.0
    %v3221 = vmax.f32 %v3143, 0.0
    %v3222 = vmax.f32 %v3148, 0.0
    %v3223 = vmax.f32 %v3151, 0.0
    %v3224 = vmax.f32 %v3156, 0.0
    %v3225 = vmax.f32 %v3159, 0.0
    %v3226 = vlaneseq
    %v3227 = vshrl.u32 %v3226, 7
    %v3228 = vld [vmem:[%s2] sm:$0xf]
    %v3229 = vlaneseq
    %v3230 = vshrl.u32 %v3229, 7
    %v3231 = vsub.s32 0, %v3230
    %v3232 = vrot.slane %v3228, %v3231
    %v3233 = vlaneseq
    %v3234 = vshrl.u32 %v3233, 7
    %v3235 = vsub.s32 1, %v3234
    %v3236 = vrot.slane %v3228, %v3235
    %v3237 = vlaneseq
    %v3238 = vshrl.u32 %v3237, 7
    %v3239 = vsub.s32 2, %v3238
    %v3240 = vrot.slane %v3228, %v3239
    %v3241 = vlaneseq
    %v3242 = vshrl.u32 %v3241, 7
    %v3243 = vsub.s32 3, %v3242
    %v3244 = vrot.slane %v3228, %v3243
    %vm3245 = vcmp.eq.s32.totalorder %v3232, %v3227
    %vm3246 = vcmp.eq.s32.totalorder %v3236, %v3227
    %vm3247 = vcmp.eq.s32.totalorder %v3240, %v3227
    %vm3248 = vcmp.eq.s32.totalorder %v3244, %v3227
    %v3249 = vsel %vm3245, 1, 0
    %v3250 = vsel %vm3246, 1, 0
    %v3251 = vsel %vm3247, 1, 0
    %v3252 = vsel %vm3248, 1, 0
    %v3253 = vcvt.s32.f32 %v3249
    %v3254 = vcvt.s32.f32 %v3250
    %v3255 = vcvt.s32.f32 %v3251
    %v3256 = vcvt.s32.f32 %v3252
    %3257 = vmatprep.subr.mxu0 0.0
    %3258 = vmatpush1.msra.mxu0 %v3162
    %3259 = vmatprep.subr.mxu0 0.0
    %3260 = vmatpush1.msra.mxu0 %v3163
    %3261 = vmatprep.subr.mxu0 0.0
    %3262 = vmatpush1.msra.mxu0 %v3164
    %3263 = vmatprep.subr.mxu0 0.0
    %3264 = vmatpush1.msra.mxu0 %v3165
    %3265 = vmatprep.subr.mxu0 0.0
    %3266 = vmatpush1.msra.mxu0 %v3166
    %3267 = vmatprep.subr.mxu0 0.0
    %3268 = vmatpush1.msra.mxu0 %v3167
    %3269 = vmatprep.subr.mxu0 0.0
    %3270 = vmatpush1.msra.mxu0 %v3168
    %3271 = vmatprep.subr.mxu0 0.0
    %3272 = vmatpush1.msra.mxu0 %v3169
    %3273 = vmatprep.subr.mxu0 0.0
    %3274 = vmatpush1.msra.mxu0 %v3170
    %3275 = vmatprep.subr.mxu0 0.0
    %3276 = vmatpush1.msra.mxu0 %v3171
    %3277 = vmatprep.subr.mxu0 0.0
    %3278 = vmatpush1.msra.mxu0 %v3172
    %3279 = vmatprep.subr.mxu0 0.0
    %3280 = vmatpush1.msra.mxu0 %v3173
    %3281 = vmatprep.subr.mxu0 0.0
    %3282 = vmatpush1.msra.mxu0 %v3174
    %3283 = vmatprep.subr.mxu0 0.0
    %3284 = vmatpush1.msra.mxu0 %v3175
    %3285 = vmatprep.subr.mxu0 0.0
    %3286 = vmatpush1.msra.mxu0 %v3176
    %3287 = vmatprep.subr.mxu0 0.0
    %3288 = vmatpush1.msra.mxu0 %v3177
    %3289 = vmatprep.subr.mxu0 0.0
    %3290 = vmatpush1.msra.mxu0 %v3178
    %3291 = vmatprep.subr.mxu0 0.0
    %3292 = vmatpush1.msra.mxu0 %v3179
    %3293 = vmatprep.subr.mxu0 0.0
    %3294 = vmatpush1.msra.mxu0 %v3180
    %3295 = vmatprep.subr.mxu0 0.0
    %3296 = vmatpush1.msra.mxu0 %v3181
    %3297 = vmatprep.subr.mxu0 0.0
    %3298 = vmatpush1.msra.mxu0 %v3182
    %3299 = vmatprep.subr.mxu0 0.0
    %3300 = vmatpush1.msra.mxu0 %v3183
    %3301 = vmatprep.subr.mxu0 0.0
    %3302 = vmatpush1.msra.mxu0 %v3184
    %3303 = vmatprep.subr.mxu0 0.0
    %3304 = vmatpush1.msra.mxu0 %v3185
    %3305 = vmatprep.subr.mxu0 0.0
    %3306 = vmatpush1.msra.mxu0 %v3186
    %3307 = vmatprep.subr.mxu0 0.0
    %3308 = vmatpush1.msra.mxu0 %v3187
    %3309 = vmatprep.subr.mxu0 0.0
    %3310 = vmatpush1.msra.mxu0 %v3188
    %3311 = vmatprep.subr.mxu0 0.0
    %3312 = vmatpush1.msra.mxu0 %v3189
    %3313 = vmatprep.subr.mxu0 0.0
    %3314 = vmatpush1.msra.mxu0 %v3190
    %3315 = vmatprep.subr.mxu0 0.0
    %3316 = vmatpush1.msra.mxu0 %v3191
    %3317 = vmatprep.subr.mxu0 0.0
    %3318 = vmatpush1.msra.mxu0 %v3192
    %3319 = vmatprep.subr.mxu0 0.0
    %3320 = vmatpush1.msra.mxu0 %v3193
    %3321 = vmatprep.mubr.f32.mxu0 %v3254
    %3322 = vmatmul.mubr.f32.gmra.mrb[0].mxu0 %v3253
    %v3323 = vpop.f32.mrb[0].mxu0
    %v3324 = vadd.f32 0.0, %v3323
    %v3325 = vpop.f32.mrb[0].mxu0
    %3326 = vdwg.mxu0
    %3327 = vmatprep.subr.mxu0 0.0
    %3328 = vmatpush1.msra.mxu0 %v3194
    %3329 = vmatprep.subr.mxu0 0.0
    %3330 = vmatpush1.msra.mxu0 %v3195
    %3331 = vmatprep.subr.mxu0 0.0
    %3332 = vmatpush1.msra.mxu0 %v3196
    %3333 = vmatprep.subr.mxu0 0.0
    %3334 = vmatpush1.msra.mxu0 %v3197
    %3335 = vmatprep.subr.mxu0 0.0
    %3336 = vmatpush1.msra.mxu0 %v3198
    %3337 = vmatprep.subr.mxu0 0.0
    %3338 = vmatpush1.msra.mxu0 %v3199
    %3339 = vmatprep.subr.mxu0 0.0
    %3340 = vmatpush1.msra.mxu0 %v3200
    %3341 = vmatprep.subr.mxu0 0.0
    %3342 = vmatpush1.msra.mxu0 %v3201
    %3343 = vmatprep.subr.mxu0 0.0
    %3344 = vmatpush1.msra.mxu0 %v3202
    %3345 = vmatprep.subr.mxu0 0.0
    %3346 = vmatpush1.msra.mxu0 %v3203
    %3347 = vmatprep.subr.mxu0 0.0
    %3348 = vmatpush1.msra.mxu0 %v3204
    %3349 = vmatprep.subr.mxu0 0.0
    %3350 = vmatpush1.msra.mxu0 %v3205
    %3351 = vmatprep.subr.mxu0 0.0
    %3352 = vmatpush1.msra.mxu0 %v3206
    %3353 = vmatprep.subr.mxu0 0.0
    %3354 = vmatpush1.msra.mxu0 %v3207
    %3355 = vmatprep.subr.mxu0 0.0
    %3356 = vmatpush1.msra.mxu0 %v3208
    %3357 = vmatprep.subr.mxu0 0.0
    %3358 = vmatpush1.msra.mxu0 %v3209
    %3359 = vmatprep.subr.mxu0 0.0
    %3360 = vmatpush1.msra.mxu0 %v3210
    %3361 = vmatprep.subr.mxu0 0.0
    %3362 = vmatpush1.msra.mxu0 %v3211
    %3363 = vmatprep.subr.mxu0 0.0
    %3364 = vmatpush1.msra.mxu0 %v3212
    %3365 = vmatprep.subr.mxu0 0.0
    %3366 = vmatpush1.msra.mxu0 %v3213
    %3367 = vmatprep.subr.mxu0 0.0
    %3368 = vmatpush1.msra.mxu0 %v3214
    %3369 = vmatprep.subr.mxu0 0.0
    %3370 = vmatpush1.msra.mxu0 %v3215
    %3371 = vmatprep.subr.mxu0 0.0
    %3372 = vmatpush1.msra.mxu0 %v3216
    %3373 = vmatprep.subr.mxu0 0.0
    %3374 = vmatpush1.msra.mxu0 %v3217
    %3375 = vmatprep.subr.mxu0 0.0
    %3376 = vmatpush1.msra.mxu0 %v3218
    %3377 = vmatprep.subr.mxu0 0.0
    %3378 = vmatpush1.msra.mxu0 %v3219
    %3379 = vmatprep.subr.mxu0 0.0
    %3380 = vmatpush1.msra.mxu0 %v3220
    %3381 = vmatprep.subr.mxu0 0.0
    %3382 = vmatpush1.msra.mxu0 %v3221
    %3383 = vmatprep.subr.mxu0 0.0
    %3384 = vmatpush1.msra.mxu0 %v3222
    %3385 = vmatprep.subr.mxu0 0.0
    %3386 = vmatpush1.msra.mxu0 %v3223
    %3387 = vmatprep.subr.mxu0 0.0
    %3388 = vmatpush1.msra.mxu0 %v3224
    %3389 = vmatprep.subr.mxu0 0.0
    %3390 = vmatpush1.msra.mxu0 %v3225
    %3391 = vmatprep.mubr.f32.mxu0 %v3256
    %3392 = vmatmul.mubr.f32.gmra.mrb[0].mxu0 %v3255
    %v3393 = vpop.f32.mrb[0].mxu0
    %v3394 = vadd.f32 %v3324, %v3393
    %v3395 = vpop.f32.mrb[0].mxu0
    %3396 = vdwg.mxu0
    %v3397 = vld [vmem:[#allocation10] sm:$0xff]
    %v3398 = vld [vmem:[#allocation10 + $0x8] sm:$0xff]
    %v3399 = vld [vmem:[#allocation10 + $0x10] sm:$0xff]
    %v3400 = vld [vmem:[#allocation10 + $0x18] sm:$0xff]
    %v3401 = vld [vmem:[#allocation10 + $0x20] sm:$0xff]
    %v3402 = vld [vmem:[#allocation10 + $0x28] sm:$0xff]
    %v3403 = vld [vmem:[#allocation10 + $0x30] sm:$0xff]
    %v3404 = vld [vmem:[#allocation10 + $0x38] sm:$0xff]
    %v3405 = vld [vmem:[#allocation10 + $0x40] sm:$0xff]
    %v3406 = vld [vmem:[#allocation10 + $0x48] sm:$0xff]
    %v3407 = vld [vmem:[#allocation10 + $0x50] sm:$0xff]
    %v3408 = vld [vmem:[#allocation10 + $0x58] sm:$0xff]
    %v3409 = vld [vmem:[#allocation10 + $0x60] sm:$0xff]
    %v3410 = vld [vmem:[#allocation10 + $0x68] sm:$0xff]
    %v3411 = vld [vmem:[#allocation10 + $0x70] sm:$0xff]
    %v3412 = vld [vmem:[#allocation10 + $0x78] sm:$0xff]
    %v3413 = vld [vmem:[%s8] sm:$0x1]
    %v3415 = vlaneseq
    %v3416 = vshrl.u32 %v3415, 7
    %v3417 = vsub.s32 0, %v3416
    %v3418 = vrot.slane %v3413, %v3417
    %3420 = vmatprep.subr.mxu0 0.0
    %3421 = vmatpush1.msra.mxu0 %v3397
    %3422 = vmatprep.subr.mxu0 0.0
    %3423 = vmatpush1.msra.mxu0 %v3398
    %3424 = vmatprep.subr.mxu0 0.0
    %3425 = vmatpush1.msra.mxu0 %v3399
    %3426 = vmatprep.subr.mxu0 0.0
    %3427 = vmatpush1.msra.mxu0 %v3400
    %3428 = vmatprep.subr.mxu0 0.0
    %3429 = vmatpush1.msra.mxu0 %v3401
    %3430 = vmatprep.subr.mxu0 0.0
    %3431 = vmatpush1.msra.mxu0 %v3402
    %3432 = vmatprep.subr.mxu0 0.0
    %3433 = vmatpush1.msra.mxu0 %v3403
    %3434 = vmatprep.subr.mxu0 0.0
    %3435 = vmatpush1.msra.mxu0 %v3404
    %3436 = vmatprep.subr.mxu0 0.0
    %3437 = vmatpush1.msra.mxu0 %v3405
    %3438 = vmatprep.subr.mxu0 0.0
    %3439 = vmatpush1.msra.mxu0 %v3406
    %3440 = vmatprep.subr.mxu0 0.0
    %3441 = vmatpush1.msra.mxu0 %v3407
    %3442 = vmatprep.subr.mxu0 0.0
    %3443 = vmatpush1.msra.mxu0 %v3408
    %3444 = vmatprep.subr.mxu0 0.0
    %3445 = vmatpush1.msra.mxu0 %v3409
    %3446 = vmatprep.subr.mxu0 0.0
    %3447 = vmatpush1.msra.mxu0 %v3410
    %3448 = vmatprep.subr.mxu0 0.0
    %3449 = vmatpush1.msra.mxu0 %v3411
    %3450 = vmatprep.subr.mxu0 0.0
    %3451 = vmatpush1.msra.mxu0 %v3412
    %3452 = vmatprep.subr.mxu0 0.0
    %3453 = vmatpush1.msra.mxu0 0.0
    %3454 = vmatprep.subr.mxu0 0.0
    %3455 = vmatpush1.msra.mxu0 0.0
    %3456 = vmatprep.subr.mxu0 0.0
    %3457 = vmatpush1.msra.mxu0 0.0
    %3458 = vmatprep.subr.mxu0 0.0
    %3459 = vmatpush1.msra.mxu0 0.0
    %3460 = vmatprep.subr.mxu0 0.0
    %3461 = vmatpush1.msra.mxu0 0.0
    %3462 = vmatprep.subr.mxu0 0.0
    %3463 = vmatpush1.msra.mxu0 0.0
    %3464 = vmatprep.subr.mxu0 0.0
    %3465 = vmatpush1.msra.mxu0 0.0
    %3466 = vmatprep.subr.mxu0 0.0
    %3467 = vmatpush1.msra.mxu0 0.0
    %3468 = vmatprep.subr.mxu0 0.0
    %3469 = vmatpush1.msra.mxu0 0.0
    %3470 = vmatprep.subr.mxu0 0.0
    %3471 = vmatpush1.msra.mxu0 0.0
    %3472 = vmatprep.subr.mxu0 0.0
    %3473 = vmatpush1.msra.mxu0 0.0
    %3474 = vmatprep.subr.mxu0 0.0
    %3475 = vmatpush1.msra.mxu0 0.0
    %3476 = vmatprep.subr.mxu0 0.0
    %3477 = vmatpush1.msra.mxu0 0.0
    %3478 = vmatprep.subr.mxu0 0.0
    %3479 = vmatpush1.msra.mxu0 0.0
    %3480 = vmatprep.subr.mxu0 0.0
    %3481 = vmatpush1.msra.mxu0 0.0
    %3482 = vmatprep.subr.mxu0 0.0
    %3483 = vmatpush1.msra.mxu0 0.0
    %3484 = vmatprep.mubr.f32.mxu0 0.0
    %3485 = vmatmul.mubr.f32.gmra.mrb[0].mxu0 %v3394
    %v3486 = vpop.f32.mrb[0].mxu0
    %v3487 = vadd.f32 %v3418, %v3486
    %v3488 = vpop.f32.mrb[0].mxu0
    %3489 = vdwg.mxu0
    %v3490 = vlaneseq
    %v3491 = vand.u32 %v3490, 127
    %vm3492 = vcmp.lt.s32.totalorder %v3491, 8
    %v3493 = vsel %vm3492, %v3487, -1e+30
    %3494 = vmax.xlane.f32.xlu0 %v3493
    %v3495 = vpop.xlane.xlu0 %3494
    %v3496 = vsub.f32 %v3493, %v3495
    %v3497 = vmul.f32 %v3496, 1.442695
    %v3498 = vpow.pop %v3497
    %3499 = vadd.xlane.f32.xlu0 %v3498
    %v3500 = vpop.xlane.xlu0 %3499
    %v3501 = vlog2.pop %v3500
    %v3502 = vmul.f32 %v3501, 0.6931472
    %v3503 = vsub.f32 %v3496, %v3502
    %3504 = vst [vmem:[#allocation11] sm:$0xff] %v3503
    // Predicated region
    $region58: #{tpu_custom_call.1} parent=1 // pred_check
      _
    $region59: #{tpu_custom_call.1} parent=1 // pred_check_branch
      %3506 = sbr.rel (0) target = $region61
    $region60: #{tpu_custom_call.1} parent=1 // pred_region
      %s3508 = ssub.s32 128, 128
      %3509 = vsyncadd [#allocation4], %s3508
      %s3511 = sshll.u32 [#allocation11], 4
      %s3512 = int_to_ptr.vmem [resolvable:$true] %s3511
      %3514 = dma.vmem_to_hbm [thread:$0]  %s3512, 128, %s9, [#allocation4]
    $region61: #{tpu_custom_call.1} parent=1 // pred_fallthru
      _
    // Predicated region
    $region62: #{tpu_custom_call.1} parent=1 // pred_check
      _
    $region63: #{tpu_custom_call.1} parent=1 // pred_check_branch
      %3516 = sbr.rel (0) target = $region65
    $region64: #{tpu_custom_call.1} parent=1 // pred_region
      %3517 = dma.done [#allocation4], 128
    $region65: #{tpu_custom_call.1} parent=1 // pred_fallthru
      _
    %3518 = vsyncpa [#allocation3], 1
    %3519 = vsyncpa [#allocation6], 1
    %3520 = vsyncpa [#allocation9], 1
    %3521 = vsyncpa [#allocation4], 1

</llo_original>
